<compile_context>
chip_gen: v7x
topology: tpu7x:2x2x1
jax: 0.10.0
libtpu: 0.0.40
codegen_flags: <defaults>
</compile_context>

<pallas_src>
import functools

import jax
import jax.numpy as jnp
from jax.experimental import pallas as pl
from jax.experimental.pallas import tpu as pltpu

POS_IN = 3
VIEWS_IN = 3
IN_CH = POS_IN + VIEWS_IN
WIDTH = 256
HALF_W = WIDTH // 2


def _act(h, act_fc):
    if act_fc == "relu":
        return jnp.maximum(h, 0.0)
    elif act_fc == "tanh":
        return jnp.tanh(h)
    elif act_fc == "siren":
        return jnp.sin(h)
    elif act_fc == "gaussian":
        return jnp.exp(-(h - 0.0) ** 2 / (2.0 * 0.1 ** 2))
    return h


def nerf_kernel(
    x_ref,
    w0_ref, b0_ref,
    w1_ref, b1_ref,
    w2_ref, b2_ref,
    w3_ref, b3_ref,
    wsig_ref, bsig_ref,
    wfeat_ref, bfeat_ref,
    wvf_ref, wvv_ref, bv_ref,
    wrgb_ref, brgb_ref,
    out_ref,
    *, act_fc,
):
    # bf16 operands on the MXU, f32 accumulation, f32 elementwise math.
    def mm(a_f32, w_ref):
        return jnp.dot(a_f32.astype(jnp.bfloat16), w_ref[...],
                       preferred_element_type=jnp.float32)

    xb = x_ref[...].astype(jnp.bfloat16)  # (tm, 6) cast once, reused twice

    # MLP trunk (4 layers, activation after each).  w0 is zero-padded over the
    # view columns so x @ w0_pad == input_pts @ w0.
    h = _act(jnp.dot(xb, w0_ref[...], preferred_element_type=jnp.float32)
             + b0_ref[...], act_fc)
    h = _act(mm(h, w1_ref) + b1_ref[...], act_fc)
    h = _act(mm(h, w2_ref) + b2_ref[...], act_fc)
    h = _act(mm(h, w3_ref) + b3_ref[...], act_fc)

    # sigma head (no activation)
    sigma = mm(h, wsig_ref) + bsig_ref[...]

    # feature head (no activation)
    feature = mm(h, wfeat_ref) + bfeat_ref[...]

    # view layer on cat([feature, input_views]) expressed as a split matmul;
    # wvv is zero-padded so only the view columns of x contribute.
    hv = (mm(feature, wvf_ref)
          + jnp.dot(xb, wvv_ref[...], preferred_element_type=jnp.float32)
          + bv_ref[...])
    hv = _act(hv, act_fc)

    # rgb head (no activation)
    rgb = mm(hv, wrgb_ref) + brgb_ref[...]

    # Single fused (tm, 4) output: [rgb | sigma].
    out_ref[...] = jnp.concatenate([rgb, sigma], axis=-1).astype(out_ref.dtype)


def init_params(key):
    """Deterministic PyTorch-Linear-style init: U(-1/sqrt(fan_in), 1/sqrt(fan_in)).
    Weights are stored (in_features, out_features), f32."""
    def linear(k, fan_in, fan_out):
        bound = 1.0 / jnp.sqrt(jnp.float32(fan_in))
        kw, kb = jax.random.split(k)
        w = jax.random.uniform(kw, (fan_in, fan_out), jnp.float32, -bound, bound)
        b = jax.random.uniform(kb, (1, fan_out), jnp.float32, -bound, bound)
        return w, b

    keys = jax.random.split(key, 8)
    p = {}
    p["w0"], p["b0"] = linear(keys[0], POS_IN, WIDTH)                 # mlp_layers[0]
    p["w1"], p["b1"] = linear(keys[1], WIDTH, WIDTH)                  # mlp_layers[1]
    p["w2"], p["b2"] = linear(keys[2], WIDTH, WIDTH)                  # mlp_layers[2]
    p["w3"], p["b3"] = linear(keys[3], WIDTH, WIDTH)                  # mlp_layers[3]
    p["wfeat"], p["bfeat"] = linear(keys[4], WIDTH, WIDTH)            # feature_layer
    p["wsig"], p["bsig"] = linear(keys[5], WIDTH, 1)                  # sigma_layer
    p["wview"], p["bview"] = linear(keys[6], VIEWS_IN + WIDTH, HALF_W)  # view_layers[0]
    p["wrgb"], p["brgb"] = linear(keys[7], HALF_W, 3)                 # rgb_layer
    return p


def prepare_weights(params):
    """One-time (per parameter set) weight folding + bf16 cast.

    Folds the pts/views split and the [feature, views] concat into zero-padded
    weight matrices, and casts all matmul weights to bf16.  Biases stay f32.
    Call this once and reuse the result across nerf_forward calls.
    """
    bf = lambda w: w.astype(jnp.bfloat16)
    w0_pad = jnp.zeros((IN_CH, WIDTH), jnp.float32).at[:POS_IN].set(params["w0"])
    wv_feat = params["wview"][:WIDTH]                                  # (256, 128)
    wv_views = jnp.zeros((IN_CH, HALF_W), jnp.float32).at[POS_IN:].set(
        params["wview"][WIDTH:])                                       # (6, 128), pts rows zero

    return [
        bf(w0_pad), params["b0"],
        bf(params["w1"]), params["b1"],
        bf(params["w2"]), params["b2"],
        bf(params["w3"]), params["b3"],
        bf(params["wsig"]), params["bsig"],
        bf(params["wfeat"]), params["bfeat"],
        bf(wv_feat), bf(wv_views), params["bview"],
        bf(params["wrgb"]), params["brgb"],
    ]


def nerf_forward(x, prepared_weights, act_fc="relu", tm=1024,
                 vmem_limit_bytes=None):
    """x: (N, 6) float32.  prepared_weights: output of prepare_weights().
    Returns (N, 4) f32 = cat([rgb, sigma], -1).

    tm is the batch tile; any N works (tail is zero-padded and sliced off).
    Recommended tm: 512-2048 (keep N // tm >= 2 on v7x so both TensorCores
    get work; cap tm / raise vmem_limit_bytes for very large tiles)."""
    N, C = x.shape
    assert C == IN_CH

    n_tiles = pl.cdiv(N, tm)
    padded_n = n_tiles * tm
    if padded_n != N:
        x = jnp.pad(x, ((0, padded_n - N), (0, 0)))

    def full_spec(shape):
        nd = len(shape)
        return pl.BlockSpec(shape, lambda i, _nd=nd: (0,) * _nd)

    in_specs = [pl.BlockSpec((tm, C), lambda i: (i, 0))] + [
        full_spec(w.shape) for w in prepared_weights
    ]
    out_specs = pl.BlockSpec((tm, 4), lambda i: (i, 0))

    out = pl.pallas_call(
        functools.partial(nerf_kernel, act_fc=act_fc),
        out_shape=jax.ShapeDtypeStruct((padded_n, 4), jnp.float32),
        grid_spec=pltpu.PrefetchScalarGridSpec(
            num_scalar_prefetch=0,
            grid=(n_tiles,),
            in_specs=in_specs,
            out_specs=out_specs,
        ),
        compiler_params=pltpu.CompilerParams(
            dimension_semantics=("parallel",),
            vmem_limit_bytes=vmem_limit_bytes,
        ),
    )(x, *prepared_weights)

    if padded_n != N:
        out = out[:N]
    return out


def nerf_reference(x, params, act_fc="relu"):
    """Pure-JAX reference mirroring the PyTorch forward (default config), with
    the same bf16-operand / f32-accumulation rounding as the kernel."""
    def mm(a, w):
        return jnp.dot(a.astype(jnp.bfloat16), w.astype(jnp.bfloat16),
                       preferred_element_type=jnp.float32)

    pts, views = x[:, :POS_IN], x[:, POS_IN:]
    h = _act(mm(pts, params["w0"]) + params["b0"], act_fc)
    h = _act(mm(h, params["w1"]) + params["b1"], act_fc)
    h = _act(mm(h, params["w2"]) + params["b2"], act_fc)
    h = _act(mm(h, params["w3"]) + params["b3"], act_fc)
    sigma = mm(h, params["wsig"]) + params["bsig"]
    feature = mm(h, params["wfeat"]) + params["bfeat"]
    hv = mm(jnp.concatenate([feature, views], axis=-1), params["wview"]) + params["bview"]
    hv = _act(hv, act_fc)
    rgb = mm(hv, params["wrgb"]) + params["brgb"]
    return jnp.concatenate([rgb, sigma], axis=-1)


if __name__ == "__main__":
    key = jax.random.PRNGKey(0)
    k_x, k_p = jax.random.split(key)

    N = 256  # small correctness-test batch
    x = jax.random.normal(k_x, (N, IN_CH), jnp.float32)
    params = init_params(k_p)
    prepared = prepare_weights(params)   # folded + bf16, done once

    # Small tile for the small test so the grid has >1 step; production use
    # would keep the tm=1024 default (pad/slice handles any N).
    out = nerf_forward(x, prepared, tm=128)
    out = jax.block_until_ready(out)

    ref = nerf_reference(x, params)
    assert out.shape == (N, 4), out.shape
    assert jnp.allclose(out, ref, atol=2e-2, rtol=2e-2), "mismatch vs reference"

    print("KERNEL_OK")
</pallas_src>

<mosaic_0001>
module attributes {stable_mosaic.version = 11 : i64} {
  func.func @nerf_kernel(%arg0: i32, %arg1: memref<128x6xf32, #tpu.memory_space<vmem>>, %arg2: memref<6x256xbf16, #tpu.memory_space<vmem>>, %arg3: memref<1x256xf32, #tpu.memory_space<vmem>>, %arg4: memref<256x256xbf16, #tpu.memory_space<vmem>>, %arg5: memref<1x256xf32, #tpu.memory_space<vmem>>, %arg6: memref<256x256xbf16, #tpu.memory_space<vmem>>, %arg7: memref<1x256xf32, #tpu.memory_space<vmem>>, %arg8: memref<256x256xbf16, #tpu.memory_space<vmem>>, %arg9: memref<1x256xf32, #tpu.memory_space<vmem>>, %arg10: memref<256x1xbf16, #tpu.memory_space<vmem>>, %arg11: memref<1x1xf32, #tpu.memory_space<vmem>>, %arg12: memref<256x256xbf16, #tpu.memory_space<vmem>>, %arg13: memref<1x256xf32, #tpu.memory_space<vmem>>, %arg14: memref<256x128xbf16, #tpu.memory_space<vmem>>, %arg15: memref<6x128xbf16, #tpu.memory_space<vmem>>, %arg16: memref<1x128xf32, #tpu.memory_space<vmem>>, %arg17: memref<128x3xbf16, #tpu.memory_space<vmem>>, %arg18: memref<1x3xf32, #tpu.memory_space<vmem>>, %arg19: memref<128x4xf32, #tpu.memory_space<vmem>>) attributes {dimension_semantics = [#tpu.dimension_semantics<parallel>], iteration_bounds = array<i64: 2>, scalar_prefetch = 0 : i64, scratch_operands = 0 : i64, tpu.core_type = #tpu.core_type<tc>, window_params = [{transform_indices = @transform_0, window_bounds = array<i64: 128, 6>}, {pipeline_mode = #tpu.pipeline_mode<synchronous>, transform_indices = @transform_1, window_bounds = array<i64: 6, 256>}, {pipeline_mode = #tpu.pipeline_mode<synchronous>, transform_indices = @transform_2, window_bounds = array<i64: 1, 256>}, {pipeline_mode = #tpu.pipeline_mode<synchronous>, transform_indices = @transform_3, window_bounds = array<i64: 256, 256>}, {pipeline_mode = #tpu.pipeline_mode<synchronous>, transform_indices = @transform_4, window_bounds = array<i64: 1, 256>}, {pipeline_mode = #tpu.pipeline_mode<synchronous>, transform_indices = @transform_5, window_bounds = array<i64: 256, 256>}, {pipeline_mode = #tpu.pipeline_mode<synchronous>, transform_indices = @transform_6, window_bounds = array<i64: 1, 256>}, {pipeline_mode = #tpu.pipeline_mode<synchronous>, transform_indices = @transform_7, window_bounds = array<i64: 256, 256>}, {pipeline_mode = #tpu.pipeline_mode<synchronous>, transform_indices = @transform_8, window_bounds = array<i64: 1, 256>}, {pipeline_mode = #tpu.pipeline_mode<synchronous>, transform_indices = @transform_9, window_bounds = array<i64: 256, 1>}, {pipeline_mode = #tpu.pipeline_mode<synchronous>, transform_indices = @transform_10, window_bounds = array<i64: 1, 1>}, {pipeline_mode = #tpu.pipeline_mode<synchronous>, transform_indices = @transform_11, window_bounds = array<i64: 256, 256>}, {pipeline_mode = #tpu.pipeline_mode<synchronous>, transform_indices = @transform_12, window_bounds = array<i64: 1, 256>}, {pipeline_mode = #tpu.pipeline_mode<synchronous>, transform_indices = @transform_13, window_bounds = array<i64: 256, 128>}, {pipeline_mode = #tpu.pipeline_mode<synchronous>, transform_indices = @transform_14, window_bounds = array<i64: 6, 128>}, {pipeline_mode = #tpu.pipeline_mode<synchronous>, transform_indices = @transform_15, window_bounds = array<i64: 1, 128>}, {pipeline_mode = #tpu.pipeline_mode<synchronous>, transform_indices = @transform_16, window_bounds = array<i64: 128, 3>}, {pipeline_mode = #tpu.pipeline_mode<synchronous>, transform_indices = @transform_17, window_bounds = array<i64: 1, 3>}, {transform_indices = @transform_18, window_bounds = array<i64: 128, 4>}]} {
    %c0 = arith.constant 0 : index
    %c0_0 = arith.constant 0 : index
    %0 = vector.load %arg1[%c0, %c0_0] : memref<128x6xf32, #tpu.memory_space<vmem>>, vector<128x6xf32>
    %1 = arith.truncf %0 : vector<128x6xf32> to vector<128x6xbf16>
    %c0_1 = arith.constant 0 : index
    %c0_2 = arith.constant 0 : index
    %2 = vector.load %arg2[%c0_1, %c0_2] : memref<6x256xbf16, #tpu.memory_space<vmem>>, vector<6x256xbf16>
    %cst = arith.constant dense<0.000000e+00> : vector<128x256xf32>
    %3 = tpu.matmul %1, %2, %cst {dimension_numbers = #tpu.dot_dimension_numbers<[1], [0], [0], [1], [0, 0, 1, 1], [], []>} : vector<128x6xbf16>, vector<6x256xbf16>, vector<128x256xf32> -> vector<128x256xf32>
    %c0_3 = arith.constant 0 : index
    %c0_4 = arith.constant 0 : index
    %4 = vector.load %arg3[%c0_3, %c0_4] : memref<1x256xf32, #tpu.memory_space<vmem>>, vector<1x256xf32>
    %5 = vector.broadcast %4 : vector<1x256xf32> to vector<128x256xf32>
    %6 = arith.addf %3, %5 : vector<128x256xf32>
    %cst_5 = arith.constant 0.000000e+00 : f32
    %7 = vector.broadcast %cst_5 : f32 to vector<128x256xf32>
    %8 = arith.maximumf %6, %7 : vector<128x256xf32>
    %9 = arith.truncf %8 : vector<128x256xf32> to vector<128x256xbf16>
    %c0_6 = arith.constant 0 : index
    %c0_7 = arith.constant 0 : index
    %10 = vector.load %arg4[%c0_6, %c0_7] : memref<256x256xbf16, #tpu.memory_space<vmem>>, vector<256x256xbf16>
    %cst_8 = arith.constant dense<0.000000e+00> : vector<128x256xf32>
    %11 = tpu.matmul %9, %10, %cst_8 {dimension_numbers = #tpu.dot_dimension_numbers<[1], [0], [0], [1], [0, 0, 1, 1], [], []>} : vector<128x256xbf16>, vector<256x256xbf16>, vector<128x256xf32> -> vector<128x256xf32>
    %c0_9 = arith.constant 0 : index
    %c0_10 = arith.constant 0 : index
    %12 = vector.load %arg5[%c0_9, %c0_10] : memref<1x256xf32, #tpu.memory_space<vmem>>, vector<1x256xf32>
    %13 = vector.broadcast %12 : vector<1x256xf32> to vector<128x256xf32>
    %14 = arith.addf %11, %13 : vector<128x256xf32>
    %cst_11 = arith.constant 0.000000e+00 : f32
    %15 = vector.broadcast %cst_11 : f32 to vector<128x256xf32>
    %16 = arith.maximumf %14, %15 : vector<128x256xf32>
    %17 = arith.truncf %16 : vector<128x256xf32> to vector<128x256xbf16>
    %c0_12 = arith.constant 0 : index
    %c0_13 = arith.constant 0 : index
    %18 = vector.load %arg6[%c0_12, %c0_13] : memref<256x256xbf16, #tpu.memory_space<vmem>>, vector<256x256xbf16>
    %cst_14 = arith.constant dense<0.000000e+00> : vector<128x256xf32>
    %19 = tpu.matmul %17, %18, %cst_14 {dimension_numbers = #tpu.dot_dimension_numbers<[1], [0], [0], [1], [0, 0, 1, 1], [], []>} : vector<128x256xbf16>, vector<256x256xbf16>, vector<128x256xf32> -> vector<128x256xf32>
    %c0_15 = arith.constant 0 : index
    %c0_16 = arith.constant 0 : index
    %20 = vector.load %arg7[%c0_15, %c0_16] : memref<1x256xf32, #tpu.memory_space<vmem>>, vector<1x256xf32>
    %21 = vector.broadcast %20 : vector<1x256xf32> to vector<128x256xf32>
    %22 = arith.addf %19, %21 : vector<128x256xf32>
    %cst_17 = arith.constant 0.000000e+00 : f32
    %23 = vector.broadcast %cst_17 : f32 to vector<128x256xf32>
    %24 = arith.maximumf %22, %23 : vector<128x256xf32>
    %25 = arith.truncf %24 : vector<128x256xf32> to vector<128x256xbf16>
    %c0_18 = arith.constant 0 : index
    %c0_19 = arith.constant 0 : index
    %26 = vector.load %arg8[%c0_18, %c0_19] : memref<256x256xbf16, #tpu.memory_space<vmem>>, vector<256x256xbf16>
    %cst_20 = arith.constant dense<0.000000e+00> : vector<128x256xf32>
    %27 = tpu.matmul %25, %26, %cst_20 {dimension_numbers = #tpu.dot_dimension_numbers<[1], [0], [0], [1], [0, 0, 1, 1], [], []>} : vector<128x256xbf16>, vector<256x256xbf16>, vector<128x256xf32> -> vector<128x256xf32>
    %c0_21 = arith.constant 0 : index
    %c0_22 = arith.constant 0 : index
    %28 = vector.load %arg9[%c0_21, %c0_22] : memref<1x256xf32, #tpu.memory_space<vmem>>, vector<1x256xf32>
    %29 = vector.broadcast %28 : vector<1x256xf32> to vector<128x256xf32>
    %30 = arith.addf %27, %29 : vector<128x256xf32>
    %cst_23 = arith.constant 0.000000e+00 : f32
    %31 = vector.broadcast %cst_23 : f32 to vector<128x256xf32>
    %32 = arith.maximumf %30, %31 : vector<128x256xf32>
    %33 = arith.truncf %32 : vector<128x256xf32> to vector<128x256xbf16>
    %c0_24 = arith.constant 0 : index
    %c0_25 = arith.constant 0 : index
    %34 = vector.load %arg10[%c0_24, %c0_25] : memref<256x1xbf16, #tpu.memory_space<vmem>>, vector<256x1xbf16>
    %cst_26 = arith.constant dense<0.000000e+00> : vector<128x1xf32>
    %35 = tpu.matmul %33, %34, %cst_26 {dimension_numbers = #tpu.dot_dimension_numbers<[1], [0], [0], [1], [0, 0, 1, 1], [], []>} : vector<128x256xbf16>, vector<256x1xbf16>, vector<128x1xf32> -> vector<128x1xf32>
    %c0_27 = arith.constant 0 : index
    %c0_28 = arith.constant 0 : index
    %36 = vector.load %arg11[%c0_27, %c0_28] : memref<1x1xf32, #tpu.memory_space<vmem>>, vector<1x1xf32>
    %37 = vector.broadcast %36 : vector<1x1xf32> to vector<128x1xf32>
    %38 = arith.addf %35, %37 : vector<128x1xf32>
    %39 = arith.truncf %32 : vector<128x256xf32> to vector<128x256xbf16>
    %c0_29 = arith.constant 0 : index
    %c0_30 = arith.constant 0 : index
    %40 = vector.load %arg12[%c0_29, %c0_30] : memref<256x256xbf16, #tpu.memory_space<vmem>>, vector<256x256xbf16>
    %cst_31 = arith.constant dense<0.000000e+00> : vector<128x256xf32>
    %41 = tpu.matmul %39, %40, %cst_31 {dimension_numbers = #tpu.dot_dimension_numbers<[1], [0], [0], [1], [0, 0, 1, 1], [], []>} : vector<128x256xbf16>, vector<256x256xbf16>, vector<128x256xf32> -> vector<128x256xf32>
    %c0_32 = arith.constant 0 : index
    %c0_33 = arith.constant 0 : index
    %42 = vector.load %arg13[%c0_32, %c0_33] : memref<1x256xf32, #tpu.memory_space<vmem>>, vector<1x256xf32>
    %43 = vector.broadcast %42 : vector<1x256xf32> to vector<128x256xf32>
    %44 = arith.addf %41, %43 : vector<128x256xf32>
    %45 = arith.truncf %44 : vector<128x256xf32> to vector<128x256xbf16>
    %c0_34 = arith.constant 0 : index
    %c0_35 = arith.constant 0 : index
    %46 = vector.load %arg14[%c0_34, %c0_35] : memref<256x128xbf16, #tpu.memory_space<vmem>>, vector<256x128xbf16>
    %cst_36 = arith.constant dense<0.000000e+00> : vector<128x128xf32>
    %47 = tpu.matmul %45, %46, %cst_36 {dimension_numbers = #tpu.dot_dimension_numbers<[1], [0], [0], [1], [0, 0, 1, 1], [], []>} : vector<128x256xbf16>, vector<256x128xbf16>, vector<128x128xf32> -> vector<128x128xf32>
    %c0_37 = arith.constant 0 : index
    %c0_38 = arith.constant 0 : index
    %48 = vector.load %arg15[%c0_37, %c0_38] : memref<6x128xbf16, #tpu.memory_space<vmem>>, vector<6x128xbf16>
    %cst_39 = arith.constant dense<0.000000e+00> : vector<128x128xf32>
    %49 = tpu.matmul %1, %48, %cst_39 {dimension_numbers = #tpu.dot_dimension_numbers<[1], [0], [0], [1], [0, 0, 1, 1], [], []>} : vector<128x6xbf16>, vector<6x128xbf16>, vector<128x128xf32> -> vector<128x128xf32>
    %50 = arith.addf %47, %49 : vector<128x128xf32>
    %c0_40 = arith.constant 0 : index
    %c0_41 = arith.constant 0 : index
    %51 = vector.load %arg16[%c0_40, %c0_41] : memref<1x128xf32, #tpu.memory_space<vmem>>, vector<1x128xf32>
    %52 = vector.broadcast %51 : vector<1x128xf32> to vector<128x128xf32>
    %53 = arith.addf %50, %52 : vector<128x128xf32>
    %cst_42 = arith.constant 0.000000e+00 : f32
    %54 = vector.broadcast %cst_42 : f32 to vector<128x128xf32>
    %55 = arith.maximumf %53, %54 : vector<128x128xf32>
    %56 = arith.truncf %55 : vector<128x128xf32> to vector<128x128xbf16>
    %c0_43 = arith.constant 0 : index
    %c0_44 = arith.constant 0 : index
    %57 = vector.load %arg17[%c0_43, %c0_44] : memref<128x3xbf16, #tpu.memory_space<vmem>>, vector<128x3xbf16>
    %cst_45 = arith.constant dense<0.000000e+00> : vector<128x3xf32>
    %58 = tpu.matmul %56, %57, %cst_45 {dimension_numbers = #tpu.dot_dimension_numbers<[1], [0], [0], [1], [0, 0, 1, 1], [], []>} : vector<128x128xbf16>, vector<128x3xbf16>, vector<128x3xf32> -> vector<128x3xf32>
    %c0_46 = arith.constant 0 : index
    %c0_47 = arith.constant 0 : index
    %59 = vector.load %arg18[%c0_46, %c0_47] : memref<1x3xf32, #tpu.memory_space<vmem>>, vector<1x3xf32>
    %60 = vector.broadcast %59 : vector<1x3xf32> to vector<128x3xf32>
    %61 = arith.addf %58, %60 : vector<128x3xf32>
    %62 = tpu.concatenate %61, %38 in 1 : vector<128x3xf32>, vector<128x1xf32> -> vector<128x4xf32>
    %c0_48 = arith.constant 0 : index
    %c0_49 = arith.constant 0 : index
    %63 = vector.load %arg19[%c0_48, %c0_49] : memref<128x4xf32, #tpu.memory_space<vmem>>, vector<128x4xf32>
    tpu.vector_store %arg19[%c0_48, %c0_49], %62 {strides = array<i32>} : memref<128x4xf32, #tpu.memory_space<vmem>>, vector<128x4xf32>,
    return
  }
  func.func @transform_0(%arg0: i32) -> (i32, i32) {
    %c0_i32 = arith.constant 0 : i32
    %c0_i32_0 = arith.constant 0 : i32
    return %arg0, %c0_i32 : i32, i32
  }
  func.func @transform_1(%arg0: i32) -> (i32, i32) {
    %c0_i32 = arith.constant 0 : i32
    %c0_i32_0 = arith.constant 0 : i32
    %c0_i32_1 = arith.constant 0 : i32
    return %c0_i32, %c0_i32_0 : i32, i32
  }
  func.func @transform_2(%arg0: i32) -> (i32, i32) {
    %c0_i32 = arith.constant 0 : i32
    %c0_i32_0 = arith.constant 0 : i32
    %c0_i32_1 = arith.constant 0 : i32
    return %c0_i32, %c0_i32_0 : i32, i32
  }
  func.func @transform_3(%arg0: i32) -> (i32, i32) {
    %c0_i32 = arith.constant 0 : i32
    %c0_i32_0 = arith.constant 0 : i32
    %c0_i32_1 = arith.constant 0 : i32
    return %c0_i32, %c0_i32_0 : i32, i32
  }
  func.func @transform_4(%arg0: i32) -> (i32, i32) {
    %c0_i32 = arith.constant 0 : i32
    %c0_i32_0 = arith.constant 0 : i32
    %c0_i32_1 = arith.constant 0 : i32
    return %c0_i32, %c0_i32_0 : i32, i32
  }
  func.func @transform_5(%arg0: i32) -> (i32, i32) {
    %c0_i32 = arith.constant 0 : i32
    %c0_i32_0 = arith.constant 0 : i32
    %c0_i32_1 = arith.constant 0 : i32
    return %c0_i32, %c0_i32_0 : i32, i32
  }
  func.func @transform_6(%arg0: i32) -> (i32, i32) {
    %c0_i32 = arith.constant 0 : i32
    %c0_i32_0 = arith.constant 0 : i32
    %c0_i32_1 = arith.constant 0 : i32
    return %c0_i32, %c0_i32_0 : i32, i32
  }
  func.func @transform_7(%arg0: i32) -> (i32, i32) {
    %c0_i32 = arith.constant 0 : i32
    %c0_i32_0 = arith.constant 0 : i32
    %c0_i32_1 = arith.constant 0 : i32
    return %c0_i32, %c0_i32_0 : i32, i32
  }
  func.func @transform_8(%arg0: i32) -> (i32, i32) {
    %c0_i32 = arith.constant 0 : i32
    %c0_i32_0 = arith.constant 0 : i32
    %c0_i32_1 = arith.constant 0 : i32
    return %c0_i32, %c0_i32_0 : i32, i32
  }
  func.func @transform_9(%arg0: i32) -> (i32, i32) {
    %c0_i32 = arith.constant 0 : i32
    %c0_i32_0 = arith.constant 0 : i32
    %c0_i32_1 = arith.constant 0 : i32
    return %c0_i32, %c0_i32_0 : i32, i32
  }
  func.func @transform_10(%arg0: i32) -> (i32, i32) {
    %c0_i32 = arith.constant 0 : i32
    %c0_i32_0 = arith.constant 0 : i32
    %c0_i32_1 = arith.constant 0 : i32
    return %c0_i32, %c0_i32_0 : i32, i32
  }
  func.func @transform_11(%arg0: i32) -> (i32, i32) {
    %c0_i32 = arith.constant 0 : i32
    %c0_i32_0 = arith.constant 0 : i32
    %c0_i32_1 = arith.constant 0 : i32
    return %c0_i32, %c0_i32_0 : i32, i32
  }
  func.func @transform_12(%arg0: i32) -> (i32, i32) {
    %c0_i32 = arith.constant 0 : i32
    %c0_i32_0 = arith.constant 0 : i32
    %c0_i32_1 = arith.constant 0 : i32
    return %c0_i32, %c0_i32_0 : i32, i32
  }
  func.func @transform_13(%arg0: i32) -> (i32, i32) {
    %c0_i32 = arith.constant 0 : i32
    %c0_i32_0 = arith.constant 0 : i32
    %c0_i32_1 = arith.constant 0 : i32
    return %c0_i32, %c0_i32_0 : i32, i32
  }
  func.func @transform_14(%arg0: i32) -> (i32, i32) {
    %c0_i32 = arith.constant 0 : i32
    %c0_i32_0 = arith.constant 0 : i32
    %c0_i32_1 = arith.constant 0 : i32
    return %c0_i32, %c0_i32_0 : i32, i32
  }
  func.func @transform_15(%arg0: i32) -> (i32, i32) {
    %c0_i32 = arith.constant 0 : i32
    %c0_i32_0 = arith.constant 0 : i32
    %c0_i32_1 = arith.constant 0 : i32
    return %c0_i32, %c0_i32_0 : i32, i32
  }
  func.func @transform_16(%arg0: i32) -> (i32, i32) {
    %c0_i32 = arith.constant 0 : i32
    %c0_i32_0 = arith.constant 0 : i32
    %c0_i32_1 = arith.constant 0 : i32
    return %c0_i32, %c0_i32_0 : i32, i32
  }
  func.func @transform_17(%arg0: i32) -> (i32, i32) {
    %c0_i32 = arith.constant 0 : i32
    %c0_i32_0 = arith.constant 0 : i32
    %c0_i32_1 = arith.constant 0 : i32
    return %c0_i32, %c0_i32_0 : i32, i32
  }
  func.func @transform_18(%arg0: i32) -> (i32, i32) {
    %c0_i32 = arith.constant 0 : i32
    %c0_i32_0 = arith.constant 0 : i32
    return %arg0, %c0_i32 : i32, i32
  }
}

</mosaic_0001>

<llo_original>
// kernel: tpu_custom_call.1
$region0: #{tpu_custom_call.1}
  #allocation0 [shape = 'u32[]', space=smem, size = 0x4, offset = 0x4, fixed_abs, tag = 'smem constant byte address 0x4 - core index']
  #allocation1 [shape = 'u32[144,128]{1,0:T(1,128)}', space=vmem, size = 0x12000, scoped, tag = 'internal scratch']
  #allocation2 [shape = 'f32[1,1]{1,0:T(1,128)S(1)}', space=vmem, size = 0x200, scoped, tag = 'scoped memory for tpu_custom_call.1']
  %s0 = inlined_call_operand.vmem [shape: f32[256,6], index: 0, kind: input, shape index: {}]
  %s1 = inlined_call_operand.vmem [shape: bf16[6,256], index: 1, kind: input, shape index: {}]
  %s2 = inlined_call_operand.vmem [shape: f32[1,256], index: 2, kind: input, shape index: {}]
  %s3 = inlined_call_operand.vmem [shape: bf16[256,256], index: 3, kind: input, shape index: {}]
  %s4 = inlined_call_operand.vmem [shape: f32[1,256], index: 4, kind: input, shape index: {}]
  %s5 = inlined_call_operand.hbm [shape: bf16[256,256], index: 5, kind: input, shape index: {}]
  %s6 = inlined_call_operand.vmem [shape: f32[1,256], index: 6, kind: input, shape index: {}]
  %s7 = inlined_call_operand.hbm [shape: bf16[256,256], index: 7, kind: input, shape index: {}]
  %s8 = inlined_call_operand.vmem [shape: f32[1,256], index: 8, kind: input, shape index: {}]
  %s9 = inlined_call_operand.vmem [shape: bf16[256,1], index: 9, kind: input, shape index: {}]
  %s10 = inlined_call_operand.<no memory space> [shape: f32[1,1], index: 10, kind: input, shape index: {}]
  %s11 = inlined_call_operand.hbm [shape: bf16[256,256], index: 11, kind: input, shape index: {}]
  %s12 = inlined_call_operand.vmem [shape: f32[1,256], index: 12, kind: input, shape index: {}]
  %s13 = inlined_call_operand.vmem [shape: bf16[256,128], index: 13, kind: input, shape index: {}]
  %s14 = inlined_call_operand.vmem [shape: bf16[6,128], index: 14, kind: input, shape index: {}]
  %s15 = inlined_call_operand.vmem [shape: f32[1,128], index: 15, kind: input, shape index: {}]
  %s16 = inlined_call_operand.vmem [shape: bf16[128,3], index: 16, kind: input, shape index: {}]
  %s17 = inlined_call_operand.vmem [shape: f32[1,3], index: 17, kind: input, shape index: {}]
  %s18 = inlined_call_operand.vmem [shape: f32[256,4], index: 18, kind: output, shape index: {}]
  %s19 = sld [smem:[#allocation0]]
  $region117: #{tpu_custom_call.1} parent=0
    _
  %s21 = ssub.s32 1, %s19
  %s22 = scalar_select 0, %s21, %s19
  %v23 = vstv %s10
  %24 = vst [vmem:[#allocation2] sm:$0x1] %v23
  $region1: #{tpu_custom_call.1} parent=0
    #allocation3 [shape = 'u8[131072]{0}', space=vmem, size = 0x20000, scoped, tag = 'input window, operand 5, single buffered']
    #allocation4 [shape = 's32[2]{0}', space=sflag, size = 0x8, scoped, tag = 'scoped memory for tpu_custom_call.1']
    #allocation5 [shape = 'u8[131072]{0}', space=vmem, size = 0x20000, scoped, tag = 'input window, operand 7, single buffered']
    #allocation6 [shape = 's32[1]{0}', space=sflag, size = 0x4, scoped, tag = 'scoped memory for tpu_custom_call.1']
    #allocation7 [shape = 'u8[131072]{0}', space=vmem, size = 0x20000, scoped, tag = 'input window, operand 11, single buffered']
    %25 = vsyncpa [#allocation4], 0
    %26 = vsyncpa [#allocation6], 0
    loop: start=0, step=1, limit=4
    $region2: #{tpu_custom_call.1} parent=1 // loop_pre_header
      _
    $region3: #{tpu_custom_call.1} parent=1 // loop_header
      %s28 = sphi 0, %s32
      %p29 = scmp.ge.s32.totalorder %s28, 4
      %s38 = sphi 0, %s40
      %s41 = sphi 0, %s38
      %s42 = sphi 0, %s41
      %s58 = sphi 0, %s42
      %s62 = sphi 0, %s62
      %s64 = sphi 0, %s62
      %s65 = sphi 0, %s64
      %s79 = sphi 0, %s65
      %s83 = sphi 0, %s83
      %s85 = sphi 0, %s83
      %s86 = sphi 0, %s85
      %s100 = sphi 0, %s86
      %s104 = sphi 0, %s104
      %s106 = sphi 0, %s104
      %s107 = sphi 0, %s106
      %s121 = sphi 0, %s107
      %s125 = sphi 0, %s125
      %s127 = sphi 0, %s125
      %s128 = sphi 0, %s127
      %s142 = sphi 0, %s128
      %s146 = sphi 0, %s146
      %s148 = sphi 0, %s146
      %s149 = sphi 0, %s148
      %s163 = sphi 0, %s149
      %s167 = sphi 0, %s167
      %s169 = sphi 0, %s167
      %s170 = sphi 0, %s169
      %s184 = sphi 0, %s170
      %s188 = sphi 0, %s188
      %s190 = sphi 0, %s188
      %s191 = sphi 0, %s190
      %s205 = sphi 0, %s191
      %s209 = sphi 0, %s209
      %s211 = sphi 0, %s209
      %s212 = sphi 0, %s211
      %s226 = sphi 0, %s212
      %s230 = sphi 0, %s230
      %s232 = sphi 0, %s230
      %s233 = sphi 0, %s232
      %s247 = sphi 0, %s233
      %s251 = sphi 0, %s251
      %s253 = sphi 0, %s251
      %s254 = sphi 0, %s253
      %s268 = sphi 0, %s254
      %s272 = sphi 0, %s272
      %s274 = sphi 0, %s272
      %s275 = sphi 0, %s274
      %s289 = sphi 0, %s275
      %s293 = sphi 0, %s293
      %s295 = sphi 0, %s293
      %s296 = sphi 0, %s295
      %s310 = sphi 0, %s296
      %s314 = sphi 0, %s314
      %s316 = sphi 0, %s314
      %s317 = sphi 0, %s316
      %s331 = sphi 0, %s317
      %s335 = sphi 0, %s335
      %s337 = sphi 0, %s335
      %s338 = sphi 0, %s337
      %s352 = sphi 0, %s338
      %s356 = sphi 0, %s356
      %s358 = sphi 0, %s356
      %s359 = sphi 0, %s358
      %s373 = sphi 0, %s359
      %s377 = sphi 0, %s377
      %s379 = sphi 0, %s377
      %s380 = sphi 0, %s379
      %s394 = sphi 0, %s380
      %s398 = sphi 0, %s398
      %s400 = sphi 0, %s398
      %s401 = sphi 0, %s400
      %s415 = sphi 0, %s401
      %s421 = sphi 0, %s423
      %s424 = sphi 0, %s421
      %s425 = sphi 0, %s424
      %s441 = sphi 0, %s425
    $region4: #{tpu_custom_call.1} parent=1 // loop_header_branch
      %31 = sbr.rel (%p29) target = $region8
    $region5: #{tpu_custom_call.1} parent=1 // loop_body
      %s33 = ssub.s32 %s28, 1
      %s34 = ssub.s32 %s28, 2
      %s35 = sadd.s32 %s28, 1
      %s36 = ssub.s32 %s28, %s35
      %p37 = scmp.eq.s32.totalorder %s36, 0
      %s39 = sadd.s32 %s38, 1
      %s40 = scalar_select %p37, %s38, %s39
      %p43 = pneg %p37
      %p44 = scmp.eq.s32.totalorder %s28, 1
      %p45 = por %p43, %p44
      %p46 = scmp.ne.s32.totalorder %s38, %s41
      %p47 = scmp.eq.s32.totalorder %s28, 0
      %p48 = por %p46, %p47
      %p49 = scmp.ne.s32.totalorder %s38, %s41
      %p50 = scmp.eq.s32.totalorder %s33, 1
      %p51 = por %p49, %p50
      %p52 = scmp.ne.s32.totalorder %s41, %s42
      %p53 = scmp.eq.s32.totalorder %s33, 0
      %p54 = por %p52, %p53
      %p55 = scmp.ne.s32.totalorder %s41, %s42
      %p56 = scmp.eq.s32.totalorder %s34, 1
      %p57 = por %p55, %p56
      %p59 = scmp.ne.s32.totalorder %s42, %s58
      %p60 = scmp.eq.s32.totalorder %s34, 0
      %p61 = por %p59, %p60
      %s63 = sadd.s32 %s62, 1
      %p66 = scmp.eq.s32.totalorder %s28, 1
      %p67 = scmp.ne.s32.totalorder %s62, %s64
      %p68 = scmp.eq.s32.totalorder %s28, 0
      %p69 = por %p67, %p68
      %p70 = scmp.ne.s32.totalorder %s62, %s64
      %p71 = scmp.eq.s32.totalorder %s33, 1
      %p72 = por %p70, %p71
      %p73 = scmp.ne.s32.totalorder %s64, %s65
      %p74 = scmp.eq.s32.totalorder %s33, 0
      %p75 = por %p73, %p74
      %p76 = scmp.ne.s32.totalorder %s64, %s65
      %p77 = scmp.eq.s32.totalorder %s34, 1
      %p78 = por %p76, %p77
      %p80 = scmp.ne.s32.totalorder %s65, %s79
      %p81 = scmp.eq.s32.totalorder %s34, 0
      %p82 = por %p80, %p81
      %s84 = sadd.s32 %s83, 1
      %p87 = scmp.eq.s32.totalorder %s28, 1
      %p88 = scmp.ne.s32.totalorder %s83, %s85
      %p89 = scmp.eq.s32.totalorder %s28, 0
      %p90 = por %p88, %p89
      %p91 = scmp.ne.s32.totalorder %s83, %s85
      %p92 = scmp.eq.s32.totalorder %s33, 1
      %p93 = por %p91, %p92
      %p94 = scmp.ne.s32.totalorder %s85, %s86
      %p95 = scmp.eq.s32.totalorder %s33, 0
      %p96 = por %p94, %p95
      %p97 = scmp.ne.s32.totalorder %s85, %s86
      %p98 = scmp.eq.s32.totalorder %s34, 1
      %p99 = por %p97, %p98
      %p101 = scmp.ne.s32.totalorder %s86, %s100
      %p102 = scmp.eq.s32.totalorder %s34, 0
      %p103 = por %p101, %p102
      %s105 = sadd.s32 %s104, 1
      %p108 = scmp.eq.s32.totalorder %s28, 1
      %p109 = scmp.ne.s32.totalorder %s104, %s106
      %p110 = scmp.eq.s32.totalorder %s28, 0
      %p111 = por %p109, %p110
      %p112 = scmp.ne.s32.totalorder %s104, %s106
      %p113 = scmp.eq.s32.totalorder %s33, 1
      %p114 = por %p112, %p113
      %p115 = scmp.ne.s32.totalorder %s106, %s107
      %p116 = scmp.eq.s32.totalorder %s33, 0
      %p117 = por %p115, %p116
      %p118 = scmp.ne.s32.totalorder %s106, %s107
      %p119 = scmp.eq.s32.totalorder %s34, 1
      %p120 = por %p118, %p119
      %p122 = scmp.ne.s32.totalorder %s107, %s121
      %p123 = scmp.eq.s32.totalorder %s34, 0
      %p124 = por %p122, %p123
      %s126 = sadd.s32 %s125, 1
      %p129 = scmp.eq.s32.totalorder %s28, 1
      %p130 = scmp.ne.s32.totalorder %s125, %s127
      %p131 = scmp.eq.s32.totalorder %s28, 0
      %p132 = por %p130, %p131
      %p133 = scmp.ne.s32.totalorder %s125, %s127
      %p134 = scmp.eq.s32.totalorder %s33, 1
      %p135 = por %p133, %p134
      %p136 = scmp.ne.s32.totalorder %s127, %s128
      %p137 = scmp.eq.s32.totalorder %s33, 0
      %p138 = por %p136, %p137
      %p139 = scmp.ne.s32.totalorder %s127, %s128
      %p140 = scmp.eq.s32.totalorder %s34, 1
      %p141 = por %p139, %p140
      %p143 = scmp.ne.s32.totalorder %s128, %s142
      %p144 = scmp.eq.s32.totalorder %s34, 0
      %p145 = por %p143, %p144
      %s147 = sadd.s32 %s146, 1
      %p150 = scmp.eq.s32.totalorder %s28, 1
      %p151 = scmp.ne.s32.totalorder %s146, %s148
      %p152 = scmp.eq.s32.totalorder %s28, 0
      %p153 = por %p151, %p152
      %p154 = scmp.ne.s32.totalorder %s146, %s148
      %p155 = scmp.eq.s32.totalorder %s33, 1
      %p156 = por %p154, %p155
      %p157 = scmp.ne.s32.totalorder %s148, %s149
      %p158 = scmp.eq.s32.totalorder %s33, 0
      %p159 = por %p157, %p158
      %p160 = scmp.ne.s32.totalorder %s148, %s149
      %p161 = scmp.eq.s32.totalorder %s34, 1
      %p162 = por %p160, %p161
      %p164 = scmp.ne.s32.totalorder %s149, %s163
      %p165 = scmp.eq.s32.totalorder %s34, 0
      %p166 = por %p164, %p165
      %s168 = sadd.s32 %s167, 1
      %p171 = scmp.eq.s32.totalorder %s28, 1
      %p172 = scmp.ne.s32.totalorder %s167, %s169
      %p173 = scmp.eq.s32.totalorder %s28, 0
      %p174 = por %p172, %p173
      %p175 = scmp.ne.s32.totalorder %s167, %s169
      %p176 = scmp.eq.s32.totalorder %s33, 1
      %p177 = por %p175, %p176
      %p178 = scmp.ne.s32.totalorder %s169, %s170
      %p179 = scmp.eq.s32.totalorder %s33, 0
      %p180 = por %p178, %p179
      %p181 = scmp.ne.s32.totalorder %s169, %s170
      %p182 = scmp.eq.s32.totalorder %s34, 1
      %p183 = por %p181, %p182
      %p185 = scmp.ne.s32.totalorder %s170, %s184
      %p186 = scmp.eq.s32.totalorder %s34, 0
      %p187 = por %p185, %p186
      %s189 = sadd.s32 %s188, 1
      %p192 = scmp.eq.s32.totalorder %s28, 1
      %p193 = scmp.ne.s32.totalorder %s188, %s190
      %p194 = scmp.eq.s32.totalorder %s28, 0
      %p195 = por %p193, %p194
      %p196 = scmp.ne.s32.totalorder %s188, %s190
      %p197 = scmp.eq.s32.totalorder %s33, 1
      %p198 = por %p196, %p197
      %p199 = scmp.ne.s32.totalorder %s190, %s191
      %p200 = scmp.eq.s32.totalorder %s33, 0
      %p201 = por %p199, %p200
      %p202 = scmp.ne.s32.totalorder %s190, %s191
      %p203 = scmp.eq.s32.totalorder %s34, 1
      %p204 = por %p202, %p203
      %p206 = scmp.ne.s32.totalorder %s191, %s205
      %p207 = scmp.eq.s32.totalorder %s34, 0
      %p208 = por %p206, %p207
      %s210 = sadd.s32 %s209, 1
      %p213 = scmp.eq.s32.totalorder %s28, 1
      %p214 = scmp.ne.s32.totalorder %s209, %s211
      %p215 = scmp.eq.s32.totalorder %s28, 0
      %p216 = por %p214, %p215
      %p217 = scmp.ne.s32.totalorder %s209, %s211
      %p218 = scmp.eq.s32.totalorder %s33, 1
      %p219 = por %p217, %p218
      %p220 = scmp.ne.s32.totalorder %s211, %s212
      %p221 = scmp.eq.s32.totalorder %s33, 0
      %p222 = por %p220, %p221
      %p223 = scmp.ne.s32.totalorder %s211, %s212
      %p224 = scmp.eq.s32.totalorder %s34, 1
      %p225 = por %p223, %p224
      %p227 = scmp.ne.s32.totalorder %s212, %s226
      %p228 = scmp.eq.s32.totalorder %s34, 0
      %p229 = por %p227, %p228
      %s231 = sadd.s32 %s230, 1
      %p234 = scmp.eq.s32.totalorder %s28, 1
      %p235 = scmp.ne.s32.totalorder %s230, %s232
      %p236 = scmp.eq.s32.totalorder %s28, 0
      %p237 = por %p235, %p236
      %p238 = scmp.ne.s32.totalorder %s230, %s232
      %p239 = scmp.eq.s32.totalorder %s33, 1
      %p240 = por %p238, %p239
      %p241 = scmp.ne.s32.totalorder %s232, %s233
      %p242 = scmp.eq.s32.totalorder %s33, 0
      %p243 = por %p241, %p242
      %p244 = scmp.ne.s32.totalorder %s232, %s233
      %p245 = scmp.eq.s32.totalorder %s34, 1
      %p246 = por %p244, %p245
      %p248 = scmp.ne.s32.totalorder %s233, %s247
      %p249 = scmp.eq.s32.totalorder %s34, 0
      %p250 = por %p248, %p249
      %s252 = sadd.s32 %s251, 1
      %p255 = scmp.eq.s32.totalorder %s28, 1
      %p256 = scmp.ne.s32.totalorder %s251, %s253
      %p257 = scmp.eq.s32.totalorder %s28, 0
      %p258 = por %p256, %p257
      %p259 = scmp.ne.s32.totalorder %s251, %s253
      %p260 = scmp.eq.s32.totalorder %s33, 1
      %p261 = por %p259, %p260
      %p262 = scmp.ne.s32.totalorder %s253, %s254
      %p263 = scmp.eq.s32.totalorder %s33, 0
      %p264 = por %p262, %p263
      %p265 = scmp.ne.s32.totalorder %s253, %s254
      %p266 = scmp.eq.s32.totalorder %s34, 1
      %p267 = por %p265, %p266
      %p269 = scmp.ne.s32.totalorder %s254, %s268
      %p270 = scmp.eq.s32.totalorder %s34, 0
      %p271 = por %p269, %p270
      %s273 = sadd.s32 %s272, 1
      %p276 = scmp.eq.s32.totalorder %s28, 1
      %p277 = scmp.ne.s32.totalorder %s272, %s274
      %p278 = scmp.eq.s32.totalorder %s28, 0
      %p279 = por %p277, %p278
      %p280 = scmp.ne.s32.totalorder %s272, %s274
      %p281 = scmp.eq.s32.totalorder %s33, 1
      %p282 = por %p280, %p281
      %p283 = scmp.ne.s32.totalorder %s274, %s275
      %p284 = scmp.eq.s32.totalorder %s33, 0
      %p285 = por %p283, %p284
      %p286 = scmp.ne.s32.totalorder %s274, %s275
      %p287 = scmp.eq.s32.totalorder %s34, 1
      %p288 = por %p286, %p287
      %p290 = scmp.ne.s32.totalorder %s275, %s289
      %p291 = scmp.eq.s32.totalorder %s34, 0
      %p292 = por %p290, %p291
      %s294 = sadd.s32 %s293, 1
      %p297 = scmp.eq.s32.totalorder %s28, 1
      %p298 = scmp.ne.s32.totalorder %s293, %s295
      %p299 = scmp.eq.s32.totalorder %s28, 0
      %p300 = por %p298, %p299
      %p301 = scmp.ne.s32.totalorder %s293, %s295
      %p302 = scmp.eq.s32.totalorder %s33, 1
      %p303 = por %p301, %p302
      %p304 = scmp.ne.s32.totalorder %s295, %s296
      %p305 = scmp.eq.s32.totalorder %s33, 0
      %p306 = por %p304, %p305
      %p307 = scmp.ne.s32.totalorder %s295, %s296
      %p308 = scmp.eq.s32.totalorder %s34, 1
      %p309 = por %p307, %p308
      %p311 = scmp.ne.s32.totalorder %s296, %s310
      %p312 = scmp.eq.s32.totalorder %s34, 0
      %p313 = por %p311, %p312
      %s315 = sadd.s32 %s314, 1
      %p318 = scmp.eq.s32.totalorder %s28, 1
      %p319 = scmp.ne.s32.totalorder %s314, %s316
      %p320 = scmp.eq.s32.totalorder %s28, 0
      %p321 = por %p319, %p320
      %p322 = scmp.ne.s32.totalorder %s314, %s316
      %p323 = scmp.eq.s32.totalorder %s33, 1
      %p324 = por %p322, %p323
      %p325 = scmp.ne.s32.totalorder %s316, %s317
      %p326 = scmp.eq.s32.totalorder %s33, 0
      %p327 = por %p325, %p326
      %p328 = scmp.ne.s32.totalorder %s316, %s317
      %p329 = scmp.eq.s32.totalorder %s34, 1
      %p330 = por %p328, %p329
      %p332 = scmp.ne.s32.totalorder %s317, %s331
      %p333 = scmp.eq.s32.totalorder %s34, 0
      %p334 = por %p332, %p333
      %s336 = sadd.s32 %s335, 1
      %p339 = scmp.eq.s32.totalorder %s28, 1
      %p340 = scmp.ne.s32.totalorder %s335, %s337
      %p341 = scmp.eq.s32.totalorder %s28, 0
      %p342 = por %p340, %p341
      %p343 = scmp.ne.s32.totalorder %s335, %s337
      %p344 = scmp.eq.s32.totalorder %s33, 1
      %p345 = por %p343, %p344
      %p346 = scmp.ne.s32.totalorder %s337, %s338
      %p347 = scmp.eq.s32.totalorder %s33, 0
      %p348 = por %p346, %p347
      %p349 = scmp.ne.s32.totalorder %s337, %s338
      %p350 = scmp.eq.s32.totalorder %s34, 1
      %p351 = por %p349, %p350
      %p353 = scmp.ne.s32.totalorder %s338, %s352
      %p354 = scmp.eq.s32.totalorder %s34, 0
      %p355 = por %p353, %p354
      %s357 = sadd.s32 %s356, 1
      %p360 = scmp.eq.s32.totalorder %s28, 1
      %p361 = scmp.ne.s32.totalorder %s356, %s358
      %p362 = scmp.eq.s32.totalorder %s28, 0
      %p363 = por %p361, %p362
      %p364 = scmp.ne.s32.totalorder %s356, %s358
      %p365 = scmp.eq.s32.totalorder %s33, 1
      %p366 = por %p364, %p365
      %p367 = scmp.ne.s32.totalorder %s358, %s359
      %p368 = scmp.eq.s32.totalorder %s33, 0
      %p369 = por %p367, %p368
      %p370 = scmp.ne.s32.totalorder %s358, %s359
      %p371 = scmp.eq.s32.totalorder %s34, 1
      %p372 = por %p370, %p371
      %p374 = scmp.ne.s32.totalorder %s359, %s373
      %p375 = scmp.eq.s32.totalorder %s34, 0
      %p376 = por %p374, %p375
      %s378 = sadd.s32 %s377, 1
      %p381 = scmp.eq.s32.totalorder %s28, 1
      %p382 = scmp.ne.s32.totalorder %s377, %s379
      %p383 = scmp.eq.s32.totalorder %s28, 0
      %p384 = por %p382, %p383
      %p385 = scmp.ne.s32.totalorder %s377, %s379
      %p386 = scmp.eq.s32.totalorder %s33, 1
      %p387 = por %p385, %p386
      %p388 = scmp.ne.s32.totalorder %s379, %s380
      %p389 = scmp.eq.s32.totalorder %s33, 0
      %p390 = por %p388, %p389
      %p391 = scmp.ne.s32.totalorder %s379, %s380
      %p392 = scmp.eq.s32.totalorder %s34, 1
      %p393 = por %p391, %p392
      %p395 = scmp.ne.s32.totalorder %s380, %s394
      %p396 = scmp.eq.s32.totalorder %s34, 0
      %p397 = por %p395, %p396
      %s399 = sadd.s32 %s398, 1
      %p402 = scmp.eq.s32.totalorder %s28, 1
      %p403 = scmp.ne.s32.totalorder %s398, %s400
      %p404 = scmp.eq.s32.totalorder %s28, 0
      %p405 = por %p403, %p404
      %p406 = scmp.ne.s32.totalorder %s398, %s400
      %p407 = scmp.eq.s32.totalorder %s33, 1
      %p408 = por %p406, %p407
      %p409 = scmp.ne.s32.totalorder %s400, %s401
      %p410 = scmp.eq.s32.totalorder %s33, 0
      %p411 = por %p409, %p410
      %p412 = scmp.ne.s32.totalorder %s400, %s401
      %p413 = scmp.eq.s32.totalorder %s34, 1
      %p414 = por %p412, %p413
      %p416 = scmp.ne.s32.totalorder %s401, %s415
      %p417 = scmp.eq.s32.totalorder %s34, 0
      %p418 = por %p416, %p417
      %s419 = ssub.s32 %s28, %s35
      %p420 = scmp.eq.s32.totalorder %s419, 0
      %s422 = sadd.s32 %s421, 1
      %s423 = scalar_select %p420, %s421, %s422
      %p426 = pneg %p420
      %p427 = scmp.eq.s32.totalorder %s28, 1
      %p428 = por %p426, %p427
      %p429 = scmp.ne.s32.totalorder %s421, %s424
      %p430 = scmp.eq.s32.totalorder %s28, 0
      %p431 = por %p429, %p430
      %p432 = scmp.ne.s32.totalorder %s421, %s424
      %p433 = scmp.eq.s32.totalorder %s33, 1
      %p434 = por %p432, %p433
      %p435 = scmp.ne.s32.totalorder %s424, %s425
      %p436 = scmp.eq.s32.totalorder %s33, 0
      %p437 = por %p435, %p436
      %p438 = scmp.ne.s32.totalorder %s424, %s425
      %p439 = scmp.eq.s32.totalorder %s34, 1
      %p440 = por %p438, %p439
      %p442 = scmp.ne.s32.totalorder %s425, %s441
      %p443 = scmp.eq.s32.totalorder %s34, 0
      %p444 = por %p442, %p443
      %p445 = scmp.le.s32.totalorder 1, %s28
      %p446 = scmp.lt.s32.totalorder %s28, 3
      %p447 = pnand %p445, %p446
      %p448 = pneg %p447
      // Predicated region
      $region9: #{tpu_custom_call.1} parent=5 // pred_check
        _
      $region10: #{tpu_custom_call.1} parent=5 // pred_check_branch
        %450 = sbr.rel (%p447) target = $region12
      $region11: #{tpu_custom_call.1} parent=5 // pred_region
        %s451 = ssub.s32 %s28, 1
        // Predicated region
        $region13: #{tpu_custom_call.1} parent=11 // pred_check
          %p452 = pneg %p75
        $region14: #{tpu_custom_call.1} parent=11 // pred_check_branch
          %454 = sbr.rel (%p452) target = $region16
        $region15: #{tpu_custom_call.1} parent=11 // pred_region
          _
        $region16: #{tpu_custom_call.1} parent=11 // pred_fallthru
          _
        // Predicated region
        $region17: #{tpu_custom_call.1} parent=11 // pred_check
          %p455 = pneg %p96
        $region18: #{tpu_custom_call.1} parent=11 // pred_check_branch
          %457 = sbr.rel (%p455) target = $region20
        $region19: #{tpu_custom_call.1} parent=11 // pred_region
          _
        $region20: #{tpu_custom_call.1} parent=11 // pred_fallthru
          _
        // Predicated region
        $region21: #{tpu_custom_call.1} parent=11 // pred_check
          %p458 = pneg %p117
        $region22: #{tpu_custom_call.1} parent=11 // pred_check_branch
          %460 = sbr.rel (%p458) target = $region24
        $region23: #{tpu_custom_call.1} parent=11 // pred_region
          _
        $region24: #{tpu_custom_call.1} parent=11 // pred_fallthru
          _
        // Predicated region
        $region25: #{tpu_custom_call.1} parent=11 // pred_check
          %p461 = pneg %p138
        $region26: #{tpu_custom_call.1} parent=11 // pred_check_branch
          %463 = sbr.rel (%p461) target = $region28
        $region27: #{tpu_custom_call.1} parent=11 // pred_region
          _
        $region28: #{tpu_custom_call.1} parent=11 // pred_fallthru
          _
        // Predicated region
        $region29: #{tpu_custom_call.1} parent=11 // pred_check
          %p464 = pneg %p159
        $region30: #{tpu_custom_call.1} parent=11 // pred_check_branch
          %466 = sbr.rel (%p464) target = $region32
        $region31: #{tpu_custom_call.1} parent=11 // pred_region
          %s468 = ssub.s32 4096, 4096
          %469 = vsyncadd [#allocation4], %s468
          %s470 = sshll.u32 [#allocation3], 4
          %s471 = int_to_ptr.vmem [resolvable:$true] %s470
          %476 = dma.hbm_to_vmem [thread:$0]  %s5, 4096, %s471, [#allocation4], 128, 128, 8
        $region32: #{tpu_custom_call.1} parent=11 // pred_fallthru
          _
        // Predicated region
        $region33: #{tpu_custom_call.1} parent=11 // pred_check
          %p477 = pneg %p180
        $region34: #{tpu_custom_call.1} parent=11 // pred_check_branch
          %479 = sbr.rel (%p477) target = $region36
        $region35: #{tpu_custom_call.1} parent=11 // pred_region
          _
        $region36: #{tpu_custom_call.1} parent=11 // pred_fallthru
          _
        // Predicated region
        $region37: #{tpu_custom_call.1} parent=11 // pred_check
          %p480 = pneg %p201
        $region38: #{tpu_custom_call.1} parent=11 // pred_check_branch
          %482 = sbr.rel (%p480) target = $region40
        $region39: #{tpu_custom_call.1} parent=11 // pred_region
          %s484 = ssub.s32 4096, 4096
          %485 = vsyncadd [#allocation6], %s484
          %s486 = sshll.u32 [#allocation5], 4
          %s487 = int_to_ptr.vmem [resolvable:$true] %s486
          %492 = dma.hbm_to_vmem [thread:$0]  %s7, 4096, %s487, [#allocation6], 128, 128, 8
        $region40: #{tpu_custom_call.1} parent=11 // pred_fallthru
          _
        // Predicated region
        $region41: #{tpu_custom_call.1} parent=11 // pred_check
          %p493 = pneg %p222
        $region42: #{tpu_custom_call.1} parent=11 // pred_check_branch
          %495 = sbr.rel (%p493) target = $region44
        $region43: #{tpu_custom_call.1} parent=11 // pred_region
          _
        $region44: #{tpu_custom_call.1} parent=11 // pred_fallthru
          _
        // Predicated region
        $region45: #{tpu_custom_call.1} parent=11 // pred_check
          %p496 = pneg %p243
        $region46: #{tpu_custom_call.1} parent=11 // pred_check_branch
          %498 = sbr.rel (%p496) target = $region48
        $region47: #{tpu_custom_call.1} parent=11 // pred_region
          _
        $region48: #{tpu_custom_call.1} parent=11 // pred_fallthru
          _
        // Predicated region
        $region49: #{tpu_custom_call.1} parent=11 // pred_check
          %p499 = pneg %p264
        $region50: #{tpu_custom_call.1} parent=11 // pred_check_branch
          %501 = sbr.rel (%p499) target = $region52
        $region51: #{tpu_custom_call.1} parent=11 // pred_region
          _
        $region52: #{tpu_custom_call.1} parent=11 // pred_fallthru
          _
        // Predicated region
        $region53: #{tpu_custom_call.1} parent=11 // pred_check
          %p502 = pneg %p285
        $region54: #{tpu_custom_call.1} parent=11 // pred_check_branch
          %504 = sbr.rel (%p502) target = $region56
        $region55: #{tpu_custom_call.1} parent=11 // pred_region
          %s506 = ssub.s32 4096, 4096
          %507 = vsyncadd [#allocation6], %s506
          %s508 = sshll.u32 [#allocation7], 4
          %s509 = int_to_ptr.vmem [resolvable:$true] %s508
          %514 = dma.hbm_to_vmem [thread:$0]  %s11, 4096, %s509, [#allocation6], 128, 128, 8
        $region56: #{tpu_custom_call.1} parent=11 // pred_fallthru
          _
        // Predicated region
        $region57: #{tpu_custom_call.1} parent=11 // pred_check
          %p515 = pneg %p306
        $region58: #{tpu_custom_call.1} parent=11 // pred_check_branch
          %517 = sbr.rel (%p515) target = $region60
        $region59: #{tpu_custom_call.1} parent=11 // pred_region
          _
        $region60: #{tpu_custom_call.1} parent=11 // pred_fallthru
          _
        // Predicated region
        $region61: #{tpu_custom_call.1} parent=11 // pred_check
          %p518 = pneg %p327
        $region62: #{tpu_custom_call.1} parent=11 // pred_check_branch
          %520 = sbr.rel (%p518) target = $region64
        $region63: #{tpu_custom_call.1} parent=11 // pred_region
          _
        $region64: #{tpu_custom_call.1} parent=11 // pred_fallthru
          _
        // Predicated region
        $region65: #{tpu_custom_call.1} parent=11 // pred_check
          %p521 = pneg %p348
        $region66: #{tpu_custom_call.1} parent=11 // pred_check_branch
          %523 = sbr.rel (%p521) target = $region68
        $region67: #{tpu_custom_call.1} parent=11 // pred_region
          _
        $region68: #{tpu_custom_call.1} parent=11 // pred_fallthru
          _
        // Predicated region
        $region69: #{tpu_custom_call.1} parent=11 // pred_check
          %p524 = pneg %p369
        $region70: #{tpu_custom_call.1} parent=11 // pred_check_branch
          %526 = sbr.rel (%p524) target = $region72
        $region71: #{tpu_custom_call.1} parent=11 // pred_region
          _
        $region72: #{tpu_custom_call.1} parent=11 // pred_fallthru
          _
        // Predicated region
        $region73: #{tpu_custom_call.1} parent=11 // pred_check
          %p527 = pneg %p390
        $region74: #{tpu_custom_call.1} parent=11 // pred_check_branch
          %529 = sbr.rel (%p527) target = $region76
        $region75: #{tpu_custom_call.1} parent=11 // pred_region
          _
        $region76: #{tpu_custom_call.1} parent=11 // pred_fallthru
          _
        // Predicated region
        $region77: #{tpu_custom_call.1} parent=11 // pred_check
          %p530 = pneg %p411
        $region78: #{tpu_custom_call.1} parent=11 // pred_check_branch
          %532 = sbr.rel (%p530) target = $region80
        $region79: #{tpu_custom_call.1} parent=11 // pred_region
          _
        $region80: #{tpu_custom_call.1} parent=11 // pred_fallthru
          _
      $region12: #{tpu_custom_call.1} parent=5 // pred_fallthru
        _
      %p533 = scmp.lt.s32.totalorder %s28, 2
      // Predicated region
      $region81: #{tpu_custom_call.1} parent=5 // pred_check
        %p534 = pneg %p533
      $region82: #{tpu_custom_call.1} parent=5 // pred_check_branch
        %536 = sbr.rel (%p534) target = $region84
      $region83: #{tpu_custom_call.1} parent=5 // pred_region
        // Predicated region
        $region85: #{tpu_custom_call.1} parent=83 // pred_check
          %p537 = pneg %p48
        $region86: #{tpu_custom_call.1} parent=83 // pred_check_branch
          %539 = sbr.rel (%p537) target = $region88
        $region87: #{tpu_custom_call.1} parent=83 // pred_region
          %s540 = smul.u32 16, %s28
          %p541 = scmp.lt.s32.totalorder %s540, 31
          %s542 = scalar_select %p541, %s540, 31
          %s543 = smul.addr %s542, 8
          %s544 = scalar_lea.vmem %s0, %s543
          %s545 = smul.u32 16, %s28
        $region88: #{tpu_custom_call.1} parent=83 // pred_fallthru
          _
      $region84: #{tpu_custom_call.1} parent=5 // pred_fallthru
        _
      %p546 = scmp.le.s32.totalorder 1, %s28
      %p547 = scmp.lt.s32.totalorder %s28, 3
      %p548 = pnand %p546, %p547
      %p549 = pneg %p548
      // Predicated region
      $region89: #{tpu_custom_call.1} parent=5 // pred_check
        _
      $region90: #{tpu_custom_call.1} parent=5 // pred_check_branch
        %551 = sbr.rel (%p548) target = $region92
      $region91: #{tpu_custom_call.1} parent=5 // pred_region
        %s552 = ssub.s32 %s28, 1
        // Predicated region
        $region93: #{tpu_custom_call.1} parent=91 // pred_check
          %p553 = pneg %p159
        $region94: #{tpu_custom_call.1} parent=91 // pred_check_branch
          %555 = sbr.rel (%p553) target = $region96
        $region95: #{tpu_custom_call.1} parent=91 // pred_region
          %556 = dma.done [#allocation4], 4096
        $region96: #{tpu_custom_call.1} parent=91 // pred_fallthru
          _
        // Predicated region
        $region97: #{tpu_custom_call.1} parent=91 // pred_check
          %p557 = pneg %p201
        $region98: #{tpu_custom_call.1} parent=91 // pred_check_branch
          %559 = sbr.rel (%p557) target = $region100
        $region99: #{tpu_custom_call.1} parent=91 // pred_region
          %560 = dma.done [#allocation6], 4096
        $region100: #{tpu_custom_call.1} parent=91 // pred_fallthru
          _
        // Predicated region
        $region101: #{tpu_custom_call.1} parent=91 // pred_check
          %p561 = pneg %p285
        $region102: #{tpu_custom_call.1} parent=91 // pred_check_branch
          %563 = sbr.rel (%p561) target = $region104
        $region103: #{tpu_custom_call.1} parent=91 // pred_region
          %564 = dma.done [#allocation6], 4096
        $region104: #{tpu_custom_call.1} parent=91 // pred_fallthru
          _
        %s565 = smul.u32 16, %s33
        %p566 = scmp.lt.s32.totalorder %s565, 31
        %s567 = scalar_select %p566, %s565, 31
        %s568 = smul.addr %s567, 8
        %s569 = scalar_lea.vmem %s0, %s568
        %p570 = pneg %p54
        %p571 = pneg %p51
        %p572 = pneg %p75
        %p573 = pneg %p72
        %p574 = pneg %p96
        %p575 = pneg %p93
        %p576 = pneg %p117
        %p577 = pneg %p114
        %p578 = pneg %p138
        %p579 = pneg %p135
        %p580 = pneg %p159
        %p581 = pneg %p156
        %p582 = pneg %p180
        %p583 = pneg %p177
        %p584 = pneg %p201
        %p585 = pneg %p198
        %p586 = pneg %p222
        %p587 = pneg %p219
        %p588 = pneg %p243
        %p589 = pneg %p240
        %p590 = pneg %p264
        %p591 = pneg %p261
        %p592 = pneg %p285
        %p593 = pneg %p282
        %p594 = pneg %p306
        %p595 = pneg %p303
        %p596 = pneg %p327
        %p597 = pneg %p324
        %p598 = pneg %p348
        %p599 = pneg %p345
        %p600 = pneg %p369
        %p601 = pneg %p366
        %p602 = pneg %p390
        %p603 = pneg %p387
        %p604 = pneg %p411
        %p605 = pneg %p408
        %p606 = pneg %p437
        %p607 = pneg %p434
        %s608 = smul.u32 16, %s33
        %p609 = scmp.lt.s32.totalorder %s608, 31
        %s610 = scalar_select %p609, %s608, 31
        %s611 = smul.addr %s610, 8
        %s612 = scalar_lea.vmem %s18, %s611
        %s613 = smul.u32 16, %s33
        %p614 = scmp.lt.s32.totalorder %s613, 31
        %s615 = scalar_select %p614, %s613, 31
        %s616 = smul.addr %s615, 8
        %s617 = scalar_lea.vmem %s0, %s616
        %s618 = smul.u32 16, %s33
        %s619 = smul.u32 16, %s33
        %p620 = scmp.lt.s32.totalorder %s619, 31
        %s621 = scalar_select %p620, %s619, 31
        %s622 = smul.addr %s621, 8
        %s623 = scalar_lea.vmem %s18, %s622
        %s624 = smul.u32 16, %s33
        %v626 = vld [vmem:[%s617] sm:$0xff]
        %v627 = vld [vmem:[%s617 + $0x8] sm:$0xff]
        %v628 = vld [vmem:[%s617 + $0x10] sm:$0xff]
        %v629 = vld [vmem:[%s617 + $0x18] sm:$0xff]
        %v630 = vld [vmem:[%s617 + $0x20] sm:$0xff]
        %v631 = vld [vmem:[%s617 + $0x28] sm:$0xff]
        %v632 = vld [vmem:[%s617 + $0x30] sm:$0xff]
        %v633 = vld [vmem:[%s617 + $0x38] sm:$0xff]
        %v634 = vld [vmem:[%s617 + $0x40] sm:$0xff]
        %v635 = vld [vmem:[%s617 + $0x48] sm:$0xff]
        %v636 = vld [vmem:[%s617 + $0x50] sm:$0xff]
        %v637 = vld [vmem:[%s617 + $0x58] sm:$0xff]
        %v638 = vld [vmem:[%s617 + $0x60] sm:$0xff]
        %v639 = vld [vmem:[%s617 + $0x68] sm:$0xff]
        %v640 = vld [vmem:[%s617 + $0x70] sm:$0xff]
        %v641 = vld [vmem:[%s617 + $0x78] sm:$0xff]
        %v642 = vpack.c.bf16 %v627, %v626
        %v643 = vpack.c.bf16 %v629, %v628
        %v644 = vpack.c.bf16 %v631, %v630
        %v645 = vpack.c.bf16 %v633, %v632
        %v646 = vpack.c.bf16 %v635, %v634
        %v647 = vpack.c.bf16 %v637, %v636
        %v648 = vpack.c.bf16 %v639, %v638
        %v649 = vpack.c.bf16 %v641, %v640
        %v650 = vld [vmem:[%s1] sm:$0x77]
        %v651 = vld [vmem:[%s2] sm:$0x3]
        %v653 = vlaneseq
        %v654 = vshrl.u32 %v653, 7
        %v655 = vsub.s32 0, %v654
        %v656 = vrot.slane %v651, %v655
        %v657 = vlaneseq
        %v658 = vshrl.u32 %v657, 7
        %v659 = vsub.s32 1, %v658
        %v660 = vrot.slane %v651, %v659
        %v664 = vunpack.c.l.b16 %v650
        %v665 = vunpack.c.h.b16 %v650
        %v666 = vpack.c.b16 %v664, %v664
        %v667 = vpack.c.b16 %v665, %v665
        %vm668 = vcmask 48128
        %v670 = vsel %vm668, %v642, 0
        %v673 = vsel %vm668, %v643, 0
        %v676 = vsel %vm668, %v644, 0
        %v679 = vsel %vm668, %v645, 0
        %v682 = vsel %vm668, %v646, 0
        %v685 = vsel %vm668, %v647, 0
        %v688 = vsel %vm668, %v648, 0
        %v691 = vsel %vm668, %v649, 0
        %vm693 = vcmask 1042432
        %v695 = vsel %vm693, %v666, 0
        %v698 = vsel %vm693, %v667, 0
        %700 = vmatprep.subr.bf16.mxu0 %v698
        %701 = vmatpush1.bf16.msra.mxu0 %v695
        %702 = vmatprep.subr.bf16.mxu0 0
        %703 = vmatpush1.bf16.msra.mxu0 0
        %704 = vmatprep.subr.bf16.mxu0 0
        %705 = vmatpush1.bf16.msra.mxu0 0
        %706 = vmatprep.subr.bf16.mxu0 0
        %707 = vmatpush1.bf16.msra.mxu0 0
        %708 = vmatprep.subr.bf16.mxu0 0
        %709 = vmatpush1.bf16.msra.mxu0 0
        %710 = vmatprep.subr.bf16.mxu0 0
        %711 = vmatpush1.bf16.msra.mxu0 0
        %712 = vmatprep.subr.bf16.mxu0 0
        %713 = vmatpush1.bf16.msra.mxu0 0
        %714 = vmatprep.subr.bf16.mxu0 0
        %715 = vmatpush1.bf16.msra.mxu0 0
        %716 = vmatprep.subr.bf16.mxu0 0
        %717 = vmatpush1.bf16.msra.mxu0 0
        %718 = vmatprep.subr.bf16.mxu0 0
        %719 = vmatpush1.bf16.msra.mxu0 0
        %720 = vmatprep.subr.bf16.mxu0 0
        %721 = vmatpush1.bf16.msra.mxu0 0
        %722 = vmatprep.subr.bf16.mxu0 0
        %723 = vmatpush1.bf16.msra.mxu0 0
        %724 = vmatprep.subr.bf16.mxu0 0
        %725 = vmatpush1.bf16.msra.mxu0 0
        %726 = vmatprep.subr.bf16.mxu0 0
        %727 = vmatpush1.bf16.msra.mxu0 0
        %728 = vmatprep.subr.bf16.mxu0 0
        %729 = vmatpush1.bf16.msra.mxu0 0
        %730 = vmatprep.subr.bf16.mxu0 0
        %731 = vmatpush1.bf16.msra.mxu0 0
        %732 = vmatprep.mubr.bf16.mxu0 0
        %733 = vmatmul.mubr.bf16.gmra.mrb[0].mxu0 %v670
        %v734 = vpop.f32.mrb[0].mxu0
        %v735 = vadd.f32 %v656, %v734
        %v736 = vpop.f32.mrb[0].mxu0
        %v737 = vadd.f32 %v660, %v736
        %v738 = vpop.f32.mrb[0].mxu0
        %v739 = vadd.f32 %v656, %v738
        %v740 = vpop.f32.mrb[0].mxu0
        %v741 = vadd.f32 %v660, %v740
        %742 = vmatprep.mubr.bf16.mxu0 0
        %743 = vmatmul.mubr.bf16.gmra.mrb[0].mxu0 %v673
        %v744 = vpop.f32.mrb[0].mxu0
        %v745 = vadd.f32 %v656, %v744
        %v746 = vpop.f32.mrb[0].mxu0
        %v747 = vadd.f32 %v660, %v746
        %v748 = vpop.f32.mrb[0].mxu0
        %v749 = vadd.f32 %v656, %v748
        %v750 = vpop.f32.mrb[0].mxu0
        %v751 = vadd.f32 %v660, %v750
        %752 = vmatprep.mubr.bf16.mxu0 0
        %753 = vmatmul.mubr.bf16.gmra.mrb[0].mxu0 %v676
        %v754 = vpop.f32.mrb[0].mxu0
        %v755 = vadd.f32 %v656, %v754
        %v756 = vpop.f32.mrb[0].mxu0
        %v757 = vadd.f32 %v660, %v756
        %v758 = vpop.f32.mrb[0].mxu0
        %v759 = vadd.f32 %v656, %v758
        %v760 = vpop.f32.mrb[0].mxu0
        %v761 = vadd.f32 %v660, %v760
        %762 = vmatprep.mubr.bf16.mxu0 0
        %763 = vmatmul.mubr.bf16.gmra.mrb[0].mxu0 %v679
        %v764 = vpop.f32.mrb[0].mxu0
        %v765 = vadd.f32 %v656, %v764
        %v766 = vpop.f32.mrb[0].mxu0
        %v767 = vadd.f32 %v660, %v766
        %v768 = vpop.f32.mrb[0].mxu0
        %v769 = vadd.f32 %v656, %v768
        %v770 = vpop.f32.mrb[0].mxu0
        %v771 = vadd.f32 %v660, %v770
        %772 = vmatprep.mubr.bf16.mxu0 0
        %773 = vmatmul.mubr.bf16.gmra.mrb[0].mxu0 %v682
        %v774 = vpop.f32.mrb[0].mxu0
        %v775 = vadd.f32 %v656, %v774
        %v776 = vpop.f32.mrb[0].mxu0
        %v777 = vadd.f32 %v660, %v776
        %v778 = vpop.f32.mrb[0].mxu0
        %v779 = vadd.f32 %v656, %v778
        %v780 = vpop.f32.mrb[0].mxu0
        %v781 = vadd.f32 %v660, %v780
        %782 = vmatprep.mubr.bf16.mxu0 0
        %783 = vmatmul.mubr.bf16.gmra.mrb[0].mxu0 %v685
        %v784 = vpop.f32.mrb[0].mxu0
        %v785 = vadd.f32 %v656, %v784
        %v786 = vpop.f32.mrb[0].mxu0
        %v787 = vadd.f32 %v660, %v786
        %v788 = vpop.f32.mrb[0].mxu0
        %v789 = vadd.f32 %v656, %v788
        %v790 = vpop.f32.mrb[0].mxu0
        %v791 = vadd.f32 %v660, %v790
        %792 = vmatprep.mubr.bf16.mxu0 0
        %793 = vmatmul.mubr.bf16.gmra.mrb[0].mxu0 %v688
        %v794 = vpop.f32.mrb[0].mxu0
        %v795 = vadd.f32 %v656, %v794
        %v796 = vpop.f32.mrb[0].mxu0
        %v797 = vadd.f32 %v660, %v796
        %v798 = vpop.f32.mrb[0].mxu0
        %v799 = vadd.f32 %v656, %v798
        %v800 = vpop.f32.mrb[0].mxu0
        %v801 = vadd.f32 %v660, %v800
        %802 = vmatprep.mubr.bf16.mxu0 0
        %803 = vmatmul.mubr.bf16.gmra.mrb[0].mxu0 %v691
        %v804 = vpop.f32.mrb[0].mxu0
        %v805 = vadd.f32 %v656, %v804
        %v806 = vpop.f32.mrb[0].mxu0
        %v807 = vadd.f32 %v660, %v806
        %v808 = vpop.f32.mrb[0].mxu0
        %v809 = vadd.f32 %v656, %v808
        %v810 = vpop.f32.mrb[0].mxu0
        %v811 = vadd.f32 %v660, %v810
        %812 = vdwg.mxu0
        %v813 = vmax.f32 %v735, 0.0
        %v814 = vmax.f32 %v737, 0.0
        %v815 = vmax.f32 %v739, 0.0
        %v816 = vmax.f32 %v741, 0.0
        %v817 = vmax.f32 %v745, 0.0
        %v818 = vmax.f32 %v747, 0.0
        %v819 = vmax.f32 %v749, 0.0
        %v820 = vmax.f32 %v751, 0.0
        %v821 = vmax.f32 %v755, 0.0
        %v822 = vmax.f32 %v757, 0.0
        %v823 = vmax.f32 %v759, 0.0
        %v824 = vmax.f32 %v761, 0.0
        %v825 = vmax.f32 %v765, 0.0
        %v826 = vmax.f32 %v767, 0.0
        %v827 = vmax.f32 %v769, 0.0
        %v828 = vmax.f32 %v771, 0.0
        %v829 = vmax.f32 %v775, 0.0
        %v830 = vmax.f32 %v777, 0.0
        %v831 = vmax.f32 %v779, 0.0
        %v832 = vmax.f32 %v781, 0.0
        %v833 = vmax.f32 %v785, 0.0
        %v834 = vmax.f32 %v787, 0.0
        %v835 = vmax.f32 %v789, 0.0
        %v836 = vmax.f32 %v791, 0.0
        %v837 = vmax.f32 %v795, 0.0
        %v838 = vmax.f32 %v797, 0.0
        %v839 = vmax.f32 %v799, 0.0
        %v840 = vmax.f32 %v801, 0.0
        %v841 = vmax.f32 %v805, 0.0
        %v842 = vmax.f32 %v807, 0.0
        %v843 = vmax.f32 %v809, 0.0
        %v844 = vmax.f32 %v811, 0.0
        %v845 = vpack.c.bf16 %v815, %v813
        %v846 = vpack.c.bf16 %v816, %v814
        %v847 = vpack.c.bf16 %v819, %v817
        %v848 = vpack.c.bf16 %v820, %v818
        %v849 = vpack.c.bf16 %v823, %v821
        %v850 = vpack.c.bf16 %v824, %v822
        %v851 = vpack.c.bf16 %v827, %v825
        %v852 = vpack.c.bf16 %v828, %v826
        %v853 = vpack.c.bf16 %v831, %v829
        %v854 = vpack.c.bf16 %v832, %v830
        %v855 = vpack.c.bf16 %v835, %v833
        %v856 = vpack.c.bf16 %v836, %v834
        %v857 = vpack.c.bf16 %v839, %v837
        %v858 = vpack.c.bf16 %v840, %v838
        %v859 = vpack.c.bf16 %v843, %v841
        %v860 = vpack.c.bf16 %v844, %v842
        %v861 = vld [vmem:[%s3] sm:$0xff]
        %v862 = vld [vmem:[%s3 + $0x8] sm:$0xff]
        %v863 = vld [vmem:[%s3 + $0x10] sm:$0xff]
        %v864 = vld [vmem:[%s3 + $0x18] sm:$0xff]
        %v865 = vld [vmem:[%s3 + $0x20] sm:$0xff]
        %v866 = vld [vmem:[%s3 + $0x28] sm:$0xff]
        %v867 = vld [vmem:[%s3 + $0x30] sm:$0xff]
        %v868 = vld [vmem:[%s3 + $0x38] sm:$0xff]
        %v869 = vld [vmem:[%s3 + $0x40] sm:$0xff]
        %v870 = vld [vmem:[%s3 + $0x48] sm:$0xff]
        %v871 = vld [vmem:[%s3 + $0x50] sm:$0xff]
        %v872 = vld [vmem:[%s3 + $0x58] sm:$0xff]
        %v873 = vld [vmem:[%s3 + $0x60] sm:$0xff]
        %v874 = vld [vmem:[%s3 + $0x68] sm:$0xff]
        %v875 = vld [vmem:[%s3 + $0x70] sm:$0xff]
        %v876 = vld [vmem:[%s3 + $0x78] sm:$0xff]
        %v877 = vld [vmem:[%s3 + $0x80] sm:$0xff]
        %v878 = vld [vmem:[%s3 + $0x88] sm:$0xff]
        %v879 = vld [vmem:[%s3 + $0x90] sm:$0xff]
        %v880 = vld [vmem:[%s3 + $0x98] sm:$0xff]
        %v881 = vld [vmem:[%s3 + $0xa0] sm:$0xff]
        %v882 = vld [vmem:[%s3 + $0xa8] sm:$0xff]
        %v883 = vld [vmem:[%s3 + $0xb0] sm:$0xff]
        %v884 = vld [vmem:[%s3 + $0xb8] sm:$0xff]
        %v885 = vld [vmem:[%s3 + $0xc0] sm:$0xff]
        %v886 = vld [vmem:[%s3 + $0xc8] sm:$0xff]
        %v887 = vld [vmem:[%s3 + $0xd0] sm:$0xff]
        %v888 = vld [vmem:[%s3 + $0xd8] sm:$0xff]
        %v889 = vld [vmem:[%s3 + $0xe0] sm:$0xff]
        %v890 = vld [vmem:[%s3 + $0xe8] sm:$0xff]
        %v891 = vld [vmem:[%s3 + $0xf0] sm:$0xff]
        %v892 = vld [vmem:[%s3 + $0xf8] sm:$0xff]
        %v893 = vld [vmem:[%s4] sm:$0x3]
        %v895 = vlaneseq
        %v896 = vshrl.u32 %v895, 7
        %v897 = vsub.s32 0, %v896
        %v898 = vrot.slane %v893, %v897
        %v899 = vlaneseq
        %v900 = vshrl.u32 %v899, 7
        %v901 = vsub.s32 1, %v900
        %v902 = vrot.slane %v893, %v901
        %v937 = vunpack.c.l.b16 %v861
        %v938 = vunpack.c.h.b16 %v861
        %v939 = vunpack.c.l.b16 %v862
        %v940 = vunpack.c.h.b16 %v862
        %v941 = vunpack.c.l.b16 %v863
        %v942 = vunpack.c.h.b16 %v863
        %v943 = vunpack.c.l.b16 %v864
        %v944 = vunpack.c.h.b16 %v864
        %v945 = vunpack.c.l.b16 %v865
        %v946 = vunpack.c.h.b16 %v865
        %v947 = vunpack.c.l.b16 %v866
        %v948 = vunpack.c.h.b16 %v866
        %v949 = vunpack.c.l.b16 %v867
        %v950 = vunpack.c.h.b16 %v867
        %v951 = vunpack.c.l.b16 %v868
        %v952 = vunpack.c.h.b16 %v868
        %v953 = vunpack.c.l.b16 %v869
        %v954 = vunpack.c.h.b16 %v869
        %v955 = vunpack.c.l.b16 %v870
        %v956 = vunpack.c.h.b16 %v870
        %v957 = vunpack.c.l.b16 %v871
        %v958 = vunpack.c.h.b16 %v871
        %v959 = vunpack.c.l.b16 %v872
        %v960 = vunpack.c.h.b16 %v872
        %v961 = vunpack.c.l.b16 %v873
        %v962 = vunpack.c.h.b16 %v873
        %v963 = vunpack.c.l.b16 %v874
        %v964 = vunpack.c.h.b16 %v874
        %v965 = vunpack.c.l.b16 %v875
        %v966 = vunpack.c.h.b16 %v875
        %v967 = vunpack.c.l.b16 %v876
        %v968 = vunpack.c.h.b16 %v876
        %v969 = vunpack.c.l.b16 %v877
        %v970 = vunpack.c.h.b16 %v877
        %v971 = vunpack.c.l.b16 %v878
        %v972 = vunpack.c.h.b16 %v878
        %v973 = vunpack.c.l.b16 %v879
        %v974 = vunpack.c.h.b16 %v879
        %v975 = vunpack.c.l.b16 %v880
        %v976 = vunpack.c.h.b16 %v880
        %v977 = vunpack.c.l.b16 %v881
        %v978 = vunpack.c.h.b16 %v881
        %v979 = vunpack.c.l.b16 %v882
        %v980 = vunpack.c.h.b16 %v882
        %v981 = vunpack.c.l.b16 %v883
        %v982 = vunpack.c.h.b16 %v883
        %v983 = vunpack.c.l.b16 %v884
        %v984 = vunpack.c.h.b16 %v884
        %v985 = vunpack.c.l.b16 %v885
        %v986 = vunpack.c.h.b16 %v885
        %v987 = vunpack.c.l.b16 %v886
        %v988 = vunpack.c.h.b16 %v886
        %v989 = vunpack.c.l.b16 %v887
        %v990 = vunpack.c.h.b16 %v887
        %v991 = vunpack.c.l.b16 %v888
        %v992 = vunpack.c.h.b16 %v888
        %v993 = vunpack.c.l.b16 %v889
        %v994 = vunpack.c.h.b16 %v889
        %v995 = vunpack.c.l.b16 %v890
        %v996 = vunpack.c.h.b16 %v890
        %v997 = vunpack.c.l.b16 %v891
        %v998 = vunpack.c.h.b16 %v891
        %v999 = vunpack.c.l.b16 %v892
        %v1000 = vunpack.c.h.b16 %v892
        %v1001 = vpack.c.b16 %v939, %v937
        %v1002 = vpack.c.b16 %v940, %v938
        %v1003 = vpack.c.b16 %v943, %v941
        %v1004 = vpack.c.b16 %v944, %v942
        %v1005 = vpack.c.b16 %v947, %v945
        %v1006 = vpack.c.b16 %v948, %v946
        %v1007 = vpack.c.b16 %v951, %v949
        %v1008 = vpack.c.b16 %v952, %v950
        %v1009 = vpack.c.b16 %v955, %v953
        %v1010 = vpack.c.b16 %v956, %v954
        %v1011 = vpack.c.b16 %v959, %v957
        %v1012 = vpack.c.b16 %v960, %v958
        %v1013 = vpack.c.b16 %v963, %v961
        %v1014 = vpack.c.b16 %v964, %v962
        %v1015 = vpack.c.b16 %v967, %v965
        %v1016 = vpack.c.b16 %v968, %v966
        %v1017 = vpack.c.b16 %v971, %v969
        %v1018 = vpack.c.b16 %v972, %v970
        %v1019 = vpack.c.b16 %v975, %v973
        %v1020 = vpack.c.b16 %v976, %v974
        %v1021 = vpack.c.b16 %v979, %v977
        %v1022 = vpack.c.b16 %v980, %v978
        %v1023 = vpack.c.b16 %v983, %v981
        %v1024 = vpack.c.b16 %v984, %v982
        %v1025 = vpack.c.b16 %v987, %v985
        %v1026 = vpack.c.b16 %v988, %v986
        %v1027 = vpack.c.b16 %v991, %v989
        %v1028 = vpack.c.b16 %v992, %v990
        %v1029 = vpack.c.b16 %v995, %v993
        %v1030 = vpack.c.b16 %v996, %v994
        %v1031 = vpack.c.b16 %v999, %v997
        %v1032 = vpack.c.b16 %v1000, %v998
        %1065 = vmatprep.subr.bf16.mxu0 %v1002
        %1066 = vmatpush1.bf16.msra.mxu0 %v1001
        %1067 = vmatprep.subr.bf16.mxu0 %v1004
        %1068 = vmatpush1.bf16.msra.mxu0 %v1003
        %1069 = vmatprep.subr.bf16.mxu0 %v1006
        %1070 = vmatpush1.bf16.msra.mxu0 %v1005
        %1071 = vmatprep.subr.bf16.mxu0 %v1008
        %1072 = vmatpush1.bf16.msra.mxu0 %v1007
        %1073 = vmatprep.subr.bf16.mxu0 %v1010
        %1074 = vmatpush1.bf16.msra.mxu0 %v1009
        %1075 = vmatprep.subr.bf16.mxu0 %v1012
        %1076 = vmatpush1.bf16.msra.mxu0 %v1011
        %1077 = vmatprep.subr.bf16.mxu0 %v1014
        %1078 = vmatpush1.bf16.msra.mxu0 %v1013
        %1079 = vmatprep.subr.bf16.mxu0 %v1016
        %1080 = vmatpush1.bf16.msra.mxu0 %v1015
        %1081 = vmatprep.subr.bf16.mxu0 %v1018
        %1082 = vmatpush1.bf16.msra.mxu0 %v1017
        %1083 = vmatprep.subr.bf16.mxu0 %v1020
        %1084 = vmatpush1.bf16.msra.mxu0 %v1019
        %1085 = vmatprep.subr.bf16.mxu0 %v1022
        %1086 = vmatpush1.bf16.msra.mxu0 %v1021
        %1087 = vmatprep.subr.bf16.mxu0 %v1024
        %1088 = vmatpush1.bf16.msra.mxu0 %v1023
        %1089 = vmatprep.subr.bf16.mxu0 %v1026
        %1090 = vmatpush1.bf16.msra.mxu0 %v1025
        %1091 = vmatprep.subr.bf16.mxu0 %v1028
        %1092 = vmatpush1.bf16.msra.mxu0 %v1027
        %1093 = vmatprep.subr.bf16.mxu0 %v1030
        %1094 = vmatpush1.bf16.msra.mxu0 %v1029
        %1095 = vmatprep.subr.bf16.mxu0 %v1032
        %1096 = vmatpush1.bf16.msra.mxu0 %v1031
        %1097 = vmatprep.mubr.bf16.mxu0 %v846
        %1098 = vmatmul.mubr.bf16.gmra.mrb[0].mxu0 %v845
        %v1099 = vpop.f32.mrb[0].mxu0
        %v1100 = vadd.f32 %v898, %v1099
        %v1101 = vpop.f32.mrb[0].mxu0
        %v1102 = vadd.f32 %v902, %v1101
        %v1103 = vpop.f32.mrb[0].mxu0
        %v1104 = vadd.f32 %v898, %v1103
        %v1105 = vpop.f32.mrb[0].mxu0
        %v1106 = vadd.f32 %v902, %v1105
        %1107 = vmatprep.mubr.bf16.mxu0 %v848
        %1108 = vmatmul.mubr.bf16.gmra.mrb[0].mxu0 %v847
        %v1109 = vpop.f32.mrb[0].mxu0
        %v1110 = vadd.f32 %v898, %v1109
        %v1111 = vpop.f32.mrb[0].mxu0
        %v1112 = vadd.f32 %v902, %v1111
        %v1113 = vpop.f32.mrb[0].mxu0
        %v1114 = vadd.f32 %v898, %v1113
        %v1115 = vpop.f32.mrb[0].mxu0
        %v1116 = vadd.f32 %v902, %v1115
        %1117 = vmatprep.mubr.bf16.mxu0 %v850
        %1118 = vmatmul.mubr.bf16.gmra.mrb[0].mxu0 %v849
        %v1119 = vpop.f32.mrb[0].mxu0
        %v1120 = vadd.f32 %v898, %v1119
        %v1121 = vpop.f32.mrb[0].mxu0
        %v1122 = vadd.f32 %v902, %v1121
        %v1123 = vpop.f32.mrb[0].mxu0
        %v1124 = vadd.f32 %v898, %v1123
        %v1125 = vpop.f32.mrb[0].mxu0
        %v1126 = vadd.f32 %v902, %v1125
        %1127 = vmatprep.mubr.bf16.mxu0 %v852
        %1128 = vmatmul.mubr.bf16.gmra.mrb[0].mxu0 %v851
        %v1129 = vpop.f32.mrb[0].mxu0
        %v1130 = vadd.f32 %v898, %v1129
        %v1131 = vpop.f32.mrb[0].mxu0
        %v1132 = vadd.f32 %v902, %v1131
        %v1133 = vpop.f32.mrb[0].mxu0
        %v1134 = vadd.f32 %v898, %v1133
        %v1135 = vpop.f32.mrb[0].mxu0
        %v1136 = vadd.f32 %v902, %v1135
        %1137 = vmatprep.mubr.bf16.mxu0 %v854
        %1138 = vmatmul.mubr.bf16.gmra.mrb[0].mxu0 %v853
        %v1139 = vpop.f32.mrb[0].mxu0
        %v1140 = vadd.f32 %v898, %v1139
        %v1141 = vpop.f32.mrb[0].mxu0
        %v1142 = vadd.f32 %v902, %v1141
        %v1143 = vpop.f32.mrb[0].mxu0
        %v1144 = vadd.f32 %v898, %v1143
        %v1145 = vpop.f32.mrb[0].mxu0
        %v1146 = vadd.f32 %v902, %v1145
        %1147 = vmatprep.mubr.bf16.mxu0 %v856
        %1148 = vmatmul.mubr.bf16.gmra.mrb[0].mxu0 %v855
        %v1149 = vpop.f32.mrb[0].mxu0
        %v1150 = vadd.f32 %v898, %v1149
        %v1151 = vpop.f32.mrb[0].mxu0
        %v1152 = vadd.f32 %v902, %v1151
        %v1153 = vpop.f32.mrb[0].mxu0
        %v1154 = vadd.f32 %v898, %v1153
        %v1155 = vpop.f32.mrb[0].mxu0
        %v1156 = vadd.f32 %v902, %v1155
        %1157 = vmatprep.mubr.bf16.mxu0 %v858
        %1158 = vmatmul.mubr.bf16.gmra.mrb[0].mxu0 %v857
        %v1159 = vpop.f32.mrb[0].mxu0
        %v1160 = vadd.f32 %v898, %v1159
        %v1161 = vpop.f32.mrb[0].mxu0
        %v1162 = vadd.f32 %v902, %v1161
        %v1163 = vpop.f32.mrb[0].mxu0
        %v1164 = vadd.f32 %v898, %v1163
        %v1165 = vpop.f32.mrb[0].mxu0
        %v1166 = vadd.f32 %v902, %v1165
        %1167 = vmatprep.mubr.bf16.mxu0 %v860
        %1168 = vmatmul.mubr.bf16.gmra.mrb[0].mxu0 %v859
        %v1169 = vpop.f32.mrb[0].mxu0
        %v1170 = vadd.f32 %v898, %v1169
        %v1171 = vpop.f32.mrb[0].mxu0
        %v1172 = vadd.f32 %v902, %v1171
        %v1173 = vpop.f32.mrb[0].mxu0
        %v1174 = vadd.f32 %v898, %v1173
        %v1175 = vpop.f32.mrb[0].mxu0
        %v1176 = vadd.f32 %v902, %v1175
        %1177 = vdwg.mxu0
        %v1178 = vmax.f32 %v1100, 0.0
        %v1179 = vmax.f32 %v1102, 0.0
        %v1180 = vmax.f32 %v1104, 0.0
        %v1181 = vmax.f32 %v1106, 0.0
        %v1182 = vmax.f32 %v1110, 0.0
        %v1183 = vmax.f32 %v1112, 0.0
        %v1184 = vmax.f32 %v1114, 0.0
        %v1185 = vmax.f32 %v1116, 0.0
        %v1186 = vmax.f32 %v1120, 0.0
        %v1187 = vmax.f32 %v1122, 0.0
        %v1188 = vmax.f32 %v1124, 0.0
        %v1189 = vmax.f32 %v1126, 0.0
        %v1190 = vmax.f32 %v1130, 0.0
        %v1191 = vmax.f32 %v1132, 0.0
        %v1192 = vmax.f32 %v1134, 0.0
        %v1193 = vmax.f32 %v1136, 0.0
        %v1194 = vmax.f32 %v1140, 0.0
        %v1195 = vmax.f32 %v1142, 0.0
        %v1196 = vmax.f32 %v1144, 0.0
        %v1197 = vmax.f32 %v1146, 0.0
        %v1198 = vmax.f32 %v1150, 0.0
        %v1199 = vmax.f32 %v1152, 0.0
        %v1200 = vmax.f32 %v1154, 0.0
        %v1201 = vmax.f32 %v1156, 0.0
        %v1202 = vmax.f32 %v1160, 0.0
        %v1203 = vmax.f32 %v1162, 0.0
        %v1204 = vmax.f32 %v1164, 0.0
        %v1205 = vmax.f32 %v1166, 0.0
        %v1206 = vmax.f32 %v1170, 0.0
        %v1207 = vmax.f32 %v1172, 0.0
        %v1208 = vmax.f32 %v1174, 0.0
        %v1209 = vmax.f32 %v1176, 0.0
        %v1210 = vpack.c.bf16 %v1180, %v1178
        %v1211 = vpack.c.bf16 %v1181, %v1179
        %v1212 = vpack.c.bf16 %v1184, %v1182
        %v1213 = vpack.c.bf16 %v1185, %v1183
        %v1214 = vpack.c.bf16 %v1188, %v1186
        %v1215 = vpack.c.bf16 %v1189, %v1187
        %v1216 = vpack.c.bf16 %v1192, %v1190
        %v1217 = vpack.c.bf16 %v1193, %v1191
        %v1218 = vpack.c.bf16 %v1196, %v1194
        %v1219 = vpack.c.bf16 %v1197, %v1195
        %v1220 = vpack.c.bf16 %v1200, %v1198
        %v1221 = vpack.c.bf16 %v1201, %v1199
        %v1222 = vpack.c.bf16 %v1204, %v1202
        %v1223 = vpack.c.bf16 %v1205, %v1203
        %v1224 = vpack.c.bf16 %v1208, %v1206
        %v1225 = vpack.c.bf16 %v1209, %v1207
        %v1226 = vld [vmem:[#allocation3] sm:$0xff]
        %v1227 = vld [vmem:[#allocation3 + $0x8] sm:$0xff]
        %v1228 = vld [vmem:[#allocation3 + $0x10] sm:$0xff]
        %v1229 = vld [vmem:[#allocation3 + $0x18] sm:$0xff]
        %v1230 = vld [vmem:[#allocation3 + $0x20] sm:$0xff]
        %v1231 = vld [vmem:[#allocation3 + $0x28] sm:$0xff]
        %v1232 = vld [vmem:[#allocation3 + $0x30] sm:$0xff]
        %v1233 = vld [vmem:[#allocation3 + $0x38] sm:$0xff]
        %v1234 = vld [vmem:[#allocation3 + $0x40] sm:$0xff]
        %v1235 = vld [vmem:[#allocation3 + $0x48] sm:$0xff]
        %v1236 = vld [vmem:[#allocation3 + $0x50] sm:$0xff]
        %v1237 = vld [vmem:[#allocation3 + $0x58] sm:$0xff]
        %v1238 = vld [vmem:[#allocation3 + $0x60] sm:$0xff]
        %v1239 = vld [vmem:[#allocation3 + $0x68] sm:$0xff]
        %v1240 = vld [vmem:[#allocation3 + $0x70] sm:$0xff]
        %v1241 = vld [vmem:[#allocation3 + $0x78] sm:$0xff]
        %v1242 = vld [vmem:[#allocation3 + $0x80] sm:$0xff]
        %v1243 = vld [vmem:[#allocation3 + $0x88] sm:$0xff]
        %v1244 = vld [vmem:[#allocation3 + $0x90] sm:$0xff]
        %v1245 = vld [vmem:[#allocation3 + $0x98] sm:$0xff]
        %v1246 = vld [vmem:[#allocation3 + $0xa0] sm:$0xff]
        %v1247 = vld [vmem:[#allocation3 + $0xa8] sm:$0xff]
        %v1248 = vld [vmem:[#allocation3 + $0xb0] sm:$0xff]
        %v1249 = vld [vmem:[#allocation3 + $0xb8] sm:$0xff]
        %v1250 = vld [vmem:[#allocation3 + $0xc0] sm:$0xff]
        %v1251 = vld [vmem:[#allocation3 + $0xc8] sm:$0xff]
        %v1252 = vld [vmem:[#allocation3 + $0xd0] sm:$0xff]
        %v1253 = vld [vmem:[#allocation3 + $0xd8] sm:$0xff]
        %v1254 = vld [vmem:[#allocation3 + $0xe0] sm:$0xff]
        %v1255 = vld [vmem:[#allocation3 + $0xe8] sm:$0xff]
        %v1256 = vld [vmem:[#allocation3 + $0xf0] sm:$0xff]
        %v1257 = vld [vmem:[#allocation3 + $0xf8] sm:$0xff]
        %v1258 = vld [vmem:[%s6] sm:$0x3]
        %v1260 = vlaneseq
        %v1261 = vshrl.u32 %v1260, 7
        %v1262 = vsub.s32 0, %v1261
        %v1263 = vrot.slane %v1258, %v1262
        %v1264 = vlaneseq
        %v1265 = vshrl.u32 %v1264, 7
        %v1266 = vsub.s32 1, %v1265
        %v1267 = vrot.slane %v1258, %v1266
        %v1302 = vunpack.c.l.b16 %v1226
        %v1303 = vunpack.c.h.b16 %v1226
        %v1304 = vunpack.c.l.b16 %v1227
        %v1305 = vunpack.c.h.b16 %v1227
        %v1306 = vunpack.c.l.b16 %v1228
        %v1307 = vunpack.c.h.b16 %v1228
        %v1308 = vunpack.c.l.b16 %v1229
        %v1309 = vunpack.c.h.b16 %v1229
        %v1310 = vunpack.c.l.b16 %v1230
        %v1311 = vunpack.c.h.b16 %v1230
        %v1312 = vunpack.c.l.b16 %v1231
        %v1313 = vunpack.c.h.b16 %v1231
        %v1314 = vunpack.c.l.b16 %v1232
        %v1315 = vunpack.c.h.b16 %v1232
        %v1316 = vunpack.c.l.b16 %v1233
        %v1317 = vunpack.c.h.b16 %v1233
        %v1318 = vunpack.c.l.b16 %v1234
        %v1319 = vunpack.c.h.b16 %v1234
        %v1320 = vunpack.c.l.b16 %v1235
        %v1321 = vunpack.c.h.b16 %v1235
        %v1322 = vunpack.c.l.b16 %v1236
        %v1323 = vunpack.c.h.b16 %v1236
        %v1324 = vunpack.c.l.b16 %v1237
        %v1325 = vunpack.c.h.b16 %v1237
        %v1326 = vunpack.c.l.b16 %v1238
        %v1327 = vunpack.c.h.b16 %v1238
        %v1328 = vunpack.c.l.b16 %v1239
        %v1329 = vunpack.c.h.b16 %v1239
        %v1330 = vunpack.c.l.b16 %v1240
        %v1331 = vunpack.c.h.b16 %v1240
        %v1332 = vunpack.c.l.b16 %v1241
        %v1333 = vunpack.c.h.b16 %v1241
        %v1334 = vunpack.c.l.b16 %v1242
        %v1335 = vunpack.c.h.b16 %v1242
        %v1336 = vunpack.c.l.b16 %v1243
        %v1337 = vunpack.c.h.b16 %v1243
        %v1338 = vunpack.c.l.b16 %v1244
        %v1339 = vunpack.c.h.b16 %v1244
        %v1340 = vunpack.c.l.b16 %v1245
        %v1341 = vunpack.c.h.b16 %v1245
        %v1342 = vunpack.c.l.b16 %v1246
        %v1343 = vunpack.c.h.b16 %v1246
        %v1344 = vunpack.c.l.b16 %v1247
        %v1345 = vunpack.c.h.b16 %v1247
        %v1346 = vunpack.c.l.b16 %v1248
        %v1347 = vunpack.c.h.b16 %v1248
        %v1348 = vunpack.c.l.b16 %v1249
        %v1349 = vunpack.c.h.b16 %v1249
        %v1350 = vunpack.c.l.b16 %v1250
        %v1351 = vunpack.c.h.b16 %v1250
        %v1352 = vunpack.c.l.b16 %v1251
        %v1353 = vunpack.c.h.b16 %v1251
        %v1354 = vunpack.c.l.b16 %v1252
        %v1355 = vunpack.c.h.b16 %v1252
        %v1356 = vunpack.c.l.b16 %v1253
        %v1357 = vunpack.c.h.b16 %v1253
        %v1358 = vunpack.c.l.b16 %v1254
        %v1359 = vunpack.c.h.b16 %v1254
        %v1360 = vunpack.c.l.b16 %v1255
        %v1361 = vunpack.c.h.b16 %v1255
        %v1362 = vunpack.c.l.b16 %v1256
        %v1363 = vunpack.c.h.b16 %v1256
        %v1364 = vunpack.c.l.b16 %v1257
        %v1365 = vunpack.c.h.b16 %v1257
        %v1366 = vpack.c.b16 %v1304, %v1302
        %v1367 = vpack.c.b16 %v1305, %v1303
        %v1368 = vpack.c.b16 %v1308, %v1306
        %v1369 = vpack.c.b16 %v1309, %v1307
        %v1370 = vpack.c.b16 %v1312, %v1310
        %v1371 = vpack.c.b16 %v1313, %v1311
        %v1372 = vpack.c.b16 %v1316, %v1314
        %v1373 = vpack.c.b16 %v1317, %v1315
        %v1374 = vpack.c.b16 %v1320, %v1318
        %v1375 = vpack.c.b16 %v1321, %v1319
        %v1376 = vpack.c.b16 %v1324, %v1322
        %v1377 = vpack.c.b16 %v1325, %v1323
        %v1378 = vpack.c.b16 %v1328, %v1326
        %v1379 = vpack.c.b16 %v1329, %v1327
        %v1380 = vpack.c.b16 %v1332, %v1330
        %v1381 = vpack.c.b16 %v1333, %v1331
        %v1382 = vpack.c.b16 %v1336, %v1334
        %v1383 = vpack.c.b16 %v1337, %v1335
        %v1384 = vpack.c.b16 %v1340, %v1338
        %v1385 = vpack.c.b16 %v1341, %v1339
        %v1386 = vpack.c.b16 %v1344, %v1342
        %v1387 = vpack.c.b16 %v1345, %v1343
        %v1388 = vpack.c.b16 %v1348, %v1346
        %v1389 = vpack.c.b16 %v1349, %v1347
        %v1390 = vpack.c.b16 %v1352, %v1350
        %v1391 = vpack.c.b16 %v1353, %v1351
        %v1392 = vpack.c.b16 %v1356, %v1354
        %v1393 = vpack.c.b16 %v1357, %v1355
        %v1394 = vpack.c.b16 %v1360, %v1358
        %v1395 = vpack.c.b16 %v1361, %v1359
        %v1396 = vpack.c.b16 %v1364, %v1362
        %v1397 = vpack.c.b16 %v1365, %v1363
        %1430 = vmatprep.subr.bf16.mxu0 %v1367
        %1431 = vmatpush1.bf16.msra.mxu0 %v1366
        %1432 = vmatprep.subr.bf16.mxu0 %v1369
        %1433 = vmatpush1.bf16.msra.mxu0 %v1368
        %1434 = vmatprep.subr.bf16.mxu0 %v1371
        %1435 = vmatpush1.bf16.msra.mxu0 %v1370
        %1436 = vmatprep.subr.bf16.mxu0 %v1373
        %1437 = vmatpush1.bf16.msra.mxu0 %v1372
        %1438 = vmatprep.subr.bf16.mxu0 %v1375
        %1439 = vmatpush1.bf16.msra.mxu0 %v1374
        %1440 = vmatprep.subr.bf16.mxu0 %v1377
        %1441 = vmatpush1.bf16.msra.mxu0 %v1376
        %1442 = vmatprep.subr.bf16.mxu0 %v1379
        %1443 = vmatpush1.bf16.msra.mxu0 %v1378
        %1444 = vmatprep.subr.bf16.mxu0 %v1381
        %1445 = vmatpush1.bf16.msra.mxu0 %v1380
        %1446 = vmatprep.subr.bf16.mxu0 %v1383
        %1447 = vmatpush1.bf16.msra.mxu0 %v1382
        %1448 = vmatprep.subr.bf16.mxu0 %v1385
        %1449 = vmatpush1.bf16.msra.mxu0 %v1384
        %1450 = vmatprep.subr.bf16.mxu0 %v1387
        %1451 = vmatpush1.bf16.msra.mxu0 %v1386
        %1452 = vmatprep.subr.bf16.mxu0 %v1389
        %1453 = vmatpush1.bf16.msra.mxu0 %v1388
        %1454 = vmatprep.subr.bf16.mxu0 %v1391
        %1455 = vmatpush1.bf16.msra.mxu0 %v1390
        %1456 = vmatprep.subr.bf16.mxu0 %v1393
        %1457 = vmatpush1.bf16.msra.mxu0 %v1392
        %1458 = vmatprep.subr.bf16.mxu0 %v1395
        %1459 = vmatpush1.bf16.msra.mxu0 %v1394
        %1460 = vmatprep.subr.bf16.mxu0 %v1397
        %1461 = vmatpush1.bf16.msra.mxu0 %v1396
        %1462 = vmatprep.mubr.bf16.mxu0 %v1211
        %1463 = vmatmul.mubr.bf16.gmra.mrb[0].mxu0 %v1210
        %v1464 = vpop.f32.mrb[0].mxu0
        %v1465 = vadd.f32 %v1263, %v1464
        %v1466 = vpop.f32.mrb[0].mxu0
        %v1467 = vadd.f32 %v1267, %v1466
        %v1468 = vpop.f32.mrb[0].mxu0
        %v1469 = vadd.f32 %v1263, %v1468
        %v1470 = vpop.f32.mrb[0].mxu0
        %v1471 = vadd.f32 %v1267, %v1470
        %1472 = vmatprep.mubr.bf16.mxu0 %v1213
        %1473 = vmatmul.mubr.bf16.gmra.mrb[0].mxu0 %v1212
        %v1474 = vpop.f32.mrb[0].mxu0
        %v1475 = vadd.f32 %v1263, %v1474
        %v1476 = vpop.f32.mrb[0].mxu0
        %v1477 = vadd.f32 %v1267, %v1476
        %v1478 = vpop.f32.mrb[0].mxu0
        %v1479 = vadd.f32 %v1263, %v1478
        %v1480 = vpop.f32.mrb[0].mxu0
        %v1481 = vadd.f32 %v1267, %v1480
        %1482 = vmatprep.mubr.bf16.mxu0 %v1215
        %1483 = vmatmul.mubr.bf16.gmra.mrb[0].mxu0 %v1214
        %v1484 = vpop.f32.mrb[0].mxu0
        %v1485 = vadd.f32 %v1263, %v1484
        %v1486 = vpop.f32.mrb[0].mxu0
        %v1487 = vadd.f32 %v1267, %v1486
        %v1488 = vpop.f32.mrb[0].mxu0
        %v1489 = vadd.f32 %v1263, %v1488
        %v1490 = vpop.f32.mrb[0].mxu0
        %v1491 = vadd.f32 %v1267, %v1490
        %1492 = vmatprep.mubr.bf16.mxu0 %v1217
        %1493 = vmatmul.mubr.bf16.gmra.mrb[0].mxu0 %v1216
        %v1494 = vpop.f32.mrb[0].mxu0
        %v1495 = vadd.f32 %v1263, %v1494
        %v1496 = vpop.f32.mrb[0].mxu0
        %v1497 = vadd.f32 %v1267, %v1496
        %v1498 = vpop.f32.mrb[0].mxu0
        %v1499 = vadd.f32 %v1263, %v1498
        %v1500 = vpop.f32.mrb[0].mxu0
        %v1501 = vadd.f32 %v1267, %v1500
        %1502 = vmatprep.mubr.bf16.mxu0 %v1219
        %1503 = vmatmul.mubr.bf16.gmra.mrb[0].mxu0 %v1218
        %v1504 = vpop.f32.mrb[0].mxu0
        %v1505 = vadd.f32 %v1263, %v1504
        %v1506 = vpop.f32.mrb[0].mxu0
        %v1507 = vadd.f32 %v1267, %v1506
        %v1508 = vpop.f32.mrb[0].mxu0
        %v1509 = vadd.f32 %v1263, %v1508
        %v1510 = vpop.f32.mrb[0].mxu0
        %v1511 = vadd.f32 %v1267, %v1510
        %1512 = vmatprep.mubr.bf16.mxu0 %v1221
        %1513 = vmatmul.mubr.bf16.gmra.mrb[0].mxu0 %v1220
        %v1514 = vpop.f32.mrb[0].mxu0
        %v1515 = vadd.f32 %v1263, %v1514
        %v1516 = vpop.f32.mrb[0].mxu0
        %v1517 = vadd.f32 %v1267, %v1516
        %v1518 = vpop.f32.mrb[0].mxu0
        %v1519 = vadd.f32 %v1263, %v1518
        %v1520 = vpop.f32.mrb[0].mxu0
        %v1521 = vadd.f32 %v1267, %v1520
        %1522 = vmatprep.mubr.bf16.mxu0 %v1223
        %1523 = vmatmul.mubr.bf16.gmra.mrb[0].mxu0 %v1222
        %v1524 = vpop.f32.mrb[0].mxu0
        %v1525 = vadd.f32 %v1263, %v1524
        %v1526 = vpop.f32.mrb[0].mxu0
        %v1527 = vadd.f32 %v1267, %v1526
        %v1528 = vpop.f32.mrb[0].mxu0
        %v1529 = vadd.f32 %v1263, %v1528
        %v1530 = vpop.f32.mrb[0].mxu0
        %v1531 = vadd.f32 %v1267, %v1530
        %1532 = vmatprep.mubr.bf16.mxu0 %v1225
        %1533 = vmatmul.mubr.bf16.gmra.mrb[0].mxu0 %v1224
        %v1534 = vpop.f32.mrb[0].mxu0
        %v1535 = vadd.f32 %v1263, %v1534
        %v1536 = vpop.f32.mrb[0].mxu0
        %v1537 = vadd.f32 %v1267, %v1536
        %v1538 = vpop.f32.mrb[0].mxu0
        %v1539 = vadd.f32 %v1263, %v1538
        %v1540 = vpop.f32.mrb[0].mxu0
        %v1541 = vadd.f32 %v1267, %v1540
        %1542 = vdwg.mxu0
        %v1543 = vmax.f32 %v1465, 0.0
        %v1544 = vmax.f32 %v1467, 0.0
        %v1545 = vmax.f32 %v1469, 0.0
        %v1546 = vmax.f32 %v1471, 0.0
        %v1547 = vmax.f32 %v1475, 0.0
        %v1548 = vmax.f32 %v1477, 0.0
        %v1549 = vmax.f32 %v1479, 0.0
        %v1550 = vmax.f32 %v1481, 0.0
        %v1551 = vmax.f32 %v1485, 0.0
        %v1552 = vmax.f32 %v1487, 0.0
        %v1553 = vmax.f32 %v1489, 0.0
        %v1554 = vmax.f32 %v1491, 0.0
        %v1555 = vmax.f32 %v1495, 0.0
        %v1556 = vmax.f32 %v1497, 0.0
        %v1557 = vmax.f32 %v1499, 0.0
        %v1558 = vmax.f32 %v1501, 0.0
        %v1559 = vmax.f32 %v1505, 0.0
        %v1560 = vmax.f32 %v1507, 0.0
        %v1561 = vmax.f32 %v1509, 0.0
        %v1562 = vmax.f32 %v1511, 0.0
        %v1563 = vmax.f32 %v1515, 0.0
        %v1564 = vmax.f32 %v1517, 0.0
        %v1565 = vmax.f32 %v1519, 0.0
        %v1566 = vmax.f32 %v1521, 0.0
        %v1567 = vmax.f32 %v1525, 0.0
        %v1568 = vmax.f32 %v1527, 0.0
        %v1569 = vmax.f32 %v1529, 0.0
        %v1570 = vmax.f32 %v1531, 0.0
        %v1571 = vmax.f32 %v1535, 0.0
        %v1572 = vmax.f32 %v1537, 0.0
        %v1573 = vmax.f32 %v1539, 0.0
        %v1574 = vmax.f32 %v1541, 0.0
        %v1575 = vpack.c.bf16 %v1545, %v1543
        %v1576 = vpack.c.bf16 %v1546, %v1544
        %v1577 = vpack.c.bf16 %v1549, %v1547
        %v1578 = vpack.c.bf16 %v1550, %v1548
        %v1579 = vpack.c.bf16 %v1553, %v1551
        %v1580 = vpack.c.bf16 %v1554, %v1552
        %v1581 = vpack.c.bf16 %v1557, %v1555
        %v1582 = vpack.c.bf16 %v1558, %v1556
        %v1583 = vpack.c.bf16 %v1561, %v1559
        %v1584 = vpack.c.bf16 %v1562, %v1560
        %v1585 = vpack.c.bf16 %v1565, %v1563
        %v1586 = vpack.c.bf16 %v1566, %v1564
        %v1587 = vpack.c.bf16 %v1569, %v1567
        %v1588 = vpack.c.bf16 %v1570, %v1568
        %v1589 = vpack.c.bf16 %v1573, %v1571
        %v1590 = vpack.c.bf16 %v1574, %v1572
        %v1591 = vld [vmem:[#allocation5] sm:$0xff]
        %v1592 = vld [vmem:[#allocation5 + $0x8] sm:$0xff]
        %v1593 = vld [vmem:[#allocation5 + $0x10] sm:$0xff]
        %v1594 = vld [vmem:[#allocation5 + $0x18] sm:$0xff]
        %v1595 = vld [vmem:[#allocation5 + $0x20] sm:$0xff]
        %v1596 = vld [vmem:[#allocation5 + $0x28] sm:$0xff]
        %v1597 = vld [vmem:[#allocation5 + $0x30] sm:$0xff]
        %v1598 = vld [vmem:[#allocation5 + $0x38] sm:$0xff]
        %v1599 = vld [vmem:[#allocation5 + $0x40] sm:$0xff]
        %v1600 = vld [vmem:[#allocation5 + $0x48] sm:$0xff]
        %v1601 = vld [vmem:[#allocation5 + $0x50] sm:$0xff]
        %v1602 = vld [vmem:[#allocation5 + $0x58] sm:$0xff]
        %v1603 = vld [vmem:[#allocation5 + $0x60] sm:$0xff]
        %v1604 = vld [vmem:[#allocation5 + $0x68] sm:$0xff]
        %v1605 = vld [vmem:[#allocation5 + $0x70] sm:$0xff]
        %v1606 = vld [vmem:[#allocation5 + $0x78] sm:$0xff]
        %v1607 = vld [vmem:[#allocation5 + $0x80] sm:$0xff]
        %v1608 = vld [vmem:[#allocation5 + $0x88] sm:$0xff]
        %v1609 = vld [vmem:[#allocation5 + $0x90] sm:$0xff]
        %v1610 = vld [vmem:[#allocation5 + $0x98] sm:$0xff]
        %v1611 = vld [vmem:[#allocation5 + $0xa0] sm:$0xff]
        %v1612 = vld [vmem:[#allocation5 + $0xa8] sm:$0xff]
        %v1613 = vld [vmem:[#allocation5 + $0xb0] sm:$0xff]
        %v1614 = vld [vmem:[#allocation5 + $0xb8] sm:$0xff]
        %v1615 = vld [vmem:[#allocation5 + $0xc0] sm:$0xff]
        %v1616 = vld [vmem:[#allocation5 + $0xc8] sm:$0xff]
        %v1617 = vld [vmem:[#allocation5 + $0xd0] sm:$0xff]
        %v1618 = vld [vmem:[#allocation5 + $0xd8] sm:$0xff]
        %v1619 = vld [vmem:[#allocation5 + $0xe0] sm:$0xff]
        %v1620 = vld [vmem:[#allocation5 + $0xe8] sm:$0xff]
        %v1621 = vld [vmem:[#allocation5 + $0xf0] sm:$0xff]
        %v1622 = vld [vmem:[#allocation5 + $0xf8] sm:$0xff]
        %v1623 = vld [vmem:[%s8] sm:$0x3]
        %v1625 = vlaneseq
        %v1626 = vshrl.u32 %v1625, 7
        %v1627 = vsub.s32 0, %v1626
        %v1628 = vrot.slane %v1623, %v1627
        %v1629 = vlaneseq
        %v1630 = vshrl.u32 %v1629, 7
        %v1631 = vsub.s32 1, %v1630
        %v1632 = vrot.slane %v1623, %v1631
        %v1667 = vunpack.c.l.b16 %v1591
        %v1668 = vunpack.c.h.b16 %v1591
        %v1669 = vunpack.c.l.b16 %v1592
        %v1670 = vunpack.c.h.b16 %v1592
        %v1671 = vunpack.c.l.b16 %v1593
        %v1672 = vunpack.c.h.b16 %v1593
        %v1673 = vunpack.c.l.b16 %v1594
        %v1674 = vunpack.c.h.b16 %v1594
        %v1675 = vunpack.c.l.b16 %v1595
        %v1676 = vunpack.c.h.b16 %v1595
        %v1677 = vunpack.c.l.b16 %v1596
        %v1678 = vunpack.c.h.b16 %v1596
        %v1679 = vunpack.c.l.b16 %v1597
        %v1680 = vunpack.c.h.b16 %v1597
        %v1681 = vunpack.c.l.b16 %v1598
        %v1682 = vunpack.c.h.b16 %v1598
        %v1683 = vunpack.c.l.b16 %v1599
        %v1684 = vunpack.c.h.b16 %v1599
        %v1685 = vunpack.c.l.b16 %v1600
        %v1686 = vunpack.c.h.b16 %v1600
        %v1687 = vunpack.c.l.b16 %v1601
        %v1688 = vunpack.c.h.b16 %v1601
        %v1689 = vunpack.c.l.b16 %v1602
        %v1690 = vunpack.c.h.b16 %v1602
        %v1691 = vunpack.c.l.b16 %v1603
        %v1692 = vunpack.c.h.b16 %v1603
        %v1693 = vunpack.c.l.b16 %v1604
        %v1694 = vunpack.c.h.b16 %v1604
        %v1695 = vunpack.c.l.b16 %v1605
        %v1696 = vunpack.c.h.b16 %v1605
        %v1697 = vunpack.c.l.b16 %v1606
        %v1698 = vunpack.c.h.b16 %v1606
        %v1699 = vunpack.c.l.b16 %v1607
        %v1700 = vunpack.c.h.b16 %v1607
        %v1701 = vunpack.c.l.b16 %v1608
        %v1702 = vunpack.c.h.b16 %v1608
        %v1703 = vunpack.c.l.b16 %v1609
        %v1704 = vunpack.c.h.b16 %v1609
        %v1705 = vunpack.c.l.b16 %v1610
        %v1706 = vunpack.c.h.b16 %v1610
        %v1707 = vunpack.c.l.b16 %v1611
        %v1708 = vunpack.c.h.b16 %v1611
        %v1709 = vunpack.c.l.b16 %v1612
        %v1710 = vunpack.c.h.b16 %v1612
        %v1711 = vunpack.c.l.b16 %v1613
        %v1712 = vunpack.c.h.b16 %v1613
        %v1713 = vunpack.c.l.b16 %v1614
        %v1714 = vunpack.c.h.b16 %v1614
        %v1715 = vunpack.c.l.b16 %v1615
        %v1716 = vunpack.c.h.b16 %v1615
        %v1717 = vunpack.c.l.b16 %v1616
        %v1718 = vunpack.c.h.b16 %v1616
        %v1719 = vunpack.c.l.b16 %v1617
        %v1720 = vunpack.c.h.b16 %v1617
        %v1721 = vunpack.c.l.b16 %v1618
        %v1722 = vunpack.c.h.b16 %v1618
        %v1723 = vunpack.c.l.b16 %v1619
        %v1724 = vunpack.c.h.b16 %v1619
        %v1725 = vunpack.c.l.b16 %v1620
        %v1726 = vunpack.c.h.b16 %v1620
        %v1727 = vunpack.c.l.b16 %v1621
        %v1728 = vunpack.c.h.b16 %v1621
        %v1729 = vunpack.c.l.b16 %v1622
        %v1730 = vunpack.c.h.b16 %v1622
        %v1731 = vpack.c.b16 %v1669, %v1667
        %v1732 = vpack.c.b16 %v1670, %v1668
        %v1733 = vpack.c.b16 %v1673, %v1671
        %v1734 = vpack.c.b16 %v1674, %v1672
        %v1735 = vpack.c.b16 %v1677, %v1675
        %v1736 = vpack.c.b16 %v1678, %v1676
        %v1737 = vpack.c.b16 %v1681, %v1679
        %v1738 = vpack.c.b16 %v1682, %v1680
        %v1739 = vpack.c.b16 %v1685, %v1683
        %v1740 = vpack.c.b16 %v1686, %v1684
        %v1741 = vpack.c.b16 %v1689, %v1687
        %v1742 = vpack.c.b16 %v1690, %v1688
        %v1743 = vpack.c.b16 %v1693, %v1691
        %v1744 = vpack.c.b16 %v1694, %v1692
        %v1745 = vpack.c.b16 %v1697, %v1695
        %v1746 = vpack.c.b16 %v1698, %v1696
        %v1747 = vpack.c.b16 %v1701, %v1699
        %v1748 = vpack.c.b16 %v1702, %v1700
        %v1749 = vpack.c.b16 %v1705, %v1703
        %v1750 = vpack.c.b16 %v1706, %v1704
        %v1751 = vpack.c.b16 %v1709, %v1707
        %v1752 = vpack.c.b16 %v1710, %v1708
        %v1753 = vpack.c.b16 %v1713, %v1711
        %v1754 = vpack.c.b16 %v1714, %v1712
        %v1755 = vpack.c.b16 %v1717, %v1715
        %v1756 = vpack.c.b16 %v1718, %v1716
        %v1757 = vpack.c.b16 %v1721, %v1719
        %v1758 = vpack.c.b16 %v1722, %v1720
        %v1759 = vpack.c.b16 %v1725, %v1723
        %v1760 = vpack.c.b16 %v1726, %v1724
        %v1761 = vpack.c.b16 %v1729, %v1727
        %v1762 = vpack.c.b16 %v1730, %v1728
        %1795 = vmatprep.subr.bf16.mxu0 %v1732
        %1796 = vmatpush1.bf16.msra.mxu0 %v1731
        %1797 = vmatprep.subr.bf16.mxu0 %v1734
        %1798 = vmatpush1.bf16.msra.mxu0 %v1733
        %1799 = vmatprep.subr.bf16.mxu0 %v1736
        %1800 = vmatpush1.bf16.msra.mxu0 %v1735
        %1801 = vmatprep.subr.bf16.mxu0 %v1738
        %1802 = vmatpush1.bf16.msra.mxu0 %v1737
        %1803 = vmatprep.subr.bf16.mxu0 %v1740
        %1804 = vmatpush1.bf16.msra.mxu0 %v1739
        %1805 = vmatprep.subr.bf16.mxu0 %v1742
        %1806 = vmatpush1.bf16.msra.mxu0 %v1741
        %1807 = vmatprep.subr.bf16.mxu0 %v1744
        %1808 = vmatpush1.bf16.msra.mxu0 %v1743
        %1809 = vmatprep.subr.bf16.mxu0 %v1746
        %1810 = vmatpush1.bf16.msra.mxu0 %v1745
        %1811 = vmatprep.subr.bf16.mxu0 %v1748
        %1812 = vmatpush1.bf16.msra.mxu0 %v1747
        %1813 = vmatprep.subr.bf16.mxu0 %v1750
        %1814 = vmatpush1.bf16.msra.mxu0 %v1749
        %1815 = vmatprep.subr.bf16.mxu0 %v1752
        %1816 = vmatpush1.bf16.msra.mxu0 %v1751
        %1817 = vmatprep.subr.bf16.mxu0 %v1754
        %1818 = vmatpush1.bf16.msra.mxu0 %v1753
        %1819 = vmatprep.subr.bf16.mxu0 %v1756
        %1820 = vmatpush1.bf16.msra.mxu0 %v1755
        %1821 = vmatprep.subr.bf16.mxu0 %v1758
        %1822 = vmatpush1.bf16.msra.mxu0 %v1757
        %1823 = vmatprep.subr.bf16.mxu0 %v1760
        %1824 = vmatpush1.bf16.msra.mxu0 %v1759
        %1825 = vmatprep.subr.bf16.mxu0 %v1762
        %1826 = vmatpush1.bf16.msra.mxu0 %v1761
        %1827 = vmatprep.mubr.bf16.mxu0 %v1576
        %1828 = vmatmul.mubr.bf16.gmra.mrb[0].mxu0 %v1575
        %v1829 = vpop.f32.mrb[0].mxu0
        %v1830 = vadd.f32 %v1628, %v1829
        %v1831 = vpop.f32.mrb[0].mxu0
        %v1832 = vadd.f32 %v1632, %v1831
        %v1833 = vpop.f32.mrb[0].mxu0
        %v1834 = vadd.f32 %v1628, %v1833
        %v1835 = vpop.f32.mrb[0].mxu0
        %v1836 = vadd.f32 %v1632, %v1835
        %1837 = vmatprep.mubr.bf16.mxu0 %v1578
        %1838 = vmatmul.mubr.bf16.gmra.mrb[0].mxu0 %v1577
        %v1839 = vpop.f32.mrb[0].mxu0
        %v1840 = vadd.f32 %v1628, %v1839
        %v1841 = vpop.f32.mrb[0].mxu0
        %v1842 = vadd.f32 %v1632, %v1841
        %v1843 = vpop.f32.mrb[0].mxu0
        %v1844 = vadd.f32 %v1628, %v1843
        %v1845 = vpop.f32.mrb[0].mxu0
        %v1846 = vadd.f32 %v1632, %v1845
        %1847 = vmatprep.mubr.bf16.mxu0 %v1580
        %1848 = vmatmul.mubr.bf16.gmra.mrb[0].mxu0 %v1579
        %v1849 = vpop.f32.mrb[0].mxu0
        %v1850 = vadd.f32 %v1628, %v1849
        %v1851 = vpop.f32.mrb[0].mxu0
        %v1852 = vadd.f32 %v1632, %v1851
        %v1853 = vpop.f32.mrb[0].mxu0
        %v1854 = vadd.f32 %v1628, %v1853
        %v1855 = vpop.f32.mrb[0].mxu0
        %v1856 = vadd.f32 %v1632, %v1855
        %1857 = vmatprep.mubr.bf16.mxu0 %v1582
        %1858 = vmatmul.mubr.bf16.gmra.mrb[0].mxu0 %v1581
        %v1859 = vpop.f32.mrb[0].mxu0
        %v1860 = vadd.f32 %v1628, %v1859
        %v1861 = vpop.f32.mrb[0].mxu0
        %v1862 = vadd.f32 %v1632, %v1861
        %v1863 = vpop.f32.mrb[0].mxu0
        %v1864 = vadd.f32 %v1628, %v1863
        %v1865 = vpop.f32.mrb[0].mxu0
        %v1866 = vadd.f32 %v1632, %v1865
        %1867 = vmatprep.mubr.bf16.mxu0 %v1584
        %1868 = vmatmul.mubr.bf16.gmra.mrb[0].mxu0 %v1583
        %v1869 = vpop.f32.mrb[0].mxu0
        %v1870 = vadd.f32 %v1628, %v1869
        %v1871 = vpop.f32.mrb[0].mxu0
        %v1872 = vadd.f32 %v1632, %v1871
        %v1873 = vpop.f32.mrb[0].mxu0
        %v1874 = vadd.f32 %v1628, %v1873
        %v1875 = vpop.f32.mrb[0].mxu0
        %v1876 = vadd.f32 %v1632, %v1875
        %1877 = vmatprep.mubr.bf16.mxu0 %v1586
        %1878 = vmatmul.mubr.bf16.gmra.mrb[0].mxu0 %v1585
        %v1879 = vpop.f32.mrb[0].mxu0
        %v1880 = vadd.f32 %v1628, %v1879
        %v1881 = vpop.f32.mrb[0].mxu0
        %v1882 = vadd.f32 %v1632, %v1881
        %v1883 = vpop.f32.mrb[0].mxu0
        %v1884 = vadd.f32 %v1628, %v1883
        %v1885 = vpop.f32.mrb[0].mxu0
        %v1886 = vadd.f32 %v1632, %v1885
        %1887 = vmatprep.mubr.bf16.mxu0 %v1588
        %1888 = vmatmul.mubr.bf16.gmra.mrb[0].mxu0 %v1587
        %v1889 = vpop.f32.mrb[0].mxu0
        %v1890 = vadd.f32 %v1628, %v1889
        %v1891 = vpop.f32.mrb[0].mxu0
        %v1892 = vadd.f32 %v1632, %v1891
        %v1893 = vpop.f32.mrb[0].mxu0
        %v1894 = vadd.f32 %v1628, %v1893
        %v1895 = vpop.f32.mrb[0].mxu0
        %v1896 = vadd.f32 %v1632, %v1895
        %1897 = vmatprep.mubr.bf16.mxu0 %v1590
        %1898 = vmatmul.mubr.bf16.gmra.mrb[0].mxu0 %v1589
        %v1899 = vpop.f32.mrb[0].mxu0
        %v1900 = vadd.f32 %v1628, %v1899
        %v1901 = vpop.f32.mrb[0].mxu0
        %v1902 = vadd.f32 %v1632, %v1901
        %v1903 = vpop.f32.mrb[0].mxu0
        %v1904 = vadd.f32 %v1628, %v1903
        %v1905 = vpop.f32.mrb[0].mxu0
        %v1906 = vadd.f32 %v1632, %v1905
        %1907 = vdwg.mxu0
        %v1908 = vmax.f32 %v1830, 0.0
        %v1909 = vmax.f32 %v1832, 0.0
        %v1910 = vmax.f32 %v1834, 0.0
        %v1911 = vmax.f32 %v1836, 0.0
        %v1912 = vmax.f32 %v1840, 0.0
        %v1913 = vmax.f32 %v1842, 0.0
        %v1914 = vmax.f32 %v1844, 0.0
        %v1915 = vmax.f32 %v1846, 0.0
        %v1916 = vmax.f32 %v1850, 0.0
        %v1917 = vmax.f32 %v1852, 0.0
        %v1918 = vmax.f32 %v1854, 0.0
        %v1919 = vmax.f32 %v1856, 0.0
        %v1920 = vmax.f32 %v1860, 0.0
        %v1921 = vmax.f32 %v1862, 0.0
        %v1922 = vmax.f32 %v1864, 0.0
        %v1923 = vmax.f32 %v1866, 0.0
        %v1924 = vmax.f32 %v1870, 0.0
        %v1925 = vmax.f32 %v1872, 0.0
        %v1926 = vmax.f32 %v1874, 0.0
        %v1927 = vmax.f32 %v1876, 0.0
        %v1928 = vmax.f32 %v1880, 0.0
        %v1929 = vmax.f32 %v1882, 0.0
        %v1930 = vmax.f32 %v1884, 0.0
        %v1931 = vmax.f32 %v1886, 0.0
        %v1932 = vmax.f32 %v1890, 0.0
        %v1933 = vmax.f32 %v1892, 0.0
        %v1934 = vmax.f32 %v1894, 0.0
        %v1935 = vmax.f32 %v1896, 0.0
        %v1936 = vmax.f32 %v1900, 0.0
        %v1937 = vmax.f32 %v1902, 0.0
        %v1938 = vmax.f32 %v1904, 0.0
        %v1939 = vmax.f32 %v1906, 0.0
        %v1940 = vpack.c.bf16 %v1910, %v1908
        %v1941 = vpack.c.bf16 %v1911, %v1909
        %v1942 = vpack.c.bf16 %v1914, %v1912
        %v1943 = vpack.c.bf16 %v1915, %v1913
        %v1944 = vpack.c.bf16 %v1918, %v1916
        %v1945 = vpack.c.bf16 %v1919, %v1917
        %v1946 = vpack.c.bf16 %v1922, %v1920
        %v1947 = vpack.c.bf16 %v1923, %v1921
        %v1948 = vpack.c.bf16 %v1926, %v1924
        %v1949 = vpack.c.bf16 %v1927, %v1925
        %v1950 = vpack.c.bf16 %v1930, %v1928
        %v1951 = vpack.c.bf16 %v1931, %v1929
        %v1952 = vpack.c.bf16 %v1934, %v1932
        %v1953 = vpack.c.bf16 %v1935, %v1933
        %v1954 = vpack.c.bf16 %v1938, %v1936
        %v1955 = vpack.c.bf16 %v1939, %v1937
        %v1956 = vld [vmem:[%s9] sm:$0xf]
        %v1957 = vld [vmem:[%s9 + $0x4] sm:$0xf]
        %v1958 = vld [vmem:[%s9 + $0x8] sm:$0xf]
        %v1959 = vld [vmem:[%s9 + $0xc] sm:$0xf]
        %v1960 = vld [vmem:[%s9 + $0x10] sm:$0xf]
        %v1961 = vld [vmem:[%s9 + $0x14] sm:$0xf]
        %v1962 = vld [vmem:[%s9 + $0x18] sm:$0xf]
        %v1963 = vld [vmem:[%s9 + $0x1c] sm:$0xf]
        %v1964 = vld [vmem:[%s9 + $0x20] sm:$0xf]
        %v1965 = vld [vmem:[%s9 + $0x24] sm:$0xf]
        %v1966 = vld [vmem:[%s9 + $0x28] sm:$0xf]
        %v1967 = vld [vmem:[%s9 + $0x2c] sm:$0xf]
        %v1968 = vld [vmem:[%s9 + $0x30] sm:$0xf]
        %v1969 = vld [vmem:[%s9 + $0x34] sm:$0xf]
        %v1970 = vld [vmem:[%s9 + $0x38] sm:$0xf]
        %v1971 = vld [vmem:[%s9 + $0x3c] sm:$0xf]
        %v1972 = vld [vmem:[%s9 + $0x40] sm:$0xf]
        %v1973 = vld [vmem:[%s9 + $0x44] sm:$0xf]
        %v1974 = vld [vmem:[%s9 + $0x48] sm:$0xf]
        %v1975 = vld [vmem:[%s9 + $0x4c] sm:$0xf]
        %v1976 = vld [vmem:[%s9 + $0x50] sm:$0xf]
        %v1977 = vld [vmem:[%s9 + $0x54] sm:$0xf]
        %v1978 = vld [vmem:[%s9 + $0x58] sm:$0xf]
        %v1979 = vld [vmem:[%s9 + $0x5c] sm:$0xf]
        %v1980 = vld [vmem:[%s9 + $0x60] sm:$0xf]
        %v1981 = vld [vmem:[%s9 + $0x64] sm:$0xf]
        %v1982 = vld [vmem:[%s9 + $0x68] sm:$0xf]
        %v1983 = vld [vmem:[%s9 + $0x6c] sm:$0xf]
        %v1984 = vld [vmem:[%s9 + $0x70] sm:$0xf]
        %v1985 = vld [vmem:[%s9 + $0x74] sm:$0xf]
        %v1986 = vld [vmem:[%s9 + $0x78] sm:$0xf]
        %v1987 = vld [vmem:[%s9 + $0x7c] sm:$0xf]
        %v1988 = vld [vmem:[#allocation2] sm:$0x1]
        %v1990 = vlaneseq
        %v1991 = vshrl.u32 %v1990, 7
        %v1992 = vsub.s32 0, %v1991
        %v1993 = vrot.slane %v1988, %v1992
        %v2027 = vunpack.c.l.b16 %v1956
        %v2028 = vunpack.c.l.b16 %v1957
        %v2029 = vunpack.c.l.b16 %v1958
        %v2030 = vunpack.c.l.b16 %v1959
        %v2031 = vunpack.c.l.b16 %v1960
        %v2032 = vunpack.c.l.b16 %v1961
        %v2033 = vunpack.c.l.b16 %v1962
        %v2034 = vunpack.c.l.b16 %v1963
        %v2035 = vunpack.c.l.b16 %v1964
        %v2036 = vunpack.c.l.b16 %v1965
        %v2037 = vunpack.c.l.b16 %v1966
        %v2038 = vunpack.c.l.b16 %v1967
        %v2039 = vunpack.c.l.b16 %v1968
        %v2040 = vunpack.c.l.b16 %v1969
        %v2041 = vunpack.c.l.b16 %v1970
        %v2042 = vunpack.c.l.b16 %v1971
        %v2043 = vunpack.c.l.b16 %v1972
        %v2044 = vunpack.c.l.b16 %v1973
        %v2045 = vunpack.c.l.b16 %v1974
        %v2046 = vunpack.c.l.b16 %v1975
        %v2047 = vunpack.c.l.b16 %v1976
        %v2048 = vunpack.c.l.b16 %v1977
        %v2049 = vunpack.c.l.b16 %v1978
        %v2050 = vunpack.c.l.b16 %v1979
        %v2051 = vunpack.c.l.b16 %v1980
        %v2052 = vunpack.c.l.b16 %v1981
        %v2053 = vunpack.c.l.b16 %v1982
        %v2054 = vunpack.c.l.b16 %v1983
        %v2055 = vunpack.c.l.b16 %v1984
        %v2056 = vunpack.c.l.b16 %v1985
        %v2057 = vunpack.c.l.b16 %v1986
        %v2058 = vunpack.c.l.b16 %v1987
        %v2059 = vpack.c.b16 %v2028, %v2027
        %v2060 = vpack.c.b16 %v2030, %v2029
        %v2061 = vpack.c.b16 %v2032, %v2031
        %v2062 = vpack.c.b16 %v2034, %v2033
        %v2063 = vpack.c.b16 %v2036, %v2035
        %v2064 = vpack.c.b16 %v2038, %v2037
        %v2065 = vpack.c.b16 %v2040, %v2039
        %v2066 = vpack.c.b16 %v2042, %v2041
        %v2067 = vpack.c.b16 %v2044, %v2043
        %v2068 = vpack.c.b16 %v2046, %v2045
        %v2069 = vpack.c.b16 %v2048, %v2047
        %v2070 = vpack.c.b16 %v2050, %v2049
        %v2071 = vpack.c.b16 %v2052, %v2051
        %v2072 = vpack.c.b16 %v2054, %v2053
        %v2073 = vpack.c.b16 %v2056, %v2055
        %v2074 = vpack.c.b16 %v2058, %v2057
        %2091 = vmatprep.subr.bf16.mxu0 0
        %2092 = vmatpush1.bf16.msra.mxu0 %v2059
        %2093 = vmatprep.subr.bf16.mxu0 0
        %2094 = vmatpush1.bf16.msra.mxu0 %v2060
        %2095 = vmatprep.subr.bf16.mxu0 0
        %2096 = vmatpush1.bf16.msra.mxu0 %v2061
        %2097 = vmatprep.subr.bf16.mxu0 0
        %2098 = vmatpush1.bf16.msra.mxu0 %v2062
        %2099 = vmatprep.subr.bf16.mxu0 0
        %2100 = vmatpush1.bf16.msra.mxu0 %v2063
        %2101 = vmatprep.subr.bf16.mxu0 0
        %2102 = vmatpush1.bf16.msra.mxu0 %v2064
        %2103 = vmatprep.subr.bf16.mxu0 0
        %2104 = vmatpush1.bf16.msra.mxu0 %v2065
        %2105 = vmatprep.subr.bf16.mxu0 0
        %2106 = vmatpush1.bf16.msra.mxu0 %v2066
        %2107 = vmatprep.subr.bf16.mxu0 0
        %2108 = vmatpush1.bf16.msra.mxu0 %v2067
        %2109 = vmatprep.subr.bf16.mxu0 0
        %2110 = vmatpush1.bf16.msra.mxu0 %v2068
        %2111 = vmatprep.subr.bf16.mxu0 0
        %2112 = vmatpush1.bf16.msra.mxu0 %v2069
        %2113 = vmatprep.subr.bf16.mxu0 0
        %2114 = vmatpush1.bf16.msra.mxu0 %v2070
        %2115 = vmatprep.subr.bf16.mxu0 0
        %2116 = vmatpush1.bf16.msra.mxu0 %v2071
        %2117 = vmatprep.subr.bf16.mxu0 0
        %2118 = vmatpush1.bf16.msra.mxu0 %v2072
        %2119 = vmatprep.subr.bf16.mxu0 0
        %2120 = vmatpush1.bf16.msra.mxu0 %v2073
        %2121 = vmatprep.subr.bf16.mxu0 0
        %2122 = vmatpush1.bf16.msra.mxu0 %v2074
        %2123 = vmatprep.mubr.bf16.mxu0 %v1941
        %2124 = vmatmul.mubr.bf16.gmra.mrb[0].mxu0 %v1940
        %v2125 = vpop.f32.mrb[0].mxu0
        %v2126 = vadd.f32 %v1993, %v2125
        %v2127 = vpop.f32.mrb[0].mxu0
        %v2128 = vpop.f32.mrb[0].mxu0
        %v2129 = vadd.f32 %v1993, %v2128
        %v2130 = vpop.f32.mrb[0].mxu0
        %2131 = vmatprep.mubr.bf16.mxu0 %v1943
        %2132 = vmatmul.mubr.bf16.gmra.mrb[0].mxu0 %v1942
        %v2133 = vpop.f32.mrb[0].mxu0
        %v2134 = vadd.f32 %v1993, %v2133
        %v2135 = vpop.f32.mrb[0].mxu0
        %v2136 = vpop.f32.mrb[0].mxu0
        %v2137 = vadd.f32 %v1993, %v2136
        %v2138 = vpop.f32.mrb[0].mxu0
        %2139 = vmatprep.mubr.bf16.mxu0 %v1945
        %2140 = vmatmul.mubr.bf16.gmra.mrb[0].mxu0 %v1944
        %v2141 = vpop.f32.mrb[0].mxu0
        %v2142 = vadd.f32 %v1993, %v2141
        %v2143 = vpop.f32.mrb[0].mxu0
        %v2144 = vpop.f32.mrb[0].mxu0
        %v2145 = vadd.f32 %v1993, %v2144
        %v2146 = vpop.f32.mrb[0].mxu0
        %2147 = vmatprep.mubr.bf16.mxu0 %v1947
        %2148 = vmatmul.mubr.bf16.gmra.mrb[0].mxu0 %v1946
        %v2149 = vpop.f32.mrb[0].mxu0
        %v2150 = vadd.f32 %v1993, %v2149
        %v2151 = vpop.f32.mrb[0].mxu0
        %v2152 = vpop.f32.mrb[0].mxu0
        %v2153 = vadd.f32 %v1993, %v2152
        %v2154 = vpop.f32.mrb[0].mxu0
        %2155 = vmatprep.mubr.bf16.mxu0 %v1949
        %2156 = vmatmul.mubr.bf16.gmra.mrb[0].mxu0 %v1948
        %v2157 = vpop.f32.mrb[0].mxu0
        %v2158 = vadd.f32 %v1993, %v2157
        %v2159 = vpop.f32.mrb[0].mxu0
        %v2160 = vpop.f32.mrb[0].mxu0
        %v2161 = vadd.f32 %v1993, %v2160
        %v2162 = vpop.f32.mrb[0].mxu0
        %2163 = vmatprep.mubr.bf16.mxu0 %v1951
        %2164 = vmatmul.mubr.bf16.gmra.mrb[0].mxu0 %v1950
        %v2165 = vpop.f32.mrb[0].mxu0
        %v2166 = vadd.f32 %v1993, %v2165
        %v2167 = vpop.f32.mrb[0].mxu0
        %v2168 = vpop.f32.mrb[0].mxu0
        %v2169 = vadd.f32 %v1993, %v2168
        %v2170 = vpop.f32.mrb[0].mxu0
        %2171 = vmatprep.mubr.bf16.mxu0 %v1953
        %2172 = vmatmul.mubr.bf16.gmra.mrb[0].mxu0 %v1952
        %v2173 = vpop.f32.mrb[0].mxu0
        %v2174 = vadd.f32 %v1993, %v2173
        %v2175 = vpop.f32.mrb[0].mxu0
        %v2176 = vpop.f32.mrb[0].mxu0
        %v2177 = vadd.f32 %v1993, %v2176
        %v2178 = vpop.f32.mrb[0].mxu0
        %2179 = vmatprep.mubr.bf16.mxu0 %v1955
        %2180 = vmatmul.mubr.bf16.gmra.mrb[0].mxu0 %v1954
        %v2181 = vpop.f32.mrb[0].mxu0
        %v2182 = vadd.f32 %v1993, %v2181
        %v2183 = vpop.f32.mrb[0].mxu0
        %v2184 = vpop.f32.mrb[0].mxu0
        %v2185 = vadd.f32 %v1993, %v2184
        %v2186 = vpop.f32.mrb[0].mxu0
        %2187 = vdwg.mxu0
        %v2188 = vld [vmem:[#allocation7] sm:$0xff]
        %v2189 = vld [vmem:[#allocation7 + $0x8] sm:$0xff]
        %v2190 = vld [vmem:[#allocation7 + $0x10] sm:$0xff]
        %v2191 = vld [vmem:[#allocation7 + $0x18] sm:$0xff]
        %v2192 = vld [vmem:[#allocation7 + $0x20] sm:$0xff]
        %v2193 = vld [vmem:[#allocation7 + $0x28] sm:$0xff]
        %v2194 = vld [vmem:[#allocation7 + $0x30] sm:$0xff]
        %v2195 = vld [vmem:[#allocation7 + $0x38] sm:$0xff]
        %v2196 = vld [vmem:[#allocation7 + $0x40] sm:$0xff]
        %v2197 = vld [vmem:[#allocation7 + $0x48] sm:$0xff]
        %v2198 = vld [vmem:[#allocation7 + $0x50] sm:$0xff]
        %v2199 = vld [vmem:[#allocation7 + $0x58] sm:$0xff]
        %v2200 = vld [vmem:[#allocation7 + $0x60] sm:$0xff]
        %v2201 = vld [vmem:[#allocation7 + $0x68] sm:$0xff]
        %v2202 = vld [vmem:[#allocation7 + $0x70] sm:$0xff]
        %v2203 = vld [vmem:[#allocation7 + $0x78] sm:$0xff]
        %v2204 = vld [vmem:[#allocation7 + $0x80] sm:$0xff]
        %v2205 = vld [vmem:[#allocation7 + $0x88] sm:$0xff]
        %v2206 = vld [vmem:[#allocation7 + $0x90] sm:$0xff]
        %v2207 = vld [vmem:[#allocation7 + $0x98] sm:$0xff]
        %v2208 = vld [vmem:[#allocation7 + $0xa0] sm:$0xff]
        %v2209 = vld [vmem:[#allocation7 + $0xa8] sm:$0xff]
        %v2210 = vld [vmem:[#allocation7 + $0xb0] sm:$0xff]
        %v2211 = vld [vmem:[#allocation7 + $0xb8] sm:$0xff]
        %v2212 = vld [vmem:[#allocation7 + $0xc0] sm:$0xff]
        %v2213 = vld [vmem:[#allocation7 + $0xc8] sm:$0xff]
        %v2214 = vld [vmem:[#allocation7 + $0xd0] sm:$0xff]
        %v2215 = vld [vmem:[#allocation7 + $0xd8] sm:$0xff]
        %v2216 = vld [vmem:[#allocation7 + $0xe0] sm:$0xff]
        %v2217 = vld [vmem:[#allocation7 + $0xe8] sm:$0xff]
        %v2218 = vld [vmem:[#allocation7 + $0xf0] sm:$0xff]
        %v2219 = vld [vmem:[#allocation7 + $0xf8] sm:$0xff]
        %v2220 = vld [vmem:[%s12] sm:$0x3]
        %v2222 = vlaneseq
        %v2223 = vshrl.u32 %v2222, 7
        %v2224 = vsub.s32 0, %v2223
        %v2225 = vrot.slane %v2220, %v2224
        %v2226 = vlaneseq
        %v2227 = vshrl.u32 %v2226, 7
        %v2228 = vsub.s32 1, %v2227
        %v2229 = vrot.slane %v2220, %v2228
        %v2264 = vunpack.c.l.b16 %v2188
        %v2265 = vunpack.c.h.b16 %v2188
        %v2266 = vunpack.c.l.b16 %v2189
        %v2267 = vunpack.c.h.b16 %v2189
        %v2268 = vunpack.c.l.b16 %v2190
        %v2269 = vunpack.c.h.b16 %v2190
        %v2270 = vunpack.c.l.b16 %v2191
        %v2271 = vunpack.c.h.b16 %v2191
        %v2272 = vunpack.c.l.b16 %v2192
        %v2273 = vunpack.c.h.b16 %v2192
        %v2274 = vunpack.c.l.b16 %v2193
        %v2275 = vunpack.c.h.b16 %v2193
        %v2276 = vunpack.c.l.b16 %v2194
        %v2277 = vunpack.c.h.b16 %v2194
        %v2278 = vunpack.c.l.b16 %v2195
        %v2279 = vunpack.c.h.b16 %v2195
        %v2280 = vunpack.c.l.b16 %v2196
        %v2281 = vunpack.c.h.b16 %v2196
        %v2282 = vunpack.c.l.b16 %v2197
        %v2283 = vunpack.c.h.b16 %v2197
        %v2284 = vunpack.c.l.b16 %v2198
        %v2285 = vunpack.c.h.b16 %v2198
        %v2286 = vunpack.c.l.b16 %v2199
        %v2287 = vunpack.c.h.b16 %v2199
        %v2288 = vunpack.c.l.b16 %v2200
        %v2289 = vunpack.c.h.b16 %v2200
        %v2290 = vunpack.c.l.b16 %v2201
        %v2291 = vunpack.c.h.b16 %v2201
        %v2292 = vunpack.c.l.b16 %v2202
        %v2293 = vunpack.c.h.b16 %v2202
        %v2294 = vunpack.c.l.b16 %v2203
        %v2295 = vunpack.c.h.b16 %v2203
        %v2296 = vunpack.c.l.b16 %v2204
        %v2297 = vunpack.c.h.b16 %v2204
        %v2298 = vunpack.c.l.b16 %v2205
        %v2299 = vunpack.c.h.b16 %v2205
        %v2300 = vunpack.c.l.b16 %v2206
        %v2301 = vunpack.c.h.b16 %v2206
        %v2302 = vunpack.c.l.b16 %v2207
        %v2303 = vunpack.c.h.b16 %v2207
        %v2304 = vunpack.c.l.b16 %v2208
        %v2305 = vunpack.c.h.b16 %v2208
        %v2306 = vunpack.c.l.b16 %v2209
        %v2307 = vunpack.c.h.b16 %v2209
        %v2308 = vunpack.c.l.b16 %v2210
        %v2309 = vunpack.c.h.b16 %v2210
        %v2310 = vunpack.c.l.b16 %v2211
        %v2311 = vunpack.c.h.b16 %v2211
        %v2312 = vunpack.c.l.b16 %v2212
        %v2313 = vunpack.c.h.b16 %v2212
        %v2314 = vunpack.c.l.b16 %v2213
        %v2315 = vunpack.c.h.b16 %v2213
        %v2316 = vunpack.c.l.b16 %v2214
        %v2317 = vunpack.c.h.b16 %v2214
        %v2318 = vunpack.c.l.b16 %v2215
        %v2319 = vunpack.c.h.b16 %v2215
        %v2320 = vunpack.c.l.b16 %v2216
        %v2321 = vunpack.c.h.b16 %v2216
        %v2322 = vunpack.c.l.b16 %v2217
        %v2323 = vunpack.c.h.b16 %v2217
        %v2324 = vunpack.c.l.b16 %v2218
        %v2325 = vunpack.c.h.b16 %v2218
        %v2326 = vunpack.c.l.b16 %v2219
        %v2327 = vunpack.c.h.b16 %v2219
        %v2328 = vpack.c.b16 %v2266, %v2264
        %v2329 = vpack.c.b16 %v2267, %v2265
        %v2330 = vpack.c.b16 %v2270, %v2268
        %v2331 = vpack.c.b16 %v2271, %v2269
        %v2332 = vpack.c.b16 %v2274, %v2272
        %v2333 = vpack.c.b16 %v2275, %v2273
        %v2334 = vpack.c.b16 %v2278, %v2276
        %v2335 = vpack.c.b16 %v2279, %v2277
        %v2336 = vpack.c.b16 %v2282, %v2280
        %v2337 = vpack.c.b16 %v2283, %v2281
        %v2338 = vpack.c.b16 %v2286, %v2284
        %v2339 = vpack.c.b16 %v2287, %v2285
        %v2340 = vpack.c.b16 %v2290, %v2288
        %v2341 = vpack.c.b16 %v2291, %v2289
        %v2342 = vpack.c.b16 %v2294, %v2292
        %v2343 = vpack.c.b16 %v2295, %v2293
        %v2344 = vpack.c.b16 %v2298, %v2296
        %v2345 = vpack.c.b16 %v2299, %v2297
        %v2346 = vpack.c.b16 %v2302, %v2300
        %v2347 = vpack.c.b16 %v2303, %v2301
        %v2348 = vpack.c.b16 %v2306, %v2304
        %v2349 = vpack.c.b16 %v2307, %v2305
        %v2350 = vpack.c.b16 %v2310, %v2308
        %v2351 = vpack.c.b16 %v2311, %v2309
        %v2352 = vpack.c.b16 %v2314, %v2312
        %v2353 = vpack.c.b16 %v2315, %v2313
        %v2354 = vpack.c.b16 %v2318, %v2316
        %v2355 = vpack.c.b16 %v2319, %v2317
        %v2356 = vpack.c.b16 %v2322, %v2320
        %v2357 = vpack.c.b16 %v2323, %v2321
        %v2358 = vpack.c.b16 %v2326, %v2324
        %v2359 = vpack.c.b16 %v2327, %v2325
        %2392 = vmatprep.subr.bf16.mxu0 %v2329
        %2393 = vmatpush1.bf16.msra.mxu0 %v2328
        %2394 = vmatprep.subr.bf16.mxu0 %v2331
        %2395 = vmatpush1.bf16.msra.mxu0 %v2330
        %2396 = vmatprep.subr.bf16.mxu0 %v2333
        %2397 = vmatpush1.bf16.msra.mxu0 %v2332
        %2398 = vmatprep.subr.bf16.mxu0 %v2335
        %2399 = vmatpush1.bf16.msra.mxu0 %v2334
        %2400 = vmatprep.subr.bf16.mxu0 %v2337
        %2401 = vmatpush1.bf16.msra.mxu0 %v2336
        %2402 = vmatprep.subr.bf16.mxu0 %v2339
        %2403 = vmatpush1.bf16.msra.mxu0 %v2338
        %2404 = vmatprep.subr.bf16.mxu0 %v2341
        %2405 = vmatpush1.bf16.msra.mxu0 %v2340
        %2406 = vmatprep.subr.bf16.mxu0 %v2343
        %2407 = vmatpush1.bf16.msra.mxu0 %v2342
        %2408 = vmatprep.subr.bf16.mxu0 %v2345
        %2409 = vmatpush1.bf16.msra.mxu0 %v2344
        %2410 = vmatprep.subr.bf16.mxu0 %v2347
        %2411 = vmatpush1.bf16.msra.mxu0 %v2346
        %2412 = vmatprep.subr.bf16.mxu0 %v2349
        %2413 = vmatpush1.bf16.msra.mxu0 %v2348
        %2414 = vmatprep.subr.bf16.mxu0 %v2351
        %2415 = vmatpush1.bf16.msra.mxu0 %v2350
        %2416 = vmatprep.subr.bf16.mxu0 %v2353
        %2417 = vmatpush1.bf16.msra.mxu0 %v2352
        %2418 = vmatprep.subr.bf16.mxu0 %v2355
        %2419 = vmatpush1.bf16.msra.mxu0 %v2354
        %2420 = vmatprep.subr.bf16.mxu0 %v2357
        %2421 = vmatpush1.bf16.msra.mxu0 %v2356
        %2422 = vmatprep.subr.bf16.mxu0 %v2359
        %2423 = vmatpush1.bf16.msra.mxu0 %v2358
        %2424 = vmatprep.mubr.bf16.mxu0 %v1941
        %2425 = vmatmul.mubr.bf16.gmra.mrb[0].mxu0 %v1940
        %v2426 = vpop.f32.mrb[0].mxu0
        %v2427 = vadd.f32 %v2225, %v2426
        %v2428 = vpop.f32.mrb[0].mxu0
        %v2429 = vadd.f32 %v2229, %v2428
        %v2430 = vpop.f32.mrb[0].mxu0
        %v2431 = vadd.f32 %v2225, %v2430
        %v2432 = vpop.f32.mrb[0].mxu0
        %v2433 = vadd.f32 %v2229, %v2432
        %2434 = vmatprep.mubr.bf16.mxu0 %v1943
        %2435 = vmatmul.mubr.bf16.gmra.mrb[0].mxu0 %v1942
        %v2436 = vpop.f32.mrb[0].mxu0
        %v2437 = vadd.f32 %v2225, %v2436
        %v2438 = vpop.f32.mrb[0].mxu0
        %v2439 = vadd.f32 %v2229, %v2438
        %v2440 = vpop.f32.mrb[0].mxu0
        %v2441 = vadd.f32 %v2225, %v2440
        %v2442 = vpop.f32.mrb[0].mxu0
        %v2443 = vadd.f32 %v2229, %v2442
        %2444 = vmatprep.mubr.bf16.mxu0 %v1945
        %2445 = vmatmul.mubr.bf16.gmra.mrb[0].mxu0 %v1944
        %v2446 = vpop.f32.mrb[0].mxu0
        %v2447 = vadd.f32 %v2225, %v2446
        %v2448 = vpop.f32.mrb[0].mxu0
        %v2449 = vadd.f32 %v2229, %v2448
        %v2450 = vpop.f32.mrb[0].mxu0
        %v2451 = vadd.f32 %v2225, %v2450
        %v2452 = vpop.f32.mrb[0].mxu0
        %v2453 = vadd.f32 %v2229, %v2452
        %2454 = vmatprep.mubr.bf16.mxu0 %v1947
        %2455 = vmatmul.mubr.bf16.gmra.mrb[0].mxu0 %v1946
        %v2456 = vpop.f32.mrb[0].mxu0
        %v2457 = vadd.f32 %v2225, %v2456
        %v2458 = vpop.f32.mrb[0].mxu0
        %v2459 = vadd.f32 %v2229, %v2458
        %v2460 = vpop.f32.mrb[0].mxu0
        %v2461 = vadd.f32 %v2225, %v2460
        %v2462 = vpop.f32.mrb[0].mxu0
        %v2463 = vadd.f32 %v2229, %v2462
        %2464 = vmatprep.mubr.bf16.mxu0 %v1949
        %2465 = vmatmul.mubr.bf16.gmra.mrb[0].mxu0 %v1948
        %v2466 = vpop.f32.mrb[0].mxu0
        %v2467 = vadd.f32 %v2225, %v2466
        %v2468 = vpop.f32.mrb[0].mxu0
        %v2469 = vadd.f32 %v2229, %v2468
        %v2470 = vpop.f32.mrb[0].mxu0
        %v2471 = vadd.f32 %v2225, %v2470
        %v2472 = vpop.f32.mrb[0].mxu0
        %v2473 = vadd.f32 %v2229, %v2472
        %2474 = vmatprep.mubr.bf16.mxu0 %v1951
        %2475 = vmatmul.mubr.bf16.gmra.mrb[0].mxu0 %v1950
        %v2476 = vpop.f32.mrb[0].mxu0
        %v2477 = vadd.f32 %v2225, %v2476
        %v2478 = vpop.f32.mrb[0].mxu0
        %v2479 = vadd.f32 %v2229, %v2478
        %v2480 = vpop.f32.mrb[0].mxu0
        %v2481 = vadd.f32 %v2225, %v2480
        %v2482 = vpop.f32.mrb[0].mxu0
        %v2483 = vadd.f32 %v2229, %v2482
        %2484 = vmatprep.mubr.bf16.mxu0 %v1953
        %2485 = vmatmul.mubr.bf16.gmra.mrb[0].mxu0 %v1952
        %v2486 = vpop.f32.mrb[0].mxu0
        %v2487 = vadd.f32 %v2225, %v2486
        %v2488 = vpop.f32.mrb[0].mxu0
        %v2489 = vadd.f32 %v2229, %v2488
        %v2490 = vpop.f32.mrb[0].mxu0
        %v2491 = vadd.f32 %v2225, %v2490
        %v2492 = vpop.f32.mrb[0].mxu0
        %v2493 = vadd.f32 %v2229, %v2492
        %2494 = vmatprep.mubr.bf16.mxu0 %v1955
        %2495 = vmatmul.mubr.bf16.gmra.mrb[0].mxu0 %v1954
        %v2496 = vpop.f32.mrb[0].mxu0
        %v2497 = vadd.f32 %v2225, %v2496
        %v2498 = vpop.f32.mrb[0].mxu0
        %v2499 = vadd.f32 %v2229, %v2498
        %v2500 = vpop.f32.mrb[0].mxu0
        %v2501 = vadd.f32 %v2225, %v2500
        %v2502 = vpop.f32.mrb[0].mxu0
        %v2503 = vadd.f32 %v2229, %v2502
        %2504 = vdwg.mxu0
        %v2505 = vpack.c.bf16 %v2431, %v2427
        %v2506 = vpack.c.bf16 %v2433, %v2429
        %v2507 = vpack.c.bf16 %v2441, %v2437
        %v2508 = vpack.c.bf16 %v2443, %v2439
        %v2509 = vpack.c.bf16 %v2451, %v2447
        %v2510 = vpack.c.bf16 %v2453, %v2449
        %v2511 = vpack.c.bf16 %v2461, %v2457
        %v2512 = vpack.c.bf16 %v2463, %v2459
        %v2513 = vpack.c.bf16 %v2471, %v2467
        %v2514 = vpack.c.bf16 %v2473, %v2469
        %v2515 = vpack.c.bf16 %v2481, %v2477
        %v2516 = vpack.c.bf16 %v2483, %v2479
        %v2517 = vpack.c.bf16 %v2491, %v2487
        %v2518 = vpack.c.bf16 %v2493, %v2489
        %v2519 = vpack.c.bf16 %v2501, %v2497
        %v2520 = vpack.c.bf16 %v2503, %v2499
        %v2521 = vld [vmem:[%s13] sm:$0xf]
        %v2522 = vld [vmem:[%s13 + $0x4] sm:$0xf]
        %v2523 = vld [vmem:[%s13 + $0x8] sm:$0xf]
        %v2524 = vld [vmem:[%s13 + $0xc] sm:$0xf]
        %v2525 = vld [vmem:[%s13 + $0x10] sm:$0xf]
        %v2526 = vld [vmem:[%s13 + $0x14] sm:$0xf]
        %v2527 = vld [vmem:[%s13 + $0x18] sm:$0xf]
        %v2528 = vld [vmem:[%s13 + $0x1c] sm:$0xf]
        %v2529 = vld [vmem:[%s13 + $0x20] sm:$0xf]
        %v2530 = vld [vmem:[%s13 + $0x24] sm:$0xf]
        %v2531 = vld [vmem:[%s13 + $0x28] sm:$0xf]
        %v2532 = vld [vmem:[%s13 + $0x2c] sm:$0xf]
        %v2533 = vld [vmem:[%s13 + $0x30] sm:$0xf]
        %v2534 = vld [vmem:[%s13 + $0x34] sm:$0xf]
        %v2535 = vld [vmem:[%s13 + $0x38] sm:$0xf]
        %v2536 = vld [vmem:[%s13 + $0x3c] sm:$0xf]
        %v2537 = vld [vmem:[%s13 + $0x40] sm:$0xf]
        %v2538 = vld [vmem:[%s13 + $0x44] sm:$0xf]
        %v2539 = vld [vmem:[%s13 + $0x48] sm:$0xf]
        %v2540 = vld [vmem:[%s13 + $0x4c] sm:$0xf]
        %v2541 = vld [vmem:[%s13 + $0x50] sm:$0xf]
        %v2542 = vld [vmem:[%s13 + $0x54] sm:$0xf]
        %v2543 = vld [vmem:[%s13 + $0x58] sm:$0xf]
        %v2544 = vld [vmem:[%s13 + $0x5c] sm:$0xf]
        %v2545 = vld [vmem:[%s13 + $0x60] sm:$0xf]
        %v2546 = vld [vmem:[%s13 + $0x64] sm:$0xf]
        %v2547 = vld [vmem:[%s13 + $0x68] sm:$0xf]
        %v2548 = vld [vmem:[%s13 + $0x6c] sm:$0xf]
        %v2549 = vld [vmem:[%s13 + $0x70] sm:$0xf]
        %v2550 = vld [vmem:[%s13 + $0x74] sm:$0xf]
        %v2551 = vld [vmem:[%s13 + $0x78] sm:$0xf]
        %v2552 = vld [vmem:[%s13 + $0x7c] sm:$0xf]
        %v2553 = vld [vmem:[%s14] sm:$0x7]
        %v2555 = vsel %vm693, %v2553, 0
        %2557 = vmatprep.subr.bf16.mxu0 0
        %2558 = vmatpush1.bf16.msra.mxu0 %v2555
        %2559 = vmatprep.subr.bf16.mxu0 0
        %2560 = vmatpush1.bf16.msra.mxu0 0
        %2561 = vmatprep.subr.bf16.mxu0 0
        %2562 = vmatpush1.bf16.msra.mxu0 0
        %2563 = vmatprep.subr.bf16.mxu0 0
        %2564 = vmatpush1.bf16.msra.mxu0 0
        %2565 = vmatprep.subr.bf16.mxu0 0
        %2566 = vmatpush1.bf16.msra.mxu0 0
        %2567 = vmatprep.subr.bf16.mxu0 0
        %2568 = vmatpush1.bf16.msra.mxu0 0
        %2569 = vmatprep.subr.bf16.mxu0 0
        %2570 = vmatpush1.bf16.msra.mxu0 0
        %2571 = vmatprep.subr.bf16.mxu0 0
        %2572 = vmatpush1.bf16.msra.mxu0 0
        %2573 = vmatprep.subr.bf16.mxu0 0
        %2574 = vmatpush1.bf16.msra.mxu0 0
        %2575 = vmatprep.subr.bf16.mxu0 0
        %2576 = vmatpush1.bf16.msra.mxu0 0
        %2577 = vmatprep.subr.bf16.mxu0 0
        %2578 = vmatpush1.bf16.msra.mxu0 0
        %2579 = vmatprep.subr.bf16.mxu0 0
        %2580 = vmatpush1.bf16.msra.mxu0 0
        %2581 = vmatprep.subr.bf16.mxu0 0
        %2582 = vmatpush1.bf16.msra.mxu0 0
        %2583 = vmatprep.subr.bf16.mxu0 0
        %2584 = vmatpush1.bf16.msra.mxu0 0
        %2585 = vmatprep.subr.bf16.mxu0 0
        %2586 = vmatpush1.bf16.msra.mxu0 0
        %2587 = vmatprep.subr.bf16.mxu0 0
        %2588 = vmatpush1.bf16.msra.mxu0 0
        %2589 = vmatprep.mubr.bf16.mxu0 0
        %2590 = vmatmul.mubr.bf16.gmra.mrb[0].mxu0 %v670
        %v2591 = vpop.f32.mrb[0].mxu0
        %v2592 = vadd.f32 0.0, %v2591
        %v2593 = vpop.f32.mrb[0].mxu0
        %v2594 = vpop.f32.mrb[0].mxu0
        %v2595 = vadd.f32 0.0, %v2594
        %v2596 = vpop.f32.mrb[0].mxu0
        %2597 = vmatprep.mubr.bf16.mxu0 0
        %2598 = vmatmul.mubr.bf16.gmra.mrb[0].mxu0 %v673
        %v2599 = vpop.f32.mrb[0].mxu0
        %v2600 = vadd.f32 0.0, %v2599
        %v2601 = vpop.f32.mrb[0].mxu0
        %v2602 = vpop.f32.mrb[0].mxu0
        %v2603 = vadd.f32 0.0, %v2602
        %v2604 = vpop.f32.mrb[0].mxu0
        %2605 = vmatprep.mubr.bf16.mxu0 0
        %2606 = vmatmul.mubr.bf16.gmra.mrb[0].mxu0 %v676
        %v2607 = vpop.f32.mrb[0].mxu0
        %v2608 = vadd.f32 0.0, %v2607
        %v2609 = vpop.f32.mrb[0].mxu0
        %v2610 = vpop.f32.mrb[0].mxu0
        %v2611 = vadd.f32 0.0, %v2610
        %v2612 = vpop.f32.mrb[0].mxu0
        %2613 = vmatprep.mubr.bf16.mxu0 0
        %2614 = vmatmul.mubr.bf16.gmra.mrb[0].mxu0 %v679
        %v2615 = vpop.f32.mrb[0].mxu0
        %v2616 = vadd.f32 0.0, %v2615
        %v2617 = vpop.f32.mrb[0].mxu0
        %v2618 = vpop.f32.mrb[0].mxu0
        %v2619 = vadd.f32 0.0, %v2618
        %v2620 = vpop.f32.mrb[0].mxu0
        %2621 = vmatprep.mubr.bf16.mxu0 0
        %2622 = vmatmul.mubr.bf16.gmra.mrb[0].mxu0 %v682
        %v2623 = vpop.f32.mrb[0].mxu0
        %v2624 = vadd.f32 0.0, %v2623
        %v2625 = vpop.f32.mrb[0].mxu0
        %v2626 = vpop.f32.mrb[0].mxu0
        %v2627 = vadd.f32 0.0, %v2626
        %v2628 = vpop.f32.mrb[0].mxu0
        %2629 = vmatprep.mubr.bf16.mxu0 0
        %2630 = vmatmul.mubr.bf16.gmra.mrb[0].mxu0 %v685
        %v2631 = vpop.f32.mrb[0].mxu0
        %v2632 = vadd.f32 0.0, %v2631
        %v2633 = vpop.f32.mrb[0].mxu0
        %v2634 = vpop.f32.mrb[0].mxu0
        %v2635 = vadd.f32 0.0, %v2634
        %v2636 = vpop.f32.mrb[0].mxu0
        %2637 = vmatprep.mubr.bf16.mxu0 0
        %2638 = vmatmul.mubr.bf16.gmra.mrb[0].mxu0 %v688
        %v2639 = vpop.f32.mrb[0].mxu0
        %v2640 = vadd.f32 0.0, %v2639
        %v2641 = vpop.f32.mrb[0].mxu0
        %v2642 = vpop.f32.mrb[0].mxu0
        %v2643 = vadd.f32 0.0, %v2642
        %v2644 = vpop.f32.mrb[0].mxu0
        %2645 = vmatprep.mubr.bf16.mxu0 0
        %2646 = vmatmul.mubr.bf16.gmra.mrb[0].mxu0 %v691
        %v2647 = vpop.f32.mrb[0].mxu0
        %v2648 = vadd.f32 0.0, %v2647
        %v2649 = vpop.f32.mrb[0].mxu0
        %v2650 = vpop.f32.mrb[0].mxu0
        %v2651 = vadd.f32 0.0, %v2650
        %v2652 = vpop.f32.mrb[0].mxu0
        %2653 = vdwg.mxu0
        %v2686 = vunpack.c.l.b16 %v2521
        %v2687 = vunpack.c.l.b16 %v2522
        %v2688 = vunpack.c.l.b16 %v2523
        %v2689 = vunpack.c.l.b16 %v2524
        %v2690 = vunpack.c.l.b16 %v2525
        %v2691 = vunpack.c.l.b16 %v2526
        %v2692 = vunpack.c.l.b16 %v2527
        %v2693 = vunpack.c.l.b16 %v2528
        %v2694 = vunpack.c.l.b16 %v2529
        %v2695 = vunpack.c.l.b16 %v2530
        %v2696 = vunpack.c.l.b16 %v2531
        %v2697 = vunpack.c.l.b16 %v2532
        %v2698 = vunpack.c.l.b16 %v2533
        %v2699 = vunpack.c.l.b16 %v2534
        %v2700 = vunpack.c.l.b16 %v2535
        %v2701 = vunpack.c.l.b16 %v2536
        %v2702 = vunpack.c.l.b16 %v2537
        %v2703 = vunpack.c.l.b16 %v2538
        %v2704 = vunpack.c.l.b16 %v2539
        %v2705 = vunpack.c.l.b16 %v2540
        %v2706 = vunpack.c.l.b16 %v2541
        %v2707 = vunpack.c.l.b16 %v2542
        %v2708 = vunpack.c.l.b16 %v2543
        %v2709 = vunpack.c.l.b16 %v2544
        %v2710 = vunpack.c.l.b16 %v2545
        %v2711 = vunpack.c.l.b16 %v2546
        %v2712 = vunpack.c.l.b16 %v2547
        %v2713 = vunpack.c.l.b16 %v2548
        %v2714 = vunpack.c.l.b16 %v2549
        %v2715 = vunpack.c.l.b16 %v2550
        %v2716 = vunpack.c.l.b16 %v2551
        %v2717 = vunpack.c.l.b16 %v2552
        %v2718 = vpack.c.b16 %v2687, %v2686
        %v2719 = vpack.c.b16 %v2689, %v2688
        %v2720 = vpack.c.b16 %v2691, %v2690
        %v2721 = vpack.c.b16 %v2693, %v2692
        %v2722 = vpack.c.b16 %v2695, %v2694
        %v2723 = vpack.c.b16 %v2697, %v2696
        %v2724 = vpack.c.b16 %v2699, %v2698
        %v2725 = vpack.c.b16 %v2701, %v2700
        %v2726 = vpack.c.b16 %v2703, %v2702
        %v2727 = vpack.c.b16 %v2705, %v2704
        %v2728 = vpack.c.b16 %v2707, %v2706
        %v2729 = vpack.c.b16 %v2709, %v2708
        %v2730 = vpack.c.b16 %v2711, %v2710
        %v2731 = vpack.c.b16 %v2713, %v2712
        %v2732 = vpack.c.b16 %v2715, %v2714
        %v2733 = vpack.c.b16 %v2717, %v2716
        %2750 = vmatprep.subr.bf16.mxu0 0
        %2751 = vmatpush1.bf16.msra.mxu0 %v2718
        %2752 = vmatprep.subr.bf16.mxu0 0
        %2753 = vmatpush1.bf16.msra.mxu0 %v2719
        %2754 = vmatprep.subr.bf16.mxu0 0
        %2755 = vmatpush1.bf16.msra.mxu0 %v2720
        %2756 = vmatprep.subr.bf16.mxu0 0
        %2757 = vmatpush1.bf16.msra.mxu0 %v2721
        %2758 = vmatprep.subr.bf16.mxu0 0
        %2759 = vmatpush1.bf16.msra.mxu0 %v2722
        %2760 = vmatprep.subr.bf16.mxu0 0
        %2761 = vmatpush1.bf16.msra.mxu0 %v2723
        %2762 = vmatprep.subr.bf16.mxu0 0
        %2763 = vmatpush1.bf16.msra.mxu0 %v2724
        %2764 = vmatprep.subr.bf16.mxu0 0
        %2765 = vmatpush1.bf16.msra.mxu0 %v2725
        %2766 = vmatprep.subr.bf16.mxu0 0
        %2767 = vmatpush1.bf16.msra.mxu0 %v2726
        %2768 = vmatprep.subr.bf16.mxu0 0
        %2769 = vmatpush1.bf16.msra.mxu0 %v2727
        %2770 = vmatprep.subr.bf16.mxu0 0
        %2771 = vmatpush1.bf16.msra.mxu0 %v2728
        %2772 = vmatprep.subr.bf16.mxu0 0
        %2773 = vmatpush1.bf16.msra.mxu0 %v2729
        %2774 = vmatprep.subr.bf16.mxu0 0
        %2775 = vmatpush1.bf16.msra.mxu0 %v2730
        %2776 = vmatprep.subr.bf16.mxu0 0
        %2777 = vmatpush1.bf16.msra.mxu0 %v2731
        %2778 = vmatprep.subr.bf16.mxu0 0
        %2779 = vmatpush1.bf16.msra.mxu0 %v2732
        %2780 = vmatprep.subr.bf16.mxu0 0
        %2781 = vmatpush1.bf16.msra.mxu0 %v2733
        %2782 = vmatprep.mubr.bf16.mxu0 %v2506
        %2783 = vmatmul.mubr.bf16.gmra.mrb[0].mxu0 %v2505
        %v2784 = vpop.f32.mrb[0].mxu0
        %v2785 = vadd.f32 %v2592, %v2784
        %v2786 = vpop.f32.mrb[0].mxu0
        %v2787 = vpop.f32.mrb[0].mxu0
        %v2788 = vadd.f32 %v2595, %v2787
        %v2789 = vpop.f32.mrb[0].mxu0
        %2790 = vmatprep.mubr.bf16.mxu0 %v2508
        %2791 = vmatmul.mubr.bf16.gmra.mrb[0].mxu0 %v2507
        %v2792 = vpop.f32.mrb[0].mxu0
        %v2793 = vadd.f32 %v2600, %v2792
        %v2794 = vpop.f32.mrb[0].mxu0
        %v2795 = vpop.f32.mrb[0].mxu0
        %v2796 = vadd.f32 %v2603, %v2795
        %v2797 = vpop.f32.mrb[0].mxu0
        %2798 = vmatprep.mubr.bf16.mxu0 %v2510
        %2799 = vmatmul.mubr.bf16.gmra.mrb[0].mxu0 %v2509
        %v2800 = vpop.f32.mrb[0].mxu0
        %v2801 = vadd.f32 %v2608, %v2800
        %v2802 = vpop.f32.mrb[0].mxu0
        %v2803 = vpop.f32.mrb[0].mxu0
        %v2804 = vadd.f32 %v2611, %v2803
        %v2805 = vpop.f32.mrb[0].mxu0
        %2806 = vmatprep.mubr.bf16.mxu0 %v2512
        %2807 = vmatmul.mubr.bf16.gmra.mrb[0].mxu0 %v2511
        %v2808 = vpop.f32.mrb[0].mxu0
        %v2809 = vadd.f32 %v2616, %v2808
        %v2810 = vpop.f32.mrb[0].mxu0
        %v2811 = vpop.f32.mrb[0].mxu0
        %v2812 = vadd.f32 %v2619, %v2811
        %v2813 = vpop.f32.mrb[0].mxu0
        %2814 = vmatprep.mubr.bf16.mxu0 %v2514
        %2815 = vmatmul.mubr.bf16.gmra.mrb[0].mxu0 %v2513
        %v2816 = vpop.f32.mrb[0].mxu0
        %v2817 = vadd.f32 %v2624, %v2816
        %v2818 = vpop.f32.mrb[0].mxu0
        %v2819 = vpop.f32.mrb[0].mxu0
        %v2820 = vadd.f32 %v2627, %v2819
        %v2821 = vpop.f32.mrb[0].mxu0
        %2822 = vmatprep.mubr.bf16.mxu0 %v2516
        %2823 = vmatmul.mubr.bf16.gmra.mrb[0].mxu0 %v2515
        %v2824 = vpop.f32.mrb[0].mxu0
        %v2825 = vadd.f32 %v2632, %v2824
        %v2826 = vpop.f32.mrb[0].mxu0
        %v2827 = vpop.f32.mrb[0].mxu0
        %v2828 = vadd.f32 %v2635, %v2827
        %v2829 = vpop.f32.mrb[0].mxu0
        %2830 = vmatprep.mubr.bf16.mxu0 %v2518
        %2831 = vmatmul.mubr.bf16.gmra.mrb[0].mxu0 %v2517
        %v2832 = vpop.f32.mrb[0].mxu0
        %v2833 = vadd.f32 %v2640, %v2832
        %v2834 = vpop.f32.mrb[0].mxu0
        %v2835 = vpop.f32.mrb[0].mxu0
        %v2836 = vadd.f32 %v2643, %v2835
        %v2837 = vpop.f32.mrb[0].mxu0
        %2838 = vmatprep.mubr.bf16.mxu0 %v2520
        %2839 = vmatmul.mubr.bf16.gmra.mrb[0].mxu0 %v2519
        %v2840 = vpop.f32.mrb[0].mxu0
        %v2841 = vadd.f32 %v2648, %v2840
        %v2842 = vpop.f32.mrb[0].mxu0
        %v2843 = vpop.f32.mrb[0].mxu0
        %v2844 = vadd.f32 %v2651, %v2843
        %v2845 = vpop.f32.mrb[0].mxu0
        %2846 = vdwg.mxu0
        %v2847 = vld [vmem:[%s15] sm:$0x1]
        %v2849 = vlaneseq
        %v2850 = vshrl.u32 %v2849, 7
        %v2851 = vsub.s32 0, %v2850
        %v2852 = vrot.slane %v2847, %v2851
        %v2854 = vadd.f32 %v2785, %v2852
        %v2855 = vadd.f32 %v2788, %v2852
        %v2856 = vadd.f32 %v2793, %v2852
        %v2857 = vadd.f32 %v2796, %v2852
        %v2858 = vadd.f32 %v2801, %v2852
        %v2859 = vadd.f32 %v2804, %v2852
        %v2860 = vadd.f32 %v2809, %v2852
        %v2861 = vadd.f32 %v2812, %v2852
        %v2862 = vadd.f32 %v2817, %v2852
        %v2863 = vadd.f32 %v2820, %v2852
        %v2864 = vadd.f32 %v2825, %v2852
        %v2865 = vadd.f32 %v2828, %v2852
        %v2866 = vadd.f32 %v2833, %v2852
        %v2867 = vadd.f32 %v2836, %v2852
        %v2868 = vadd.f32 %v2841, %v2852
        %v2869 = vadd.f32 %v2844, %v2852
        %v2870 = vmax.f32 %v2854, 0.0
        %v2871 = vmax.f32 %v2855, 0.0
        %v2872 = vmax.f32 %v2856, 0.0
        %v2873 = vmax.f32 %v2857, 0.0
        %v2874 = vmax.f32 %v2858, 0.0
        %v2875 = vmax.f32 %v2859, 0.0
        %v2876 = vmax.f32 %v2860, 0.0
        %v2877 = vmax.f32 %v2861, 0.0
        %v2878 = vmax.f32 %v2862, 0.0
        %v2879 = vmax.f32 %v2863, 0.0
        %v2880 = vmax.f32 %v2864, 0.0
        %v2881 = vmax.f32 %v2865, 0.0
        %v2882 = vmax.f32 %v2866, 0.0
        %v2883 = vmax.f32 %v2867, 0.0
        %v2884 = vmax.f32 %v2868, 0.0
        %v2885 = vmax.f32 %v2869, 0.0
        %v2886 = vpack.c.bf16 %v2871, %v2870
        %v2887 = vpack.c.bf16 %v2873, %v2872
        %v2888 = vpack.c.bf16 %v2875, %v2874
        %v2889 = vpack.c.bf16 %v2877, %v2876
        %v2890 = vpack.c.bf16 %v2879, %v2878
        %v2891 = vpack.c.bf16 %v2881, %v2880
        %v2892 = vpack.c.bf16 %v2883, %v2882
        %v2893 = vpack.c.bf16 %v2885, %v2884
        %v2894 = vld [vmem:[%s16] sm:$0xf]
        %v2895 = vld [vmem:[%s16 + $0x4] sm:$0xf]
        %v2896 = vld [vmem:[%s16 + $0x8] sm:$0xf]
        %v2897 = vld [vmem:[%s16 + $0xc] sm:$0xf]
        %v2898 = vld [vmem:[%s16 + $0x10] sm:$0xf]
        %v2899 = vld [vmem:[%s16 + $0x14] sm:$0xf]
        %v2900 = vld [vmem:[%s16 + $0x18] sm:$0xf]
        %v2901 = vld [vmem:[%s16 + $0x1c] sm:$0xf]
        %v2902 = vld [vmem:[%s16 + $0x20] sm:$0xf]
        %v2903 = vld [vmem:[%s16 + $0x24] sm:$0xf]
        %v2904 = vld [vmem:[%s16 + $0x28] sm:$0xf]
        %v2905 = vld [vmem:[%s16 + $0x2c] sm:$0xf]
        %v2906 = vld [vmem:[%s16 + $0x30] sm:$0xf]
        %v2907 = vld [vmem:[%s16 + $0x34] sm:$0xf]
        %v2908 = vld [vmem:[%s16 + $0x38] sm:$0xf]
        %v2909 = vld [vmem:[%s16 + $0x3c] sm:$0xf]
        %v2910 = vld [vmem:[%s17] sm:$0x1]
        %v2912 = vlaneseq
        %v2913 = vshrl.u32 %v2912, 7
        %v2914 = vsub.s32 0, %v2913
        %v2915 = vrot.slane %v2910, %v2914
        %v2933 = vunpack.c.l.b16 %v2894
        %v2934 = vunpack.c.l.b16 %v2895
        %v2935 = vunpack.c.l.b16 %v2896
        %v2936 = vunpack.c.l.b16 %v2897
        %v2937 = vunpack.c.l.b16 %v2898
        %v2938 = vunpack.c.l.b16 %v2899
        %v2939 = vunpack.c.l.b16 %v2900
        %v2940 = vunpack.c.l.b16 %v2901
        %v2941 = vunpack.c.l.b16 %v2902
        %v2942 = vunpack.c.l.b16 %v2903
        %v2943 = vunpack.c.l.b16 %v2904
        %v2944 = vunpack.c.l.b16 %v2905
        %v2945 = vunpack.c.l.b16 %v2906
        %v2946 = vunpack.c.l.b16 %v2907
        %v2947 = vunpack.c.l.b16 %v2908
        %v2948 = vunpack.c.l.b16 %v2909
        %v2949 = vpack.c.b16 %v2934, %v2933
        %v2950 = vpack.c.b16 %v2936, %v2935
        %v2951 = vpack.c.b16 %v2938, %v2937
        %v2952 = vpack.c.b16 %v2940, %v2939
        %v2953 = vpack.c.b16 %v2942, %v2941
        %v2954 = vpack.c.b16 %v2944, %v2943
        %v2955 = vpack.c.b16 %v2946, %v2945
        %v2956 = vpack.c.b16 %v2948, %v2947
        %2965 = vmatprep.subr.bf16.mxu0 0
        %2966 = vmatpush1.bf16.msra.mxu0 %v2949
        %2967 = vmatprep.subr.bf16.mxu0 0
        %2968 = vmatpush1.bf16.msra.mxu0 %v2950
        %2969 = vmatprep.subr.bf16.mxu0 0
        %2970 = vmatpush1.bf16.msra.mxu0 %v2951
        %2971 = vmatprep.subr.bf16.mxu0 0
        %2972 = vmatpush1.bf16.msra.mxu0 %v2952
        %2973 = vmatprep.subr.bf16.mxu0 0
        %2974 = vmatpush1.bf16.msra.mxu0 %v2953
        %2975 = vmatprep.subr.bf16.mxu0 0
        %2976 = vmatpush1.bf16.msra.mxu0 %v2954
        %2977 = vmatprep.subr.bf16.mxu0 0
        %2978 = vmatpush1.bf16.msra.mxu0 %v2955
        %2979 = vmatprep.subr.bf16.mxu0 0
        %2980 = vmatpush1.bf16.msra.mxu0 %v2956
        %2981 = vmatprep.subr.bf16.mxu0 0
        %2982 = vmatpush1.bf16.msra.mxu0 0
        %2983 = vmatprep.subr.bf16.mxu0 0
        %2984 = vmatpush1.bf16.msra.mxu0 0
        %2985 = vmatprep.subr.bf16.mxu0 0
        %2986 = vmatpush1.bf16.msra.mxu0 0
        %2987 = vmatprep.subr.bf16.mxu0 0
        %2988 = vmatpush1.bf16.msra.mxu0 0
        %2989 = vmatprep.subr.bf16.mxu0 0
        %2990 = vmatpush1.bf16.msra.mxu0 0
        %2991 = vmatprep.subr.bf16.mxu0 0
        %2992 = vmatpush1.bf16.msra.mxu0 0
        %2993 = vmatprep.subr.bf16.mxu0 0
        %2994 = vmatpush1.bf16.msra.mxu0 0
        %2995 = vmatprep.subr.bf16.mxu0 0
        %2996 = vmatpush1.bf16.msra.mxu0 0
        %2997 = vmatprep.mubr.bf16.mxu0 0
        %2998 = vmatmul.mubr.bf16.gmra.mrb[0].mxu0 %v2886
        %v2999 = vpop.f32.mrb[0].mxu0
        %v3000 = vadd.f32 %v2915, %v2999
        %v3001 = vpop.f32.mrb[0].mxu0
        %v3002 = vpop.f32.mrb[0].mxu0
        %v3003 = vadd.f32 %v2915, %v3002
        %v3004 = vpop.f32.mrb[0].mxu0
        %3005 = vmatprep.mubr.bf16.mxu0 0
        %3006 = vmatmul.mubr.bf16.gmra.mrb[0].mxu0 %v2887
        %v3007 = vpop.f32.mrb[0].mxu0
        %v3008 = vadd.f32 %v2915, %v3007
        %v3009 = vpop.f32.mrb[0].mxu0
        %v3010 = vpop.f32.mrb[0].mxu0
        %v3011 = vadd.f32 %v2915, %v3010
        %v3012 = vpop.f32.mrb[0].mxu0
        %3013 = vmatprep.mubr.bf16.mxu0 0
        %3014 = vmatmul.mubr.bf16.gmra.mrb[0].mxu0 %v2888
        %v3015 = vpop.f32.mrb[0].mxu0
        %v3016 = vadd.f32 %v2915, %v3015
        %v3017 = vpop.f32.mrb[0].mxu0
        %v3018 = vpop.f32.mrb[0].mxu0
        %v3019 = vadd.f32 %v2915, %v3018
        %v3020 = vpop.f32.mrb[0].mxu0
        %3021 = vmatprep.mubr.bf16.mxu0 0
        %3022 = vmatmul.mubr.bf16.gmra.mrb[0].mxu0 %v2889
        %v3023 = vpop.f32.mrb[0].mxu0
        %v3024 = vadd.f32 %v2915, %v3023
        %v3025 = vpop.f32.mrb[0].mxu0
        %v3026 = vpop.f32.mrb[0].mxu0
        %v3027 = vadd.f32 %v2915, %v3026
        %v3028 = vpop.f32.mrb[0].mxu0
        %3029 = vmatprep.mubr.bf16.mxu0 0
        %3030 = vmatmul.mubr.bf16.gmra.mrb[0].mxu0 %v2890
        %v3031 = vpop.f32.mrb[0].mxu0
        %v3032 = vadd.f32 %v2915, %v3031
        %v3033 = vpop.f32.mrb[0].mxu0
        %v3034 = vpop.f32.mrb[0].mxu0
        %v3035 = vadd.f32 %v2915, %v3034
        %v3036 = vpop.f32.mrb[0].mxu0
        %3037 = vmatprep.mubr.bf16.mxu0 0
        %3038 = vmatmul.mubr.bf16.gmra.mrb[0].mxu0 %v2891
        %v3039 = vpop.f32.mrb[0].mxu0
        %v3040 = vadd.f32 %v2915, %v3039
        %v3041 = vpop.f32.mrb[0].mxu0
        %v3042 = vpop.f32.mrb[0].mxu0
        %v3043 = vadd.f32 %v2915, %v3042
        %v3044 = vpop.f32.mrb[0].mxu0
        %3045 = vmatprep.mubr.bf16.mxu0 0
        %3046 = vmatmul.mubr.bf16.gmra.mrb[0].mxu0 %v2892
        %v3047 = vpop.f32.mrb[0].mxu0
        %v3048 = vadd.f32 %v2915, %v3047
        %v3049 = vpop.f32.mrb[0].mxu0
        %v3050 = vpop.f32.mrb[0].mxu0
        %v3051 = vadd.f32 %v2915, %v3050
        %v3052 = vpop.f32.mrb[0].mxu0
        %3053 = vmatprep.mubr.bf16.mxu0 0
        %3054 = vmatmul.mubr.bf16.gmra.mrb[0].mxu0 %v2893
        %v3055 = vpop.f32.mrb[0].mxu0
        %v3056 = vadd.f32 %v2915, %v3055
        %v3057 = vpop.f32.mrb[0].mxu0
        %v3058 = vpop.f32.mrb[0].mxu0
        %v3059 = vadd.f32 %v2915, %v3058
        %v3060 = vpop.f32.mrb[0].mxu0
        %3061 = vdwg.mxu0
        %3078 = vrot.lane.b32.xlu0 %v2126, 3
        %v3079 = vpop.permute.xlu0 %3078
        %3080 = vrot.lane.b32.xlu0 %v2129, 3
        %v3081 = vpop.permute.xlu0 %3080
        %3082 = vrot.lane.b32.xlu0 %v2134, 3
        %v3083 = vpop.permute.xlu0 %3082
        %3084 = vrot.lane.b32.xlu0 %v2137, 3
        %v3085 = vpop.permute.xlu0 %3084
        %3086 = vrot.lane.b32.xlu0 %v2142, 3
        %v3087 = vpop.permute.xlu0 %3086
        %3088 = vrot.lane.b32.xlu0 %v2145, 3
        %v3089 = vpop.permute.xlu0 %3088
        %3090 = vrot.lane.b32.xlu0 %v2150, 3
        %v3091 = vpop.permute.xlu0 %3090
        %3092 = vrot.lane.b32.xlu0 %v2153, 3
        %v3093 = vpop.permute.xlu0 %3092
        %3094 = vrot.lane.b32.xlu0 %v2158, 3
        %v3095 = vpop.permute.xlu0 %3094
        %3096 = vrot.lane.b32.xlu0 %v2161, 3
        %v3097 = vpop.permute.xlu0 %3096
        %3098 = vrot.lane.b32.xlu0 %v2166, 3
        %v3099 = vpop.permute.xlu0 %3098
        %3100 = vrot.lane.b32.xlu0 %v2169, 3
        %v3101 = vpop.permute.xlu0 %3100
        %3102 = vrot.lane.b32.xlu0 %v2174, 3
        %v3103 = vpop.permute.xlu0 %3102
        %3104 = vrot.lane.b32.xlu0 %v2177, 3
        %v3105 = vpop.permute.xlu0 %3104
        %3106 = vrot.lane.b32.xlu0 %v2182, 3
        %v3107 = vpop.permute.xlu0 %3106
        %3108 = vrot.lane.b32.xlu0 %v2185, 3
        %v3109 = vpop.permute.xlu0 %3108
        %vm3126 = vcmask 23552
        %v3127 = vsel %vm3126, %v3000, %v3079
        %v3128 = vsel %vm3126, %v3003, %v3081
        %v3129 = vsel %vm3126, %v3008, %v3083
        %v3130 = vsel %vm3126, %v3011, %v3085
        %v3131 = vsel %vm3126, %v3016, %v3087
        %v3132 = vsel %vm3126, %v3019, %v3089
        %v3133 = vsel %vm3126, %v3024, %v3091
        %v3134 = vsel %vm3126, %v3027, %v3093
        %v3135 = vsel %vm3126, %v3032, %v3095
        %v3136 = vsel %vm3126, %v3035, %v3097
        %v3137 = vsel %vm3126, %v3040, %v3099
        %v3138 = vsel %vm3126, %v3043, %v3101
        %v3139 = vsel %vm3126, %v3048, %v3103
        %v3140 = vsel %vm3126, %v3051, %v3105
        %v3141 = vsel %vm3126, %v3056, %v3107
        %v3142 = vsel %vm3126, %v3059, %v3109
        %vm3143 = vcmask 31744
        %3144 = vst.msk [vmem:[%s623] sm:$0xff] %vm3143, %v3127
        %3145 = vst.msk [vmem:[%s623 + $0x8] sm:$0xff] %vm3143, %v3128
        %3146 = vst.msk [vmem:[%s623 + $0x10] sm:$0xff] %vm3143, %v3129
        %3147 = vst.msk [vmem:[%s623 + $0x18] sm:$0xff] %vm3143, %v3130
        %3148 = vst.msk [vmem:[%s623 + $0x20] sm:$0xff] %vm3143, %v3131
        %3149 = vst.msk [vmem:[%s623 + $0x28] sm:$0xff] %vm3143, %v3132
        %3150 = vst.msk [vmem:[%s623 + $0x30] sm:$0xff] %vm3143, %v3133
        %3151 = vst.msk [vmem:[%s623 + $0x38] sm:$0xff] %vm3143, %v3134
        %3152 = vst.msk [vmem:[%s623 + $0x40] sm:$0xff] %vm3143, %v3135
        %3153 = vst.msk [vmem:[%s623 + $0x48] sm:$0xff] %vm3143, %v3136
        %3154 = vst.msk [vmem:[%s623 + $0x50] sm:$0xff] %vm3143, %v3137
        %3155 = vst.msk [vmem:[%s623 + $0x58] sm:$0xff] %vm3143, %v3138
        %3156 = vst.msk [vmem:[%s623 + $0x60] sm:$0xff] %vm3143, %v3139
        %3157 = vst.msk [vmem:[%s623 + $0x68] sm:$0xff] %vm3143, %v3140
        %3158 = vst.msk [vmem:[%s623 + $0x70] sm:$0xff] %vm3143, %v3141
        %3159 = vst.msk [vmem:[%s623 + $0x78] sm:$0xff] %vm3143, %v3142
        %s3160 = smul.u32 16, %s33
        %p3161 = scmp.lt.s32.totalorder %s3160, 31
        %s3162 = scalar_select %p3161, %s3160, 31
        %s3163 = smul.addr %s3162, 8
        %s3164 = scalar_lea.vmem %s18, %s3163
        // Predicated region
        $region105: #{tpu_custom_call.1} parent=91 // pred_check
          %p3165 = pneg %p434
        $region106: #{tpu_custom_call.1} parent=91 // pred_check_branch
          %3167 = sbr.rel (%p3165) target = $region108
        $region107: #{tpu_custom_call.1} parent=91 // pred_region
          %s3168 = smul.u32 16, %s33
        $region108: #{tpu_custom_call.1} parent=91 // pred_fallthru
          _
      $region92: #{tpu_custom_call.1} parent=5 // pred_fallthru
        _
      %p3169 = scmp.le.s32.totalorder 2, %s28
      // Predicated region
      $region109: #{tpu_custom_call.1} parent=5 // pred_check
        %p3170 = pneg %p3169
      $region110: #{tpu_custom_call.1} parent=5 // pred_check_branch
        %3172 = sbr.rel (%p3170) target = $region112
      $region111: #{tpu_custom_call.1} parent=5 // pred_region
        %s3173 = ssub.s32 %s28, 2
        // Predicated region
        $region113: #{tpu_custom_call.1} parent=111 // pred_check
          %p3174 = pneg %p440
        $region114: #{tpu_custom_call.1} parent=111 // pred_check_branch
          %3176 = sbr.rel (%p3174) target = $region116
        $region115: #{tpu_custom_call.1} parent=111 // pred_region
          %s3177 = smul.u32 16, %s34
          %p3178 = scmp.lt.s32.totalorder %s3177, 31
          %s3179 = scalar_select %p3178, %s3177, 31
          %s3180 = smul.addr %s3179, 8
          %s3181 = scalar_lea.vmem %s18, %s3180
        $region116: #{tpu_custom_call.1} parent=111 // pred_fallthru
          _
      $region112: #{tpu_custom_call.1} parent=5 // pred_fallthru
        _
    $region6: #{tpu_custom_call.1} parent=1 // loop_footer
      %s32 = sadd.s32 1, %s28
    $region7: #{tpu_custom_call.1} parent=1 // loop_footer_branch
      %27 = sbr.rel target = $region3
    $region8: #{tpu_custom_call.1} parent=1 // loop_exit
      _
    %3182 = vsyncpa [#allocation4], 1
    %s3183 = scalar_lea.sflag [#allocation4], 1
    %3184 = vsyncpa %s3183, 1
    %3185 = vsyncpa [#allocation6], 1

</llo_original>
